<compile_context>
chip_gen: v7x
topology: tpu7x:2x2x1
jax: 0.10.0
libtpu: 0.0.40
codegen_flags: <defaults>
</compile_context>

<pallas_src>
import functools

import jax
import jax.numpy as jnp
from jax import lax
from jax.experimental import pallas as pl
from jax.experimental.pallas import tpu as pltpu


C_PAD = 128     # lane-dense channel padding (filters x batch folded into lanes)
K2_PAD = 16     # statistic degree rows padded to a sublane-friendly multiple


# ----------------------------------------------------------------------------
# Pallas kernels
# ----------------------------------------------------------------------------

def _spectral_conv_kernel(lpow_ref, x_ref, a_ref, beta_ref, mask_ref, out_ref,
                          p_ref):
    # lpow_ref: (K*N, N) bf16   stacked [I; L; ...; L^(K-1)]
    # x_ref:    (N, C)   f32    node signals, C = filters x batch (padded to 128)
    # a_ref:    (K, C, C) bf16  per-degree kron(alpha_k, I_B), zero-padded
    # beta_ref: (1, C)   f32
    # mask_ref: (N, C)   f32
    # out_ref:  (N, C)   f32
    # p_ref:    (K*N, C) bf16   VMEM scratch holding all L^k x at once
    num_degrees = a_ref.shape[0]
    num_nodes = x_ref.shape[0]

    xb = x_ref[...].astype(jnp.bfloat16)
    # One big MXU matmul replaces the serially dependent L @ (L @ ...) chain.
    p_ref[...] = jnp.dot(lpow_ref[...], xb,
                         preferred_element_type=jnp.float32).astype(jnp.bfloat16)

    # K independent (pipelineable) matmuls against the kron'd filter blocks.
    acc = jnp.dot(p_ref[0:num_nodes, :], a_ref[0],
                  preferred_element_type=jnp.float32)
    for k in range(1, num_degrees):
        acc = acc + jnp.dot(p_ref[k * num_nodes:(k + 1) * num_nodes, :],
                            a_ref[k], preferred_element_type=jnp.float32)

    y = acc + beta_ref[...]
    out_ref[...] = jnp.maximum(y, 0.0) * mask_ref[...]


def _statistic_kernel(lspow_ref, smat_ref, z_ref, mask_ref, out_ref, q_ref):
    # lspow_ref: (K2*N, N) bf16   stacked [I; Ls; ...; Ls^(K2-1)]
    # smat_ref:  (K2p, K2*N) f32  block row-mean operator kron(I_K2, 1/N) (padded rows)
    # z_ref:     (N, C) f32       ; mask_ref: (N, C) f32
    # out_ref:   (2, K2p, C) f32  (plane 0 = mean, plane 1 = variance)
    # q_ref:     (K2*N, C) f32    VMEM scratch with all Ls^k (z*mask)
    zm = (z_ref[...] * mask_ref[...]).astype(jnp.bfloat16)
    q_ref[...] = jnp.dot(lspow_ref[...], zm, preferred_element_type=jnp.float32)
    q = q_ref[...]
    mu = jnp.dot(smat_ref[...], q, preferred_element_type=jnp.float32)
    ex2 = jnp.dot(smat_ref[...], q * q, preferred_element_type=jnp.float32)
    var = jnp.maximum(ex2 - mu * mu, 0.0)
    out_ref[0] = mu
    out_ref[1] = var


def _fc_kernel(x_ref, w1, b1, w2, b2, w3, b3, w4, b4, out_ref):
    # 4-layer MLP: 480 -> 512 -> 384 -> 128 -> 128 (zero-padded; logits are [:9]).
    h = x_ref[...].astype(jnp.bfloat16)
    h = jnp.maximum(jnp.dot(h, w1[...], preferred_element_type=jnp.float32)
                    + b1[...], 0.0).astype(jnp.bfloat16)
    h = jnp.maximum(jnp.dot(h, w2[...], preferred_element_type=jnp.float32)
                    + b2[...], 0.0).astype(jnp.bfloat16)
    h = jnp.maximum(jnp.dot(h, w3[...], preferred_element_type=jnp.float32)
                    + b3[...], 0.0).astype(jnp.bfloat16)
    out_ref[...] = (jnp.dot(h, w4[...], preferred_element_type=jnp.float32)
                    + b4[...])


# ----------------------------------------------------------------------------
# pallas_call wrappers (no grid: each kernel runs once over the whole batch)
# ----------------------------------------------------------------------------

def spectral_conv(xf, lpow, alpha_blocks, beta_cols, mask_cols):
    kn, n = lpow.shape
    c = xf.shape[1]
    return pl.pallas_call(
        _spectral_conv_kernel,
        out_shape=jax.ShapeDtypeStruct((n, c), jnp.float32),
        scratch_shapes=[pltpu.VMEM((kn, c), jnp.bfloat16)],
    )(lpow, xf, alpha_blocks, beta_cols, mask_cols)


def statistic(zf, lspow, smat, mask_cols):
    k2n, _ = lspow.shape
    k2p = smat.shape[0]
    c = zf.shape[1]
    return pl.pallas_call(
        _statistic_kernel,
        out_shape=jax.ShapeDtypeStruct((2, k2p, c), jnp.float32),
        scratch_shapes=[pltpu.VMEM((k2n, c), jnp.float32)],
    )(lspow, smat, zf, mask_cols)


def fully_connected(x, consts):
    batch = x.shape[0]
    n_out = consts["W4p"].shape[1]
    return pl.pallas_call(
        _fc_kernel,
        out_shape=jax.ShapeDtypeStruct((batch, n_out), jnp.float32),
    )(x, consts["W1p"], consts["b1p"], consts["W2p"], consts["b2p"],
      consts["W3p"], consts["b3p"], consts["W4p"], consts["b4p"])


# ----------------------------------------------------------------------------
# Plain-JAX glue (tiny tensors between kernels)
# ----------------------------------------------------------------------------

def dynamic_pool_mask(sc, prev_mask, num_active):
    # TODO(synk): original DynamicPool (layers.py) unavailable; top-k active-node
    #             selection reconstructed with lax.top_k (ties may keep extras).
    scores = jnp.max(jnp.abs(sc), axis=-1) * prev_mask           # (B, N)
    kth = lax.top_k(scores, num_active)[0][:, -1]                # (B,)
    return (scores >= kth[:, None]).astype(jnp.float32) * prev_mask


def unfold_channels(scf, num_filters, batch_size):
    # (N, C_PAD) lane fold (filter-major, batch-minor) -> (B, N, F)
    n = scf.shape[0]
    sc = scf[:, :num_filters * batch_size].reshape(n, num_filters, batch_size)
    return jnp.transpose(sc, (2, 0, 1))


def fold_mask(mask, c_pad):
    # (B, N) -> (N, c_pad) matching the filter-major / batch-minor lane fold.
    batch = mask.shape[0]
    return jnp.tile(mask.T, (1, c_pad // batch))


def tigranet_forward(x, consts, *, batch_size, num_nodes,
                     num_active_1, num_active_2):
    b, n = batch_size, num_nodes
    f1, f2, k2 = 10, 20, 12

    # prepare_input: flatten, remove per-image mean, fold batch into lanes.
    xp = x.reshape(b, n)
    xp = xp - jnp.mean(xp, axis=1, keepdims=True)
    xf = jnp.pad(xp.T, ((0, 0), (0, C_PAD - b)))                 # (N, C_PAD)

    mask0 = jnp.ones((b, n), dtype=jnp.float32)
    ones_cols = jnp.ones((n, C_PAD), dtype=jnp.float32)

    sc1f = spectral_conv(xf, consts["lpow"], consts["A1"], consts["beta1"],
                         ones_cols)                              # (N, C_PAD)
    mask1 = dynamic_pool_mask(unfold_channels(sc1f, f1, b), mask0, num_active_1)

    sc2f = spectral_conv(sc1f, consts["lpow"], consts["A2"], consts["beta2"],
                         fold_mask(mask1, C_PAD))                # (N, C_PAD)
    mask2 = dynamic_pool_mask(unfold_channels(sc2f, f2, b), mask1, num_active_2)

    stats = statistic(sc2f, consts["lspow"], consts["smat"],
                      fold_mask(mask2, C_PAD))                   # (2, K2_PAD, C_PAD)

    mu = stats[0, :k2, :f2 * b].reshape(k2, f2, b)
    var = stats[1, :k2, :f2 * b].reshape(k2, f2, b)
    feat = jnp.concatenate([mu, var], axis=1)                    # (K2, 2*F2, B)
    feat = jnp.transpose(feat, (2, 0, 1)).reshape(b, k2 * 2 * f2)  # (B, 480)

    logits = fully_connected(feat, consts)                       # (B, 128)
    return logits[:, :9]


# ----------------------------------------------------------------------------
# Precomputed constants (stacked Laplacian powers, kron'd filters, padded FC)
# ----------------------------------------------------------------------------

def _stack_powers(mat, num_terms):
    n = mat.shape[0]
    powers = [jnp.eye(n, dtype=jnp.float32)]
    for _ in range(1, num_terms):
        powers.append(powers[-1] @ mat)
    return jnp.concatenate(powers, axis=0)                       # (K*N, N)


def _pad_to(a, shape):
    return jnp.pad(a, [(0, s - d) for d, s in zip(a.shape, shape)])


def _alpha_blocks(alpha, batch_size, c_pad):
    # kron(alpha_k, I_B) embedded in a zero (c_pad, c_pad) block, per degree.
    k, f_in, f_out = alpha.shape
    eye_b = jnp.eye(batch_size, dtype=alpha.dtype)
    blk = alpha[:, :, None, :, None] * eye_b[None, None, :, None, :]
    blk = blk.reshape(k, f_in * batch_size, f_out * batch_size)
    return _pad_to(blk, (k, c_pad, c_pad)).astype(jnp.bfloat16)


def _beta_cols(beta, batch_size, c_pad):
    return _pad_to(jnp.repeat(beta, batch_size, axis=1), (1, c_pad))


def precompute(params, L, Ls, batch_size):
    k1, k2, n = 8, 12, L.shape[0]
    smat = jnp.repeat(jnp.eye(k2, dtype=jnp.float32), n, axis=1) / float(n)
    return {
        "lpow": _stack_powers(L, k1).astype(jnp.bfloat16),       # (8*N, N)
        "lspow": _stack_powers(Ls, k2).astype(jnp.bfloat16),     # (12*N, N)
        "smat": _pad_to(smat, (K2_PAD, k2 * n)),                 # (16, 12*N)
        "A1": _alpha_blocks(params["alpha1"], batch_size, C_PAD),
        "A2": _alpha_blocks(params["alpha2"], batch_size, C_PAD),
        "beta1": _beta_cols(params["beta1"], batch_size, C_PAD),
        "beta2": _beta_cols(params["beta2"], batch_size, C_PAD),
        "W1p": _pad_to(params["W1"], (480, 512)).astype(jnp.bfloat16),
        "b1p": _pad_to(params["b1"], (1, 512)),
        "W2p": _pad_to(params["W2"], (512, 384)).astype(jnp.bfloat16),
        "b2p": _pad_to(params["b2"], (1, 384)),
        "W3p": _pad_to(params["W3"], (384, 128)).astype(jnp.bfloat16),
        "b3p": _pad_to(params["b3"], (1, 128)),
        "W4p": _pad_to(params["W4"], (128, 128)).astype(jnp.bfloat16),
        "b4p": _pad_to(params["b4"], (1, 128)),
    }


# ----------------------------------------------------------------------------
# Deterministic parameters & graph Laplacian
# ----------------------------------------------------------------------------

def build_grid_laplacian(dim):
    n = dim * dim
    A = [[0.0] * n for _ in range(n)]
    for r in range(dim):
        for c in range(dim):
            i = r * dim + c
            for dr, dc in ((1, 0), (-1, 0), (0, 1), (0, -1)):
                rr, cc = r + dr, c + dc
                if 0 <= rr < dim and 0 <= cc < dim:
                    A[i][rr * dim + cc] = 1.0
    A = jnp.array(A, dtype=jnp.float32)
    dinv = 1.0 / jnp.sqrt(jnp.sum(A, axis=1))
    L = jnp.eye(n, dtype=jnp.float32) - dinv[:, None] * A * dinv[None, :]
    Ls = L - jnp.eye(n, dtype=jnp.float32)                       # shifted Laplacian
    return L, Ls


def init_params(key):
    ks = jax.random.split(key, 12)

    def dense(k, fan_in, shape):
        return (jax.random.normal(k, shape, dtype=jnp.float32)
                / jnp.sqrt(float(fan_in)))

    return {
        # spectral_conv1: f_in=1 -> f_out=10, degree 7 (8 terms)
        "alpha1": dense(ks[0], 8 * 1, (8, 1, 10)),
        "beta1": 0.01 * jax.random.normal(ks[1], (1, 10), dtype=jnp.float32),
        # spectral_conv2: f_in=10 -> f_out=20, degree 7 (8 terms)
        "alpha2": dense(ks[2], 8 * 10, (8, 10, 20)),
        "beta2": 0.01 * jax.random.normal(ks[3], (1, 20), dtype=jnp.float32),
        # fully connected: 480 -> 500 -> 300 -> 100 -> 9
        "W1": dense(ks[4], 480, (480, 500)), "b1": jnp.zeros((1, 500), jnp.float32),
        "W2": dense(ks[5], 500, (500, 300)), "b2": jnp.zeros((1, 300), jnp.float32),
        "W3": dense(ks[6], 300, (300, 100)), "b3": jnp.zeros((1, 100), jnp.float32),
        "W4": dense(ks[7], 100, (100, 9)),   "b4": jnp.zeros((1, 9), jnp.float32),
    }


# ----------------------------------------------------------------------------
# Main
# ----------------------------------------------------------------------------

if __name__ == "__main__":
    dim = 8                 # small spatial size -> num_nodes = 64
    batch = 2
    num_active_1 = 40       # scaled-down analogue of 600 active nodes
    num_active_2 = 20       # scaled-down analogue of 300 active nodes

    key = jax.random.PRNGKey(0)
    k_param, k_x = jax.random.split(key)
    params = init_params(k_param)
    L, Ls = build_grid_laplacian(dim)
    consts = precompute(params, L, Ls, batch)

    num_nodes = dim * dim
    x = jax.random.normal(k_x, (batch, 1, dim, dim), dtype=jnp.float32)

    fwd = jax.jit(functools.partial(tigranet_forward,
                                    batch_size=batch, num_nodes=num_nodes,
                                    num_active_1=num_active_1,
                                    num_active_2=num_active_2))
    out = fwd(x, consts)
    jax.block_until_ready(out)
    assert out.shape == (batch, 9), out.shape
    print("KERNEL_OK")
</pallas_src>

<mosaic_0001>
module attributes {stable_mosaic.version = 11 : i64} {
  func.func @_spectral_conv_kernel(%arg0: memref<512x64xbf16, #tpu.memory_space<vmem>>, %arg1: memref<64x128xf32, #tpu.memory_space<vmem>>, %arg2: memref<8x128x128xbf16, #tpu.memory_space<vmem>>, %arg3: memref<1x128xf32, #tpu.memory_space<vmem>>, %arg4: memref<64x128xf32, #tpu.memory_space<vmem>>, %arg5: memref<64x128xf32, #tpu.memory_space<vmem>>, %arg6: memref<512x128xbf16, #tpu.memory_space<vmem>>) attributes {dimension_semantics = [], scalar_prefetch = 0 : i64, scratch_operands = 1 : i64, tpu.core_type = #tpu.core_type<tc>} {
    %c0 = arith.constant 0 : index
    %c0_0 = arith.constant 0 : index
    %0 = vector.load %arg1[%c0, %c0_0] : memref<64x128xf32, #tpu.memory_space<vmem>>, vector<64x128xf32>
    %1 = arith.truncf %0 : vector<64x128xf32> to vector<64x128xbf16>
    %c0_1 = arith.constant 0 : index
    %c0_2 = arith.constant 0 : index
    %2 = vector.load %arg0[%c0_1, %c0_2] : memref<512x64xbf16, #tpu.memory_space<vmem>>, vector<512x64xbf16>
    %cst = arith.constant dense<0.000000e+00> : vector<512x128xf32>
    %3 = tpu.matmul %2, %1, %cst {dimension_numbers = #tpu.dot_dimension_numbers<[1], [0], [0], [1], [0, 0, 1, 1], [], []>} : vector<512x64xbf16>, vector<64x128xbf16>, vector<512x128xf32> -> vector<512x128xf32>
    %4 = arith.truncf %3 : vector<512x128xf32> to vector<512x128xbf16>
    %c0_3 = arith.constant 0 : index
    %c0_4 = arith.constant 0 : index
    %5 = vector.load %arg6[%c0_3, %c0_4] : memref<512x128xbf16, #tpu.memory_space<vmem>>, vector<512x128xbf16>
    tpu.vector_store %arg6[%c0_3, %c0_4], %4 {strides = array<i32>} : memref<512x128xbf16, #tpu.memory_space<vmem>>, vector<512x128xbf16>,
    %c0_5 = arith.constant 0 : index
    %c0_6 = arith.constant 0 : index
    %6 = vector.load %arg6[%c0_5, %c0_6] : memref<512x128xbf16, #tpu.memory_space<vmem>>, vector<64x128xbf16>
    %c0_7 = arith.constant 0 : index
    %c0_8 = arith.constant 0 : index
    %c0_9 = arith.constant 0 : index
    %7 = vector.load %arg2[%c0_7, %c0_8, %c0_9] : memref<8x128x128xbf16, #tpu.memory_space<vmem>>, vector<1x128x128xbf16>
    %8 = vector.shape_cast %7 : vector<1x128x128xbf16> to vector<128x128xbf16>
    %cst_10 = arith.constant dense<0.000000e+00> : vector<64x128xf32>
    %9 = tpu.matmul %6, %8, %cst_10 {dimension_numbers = #tpu.dot_dimension_numbers<[1], [0], [0], [1], [0, 0, 1, 1], [], []>} : vector<64x128xbf16>, vector<128x128xbf16>, vector<64x128xf32> -> vector<64x128xf32>
    %c64 = arith.constant 64 : index
    %c0_11 = arith.constant 0 : index
    %10 = vector.load %arg6[%c64, %c0_11] : memref<512x128xbf16, #tpu.memory_space<vmem>>, vector<64x128xbf16>
    %c1 = arith.constant 1 : index
    %c0_12 = arith.constant 0 : index
    %c0_13 = arith.constant 0 : index
    %11 = vector.load %arg2[%c1, %c0_12, %c0_13] : memref<8x128x128xbf16, #tpu.memory_space<vmem>>, vector<1x128x128xbf16>
    %12 = vector.shape_cast %11 : vector<1x128x128xbf16> to vector<128x128xbf16>
    %cst_14 = arith.constant dense<0.000000e+00> : vector<64x128xf32>
    %13 = tpu.matmul %10, %12, %cst_14 {dimension_numbers = #tpu.dot_dimension_numbers<[1], [0], [0], [1], [0, 0, 1, 1], [], []>} : vector<64x128xbf16>, vector<128x128xbf16>, vector<64x128xf32> -> vector<64x128xf32>
    %14 = arith.addf %9, %13 : vector<64x128xf32>
    %c128 = arith.constant 128 : index
    %c0_15 = arith.constant 0 : index
    %15 = vector.load %arg6[%c128, %c0_15] : memref<512x128xbf16, #tpu.memory_space<vmem>>, vector<64x128xbf16>
    %c2 = arith.constant 2 : index
    %c0_16 = arith.constant 0 : index
    %c0_17 = arith.constant 0 : index
    %16 = vector.load %arg2[%c2, %c0_16, %c0_17] : memref<8x128x128xbf16, #tpu.memory_space<vmem>>, vector<1x128x128xbf16>
    %17 = vector.shape_cast %16 : vector<1x128x128xbf16> to vector<128x128xbf16>
    %cst_18 = arith.constant dense<0.000000e+00> : vector<64x128xf32>
    %18 = tpu.matmul %15, %17, %cst_18 {dimension_numbers = #tpu.dot_dimension_numbers<[1], [0], [0], [1], [0, 0, 1, 1], [], []>} : vector<64x128xbf16>, vector<128x128xbf16>, vector<64x128xf32> -> vector<64x128xf32>
    %19 = arith.addf %14, %18 : vector<64x128xf32>
    %c192 = arith.constant 192 : index
    %c0_19 = arith.constant 0 : index
    %20 = vector.load %arg6[%c192, %c0_19] : memref<512x128xbf16, #tpu.memory_space<vmem>>, vector<64x128xbf16>
    %c3 = arith.constant 3 : index
    %c0_20 = arith.constant 0 : index
    %c0_21 = arith.constant 0 : index
    %21 = vector.load %arg2[%c3, %c0_20, %c0_21] : memref<8x128x128xbf16, #tpu.memory_space<vmem>>, vector<1x128x128xbf16>
    %22 = vector.shape_cast %21 : vector<1x128x128xbf16> to vector<128x128xbf16>
    %cst_22 = arith.constant dense<0.000000e+00> : vector<64x128xf32>
    %23 = tpu.matmul %20, %22, %cst_22 {dimension_numbers = #tpu.dot_dimension_numbers<[1], [0], [0], [1], [0, 0, 1, 1], [], []>} : vector<64x128xbf16>, vector<128x128xbf16>, vector<64x128xf32> -> vector<64x128xf32>
    %24 = arith.addf %19, %23 : vector<64x128xf32>
    %c256 = arith.constant 256 : index
    %c0_23 = arith.constant 0 : index
    %25 = vector.load %arg6[%c256, %c0_23] : memref<512x128xbf16, #tpu.memory_space<vmem>>, vector<64x128xbf16>
    %c4 = arith.constant 4 : index
    %c0_24 = arith.constant 0 : index
    %c0_25 = arith.constant 0 : index
    %26 = vector.load %arg2[%c4, %c0_24, %c0_25] : memref<8x128x128xbf16, #tpu.memory_space<vmem>>, vector<1x128x128xbf16>
    %27 = vector.shape_cast %26 : vector<1x128x128xbf16> to vector<128x128xbf16>
    %cst_26 = arith.constant dense<0.000000e+00> : vector<64x128xf32>
    %28 = tpu.matmul %25, %27, %cst_26 {dimension_numbers = #tpu.dot_dimension_numbers<[1], [0], [0], [1], [0, 0, 1, 1], [], []>} : vector<64x128xbf16>, vector<128x128xbf16>, vector<64x128xf32> -> vector<64x128xf32>
    %29 = arith.addf %24, %28 : vector<64x128xf32>
    %c320 = arith.constant 320 : index
    %c0_27 = arith.constant 0 : index
    %30 = vector.load %arg6[%c320, %c0_27] : memref<512x128xbf16, #tpu.memory_space<vmem>>, vector<64x128xbf16>
    %c5 = arith.constant 5 : index
    %c0_28 = arith.constant 0 : index
    %c0_29 = arith.constant 0 : index
    %31 = vector.load %arg2[%c5, %c0_28, %c0_29] : memref<8x128x128xbf16, #tpu.memory_space<vmem>>, vector<1x128x128xbf16>
    %32 = vector.shape_cast %31 : vector<1x128x128xbf16> to vector<128x128xbf16>
    %cst_30 = arith.constant dense<0.000000e+00> : vector<64x128xf32>
    %33 = tpu.matmul %30, %32, %cst_30 {dimension_numbers = #tpu.dot_dimension_numbers<[1], [0], [0], [1], [0, 0, 1, 1], [], []>} : vector<64x128xbf16>, vector<128x128xbf16>, vector<64x128xf32> -> vector<64x128xf32>
    %34 = arith.addf %29, %33 : vector<64x128xf32>
    %c384 = arith.constant 384 : index
    %c0_31 = arith.constant 0 : index
    %35 = vector.load %arg6[%c384, %c0_31] : memref<512x128xbf16, #tpu.memory_space<vmem>>, vector<64x128xbf16>
    %c6 = arith.constant 6 : index
    %c0_32 = arith.constant 0 : index
    %c0_33 = arith.constant 0 : index
    %36 = vector.load %arg2[%c6, %c0_32, %c0_33] : memref<8x128x128xbf16, #tpu.memory_space<vmem>>, vector<1x128x128xbf16>
    %37 = vector.shape_cast %36 : vector<1x128x128xbf16> to vector<128x128xbf16>
    %cst_34 = arith.constant dense<0.000000e+00> : vector<64x128xf32>
    %38 = tpu.matmul %35, %37, %cst_34 {dimension_numbers = #tpu.dot_dimension_numbers<[1], [0], [0], [1], [0, 0, 1, 1], [], []>} : vector<64x128xbf16>, vector<128x128xbf16>, vector<64x128xf32> -> vector<64x128xf32>
    %39 = arith.addf %34, %38 : vector<64x128xf32>
    %c448 = arith.constant 448 : index
    %c0_35 = arith.constant 0 : index
    %40 = vector.load %arg6[%c448, %c0_35] : memref<512x128xbf16, #tpu.memory_space<vmem>>, vector<64x128xbf16>
    %c7 = arith.constant 7 : index
    %c0_36 = arith.constant 0 : index
    %c0_37 = arith.constant 0 : index
    %41 = vector.load %arg2[%c7, %c0_36, %c0_37] : memref<8x128x128xbf16, #tpu.memory_space<vmem>>, vector<1x128x128xbf16>
    %42 = vector.shape_cast %41 : vector<1x128x128xbf16> to vector<128x128xbf16>
    %cst_38 = arith.constant dense<0.000000e+00> : vector<64x128xf32>
    %43 = tpu.matmul %40, %42, %cst_38 {dimension_numbers = #tpu.dot_dimension_numbers<[1], [0], [0], [1], [0, 0, 1, 1], [], []>} : vector<64x128xbf16>, vector<128x128xbf16>, vector<64x128xf32> -> vector<64x128xf32>
    %44 = arith.addf %39, %43 : vector<64x128xf32>
    %c0_39 = arith.constant 0 : index
    %c0_40 = arith.constant 0 : index
    %45 = vector.load %arg3[%c0_39, %c0_40] : memref<1x128xf32, #tpu.memory_space<vmem>>, vector<1x128xf32>
    %46 = vector.broadcast %45 : vector<1x128xf32> to vector<64x128xf32>
    %47 = arith.addf %44, %46 : vector<64x128xf32>
    %cst_41 = arith.constant 0.000000e+00 : f32
    %48 = vector.broadcast %cst_41 : f32 to vector<64x128xf32>
    %49 = arith.maximumf %47, %48 : vector<64x128xf32>
    %c0_42 = arith.constant 0 : index
    %c0_43 = arith.constant 0 : index
    %50 = vector.load %arg4[%c0_42, %c0_43] : memref<64x128xf32, #tpu.memory_space<vmem>>, vector<64x128xf32>
    %51 = arith.mulf %49, %50 : vector<64x128xf32>
    %c0_44 = arith.constant 0 : index
    %c0_45 = arith.constant 0 : index
    %52 = vector.load %arg5[%c0_44, %c0_45] : memref<64x128xf32, #tpu.memory_space<vmem>>, vector<64x128xf32>
    tpu.vector_store %arg5[%c0_44, %c0_45], %51 {strides = array<i32>} : memref<64x128xf32, #tpu.memory_space<vmem>>, vector<64x128xf32>,
    return
  }
}

module attributes {stable_mosaic.version = 11 : i64} {
  func.func @_statistic_kernel(%arg0: memref<768x64xbf16, #tpu.memory_space<vmem>>, %arg1: memref<16x768xf32, #tpu.memory_space<vmem>>, %arg2: memref<64x128xf32, #tpu.memory_space<vmem>>, %arg3: memref<64x128xf32, #tpu.memory_space<vmem>>, %arg4: memref<2x16x128xf32, #tpu.memory_space<vmem>>, %arg5: memref<768x128xf32, #tpu.memory_space<vmem>>) attributes {dimension_semantics = [], scalar_prefetch = 0 : i64, scratch_operands = 1 : i64, tpu.core_type = #tpu.core_type<tc>} {
    %c0 = arith.constant 0 : index
    %c0_0 = arith.constant 0 : index
    %0 = vector.load %arg2[%c0, %c0_0] : memref<64x128xf32, #tpu.memory_space<vmem>>, vector<64x128xf32>
    %c0_1 = arith.constant 0 : index
    %c0_2 = arith.constant 0 : index
    %1 = vector.load %arg3[%c0_1, %c0_2] : memref<64x128xf32, #tpu.memory_space<vmem>>, vector<64x128xf32>
    %2 = arith.mulf %0, %1 : vector<64x128xf32>
    %3 = arith.truncf %2 : vector<64x128xf32> to vector<64x128xbf16>
    %c0_3 = arith.constant 0 : index
    %c0_4 = arith.constant 0 : index
    %4 = vector.load %arg0[%c0_3, %c0_4] : memref<768x64xbf16, #tpu.memory_space<vmem>>, vector<768x64xbf16>
    %cst = arith.constant dense<0.000000e+00> : vector<768x128xf32>
    %5 = tpu.matmul %4, %3, %cst {dimension_numbers = #tpu.dot_dimension_numbers<[1], [0], [0], [1], [0, 0, 1, 1], [], []>} : vector<768x64xbf16>, vector<64x128xbf16>, vector<768x128xf32> -> vector<768x128xf32>
    %c0_5 = arith.constant 0 : index
    %c0_6 = arith.constant 0 : index
    %6 = vector.load %arg5[%c0_5, %c0_6] : memref<768x128xf32, #tpu.memory_space<vmem>>, vector<768x128xf32>
    tpu.vector_store %arg5[%c0_5, %c0_6], %5 {strides = array<i32>} : memref<768x128xf32, #tpu.memory_space<vmem>>, vector<768x128xf32>,
    %c0_7 = arith.constant 0 : index
    %c0_8 = arith.constant 0 : index
    %7 = vector.load %arg5[%c0_7, %c0_8] : memref<768x128xf32, #tpu.memory_space<vmem>>, vector<768x128xf32>
    %c0_9 = arith.constant 0 : index
    %c0_10 = arith.constant 0 : index
    %8 = vector.load %arg1[%c0_9, %c0_10] : memref<16x768xf32, #tpu.memory_space<vmem>>, vector<16x768xf32>
    %cst_11 = arith.constant dense<0.000000e+00> : vector<16x128xf32>
    %9 = tpu.matmul %8, %7, %cst_11 {dimension_numbers = #tpu.dot_dimension_numbers<[1], [0], [0], [1], [0, 0, 1, 1], [], []>} : vector<16x768xf32>, vector<768x128xf32>, vector<16x128xf32> -> vector<16x128xf32>
    %c0_12 = arith.constant 0 : index
    %c0_13 = arith.constant 0 : index
    %10 = vector.load %arg1[%c0_12, %c0_13] : memref<16x768xf32, #tpu.memory_space<vmem>>, vector<16x768xf32>
    %11 = arith.mulf %7, %7 : vector<768x128xf32>
    %cst_14 = arith.constant dense<0.000000e+00> : vector<16x128xf32>
    %12 = tpu.matmul %10, %11, %cst_14 {dimension_numbers = #tpu.dot_dimension_numbers<[1], [0], [0], [1], [0, 0, 1, 1], [], []>} : vector<16x768xf32>, vector<768x128xf32>, vector<16x128xf32> -> vector<16x128xf32>
    %13 = arith.mulf %9, %9 : vector<16x128xf32>
    %14 = arith.subf %12, %13 : vector<16x128xf32>
    %cst_15 = arith.constant 0.000000e+00 : f32
    %15 = vector.broadcast %cst_15 : f32 to vector<16x128xf32>
    %16 = arith.maximumf %14, %15 : vector<16x128xf32>
    %c0_16 = arith.constant 0 : index
    %c0_17 = arith.constant 0 : index
    %c0_18 = arith.constant 0 : index
    %17 = vector.load %arg4[%c0_16, %c0_17, %c0_18] : memref<2x16x128xf32, #tpu.memory_space<vmem>>, vector<1x16x128xf32>
    %18 = vector.shape_cast %17 : vector<1x16x128xf32> to vector<16x128xf32>
    %19 = vector.shape_cast %9 : vector<16x128xf32> to vector<1x16x128xf32>
    tpu.vector_store %arg4[%c0_16, %c0_17, %c0_18], %19 {strides = array<i32>} : memref<2x16x128xf32, #tpu.memory_space<vmem>>, vector<1x16x128xf32>,
    %c1 = arith.constant 1 : index
    %c0_19 = arith.constant 0 : index
    %c0_20 = arith.constant 0 : index
    %20 = vector.load %arg4[%c1, %c0_19, %c0_20] : memref<2x16x128xf32, #tpu.memory_space<vmem>>, vector<1x16x128xf32>
    %21 = vector.shape_cast %20 : vector<1x16x128xf32> to vector<16x128xf32>
    %22 = vector.shape_cast %16 : vector<16x128xf32> to vector<1x16x128xf32>
    tpu.vector_store %arg4[%c1, %c0_19, %c0_20], %22 {strides = array<i32>} : memref<2x16x128xf32, #tpu.memory_space<vmem>>, vector<1x16x128xf32>,
    return
  }
}

module attributes {stable_mosaic.version = 11 : i64} {
  func.func @_fc_kernel(%arg0: memref<2x480xf32, #tpu.memory_space<vmem>>, %arg1: memref<480x512xbf16, #tpu.memory_space<vmem>>, %arg2: memref<1x512xf32, #tpu.memory_space<vmem>>, %arg3: memref<512x384xbf16, #tpu.memory_space<vmem>>, %arg4: memref<1x384xf32, #tpu.memory_space<vmem>>, %arg5: memref<384x128xbf16, #tpu.memory_space<vmem>>, %arg6: memref<1x128xf32, #tpu.memory_space<vmem>>, %arg7: memref<128x128xbf16, #tpu.memory_space<vmem>>, %arg8: memref<1x128xf32, #tpu.memory_space<vmem>>, %arg9: memref<2x128xf32, #tpu.memory_space<vmem>>) attributes {dimension_semantics = [], scalar_prefetch = 0 : i64, scratch_operands = 0 : i64, tpu.core_type = #tpu.core_type<tc>} {
    %c0 = arith.constant 0 : index
    %c0_0 = arith.constant 0 : index
    %0 = vector.load %arg0[%c0, %c0_0] : memref<2x480xf32, #tpu.memory_space<vmem>>, vector<2x480xf32>
    %1 = arith.truncf %0 : vector<2x480xf32> to vector<2x480xbf16>
    %c0_1 = arith.constant 0 : index
    %c0_2 = arith.constant 0 : index
    %2 = vector.load %arg1[%c0_1, %c0_2] : memref<480x512xbf16, #tpu.memory_space<vmem>>, vector<480x512xbf16>
    %cst = arith.constant dense<0.000000e+00> : vector<2x512xf32>
    %3 = tpu.matmul %1, %2, %cst {dimension_numbers = #tpu.dot_dimension_numbers<[1], [0], [0], [1], [0, 0, 1, 1], [], []>} : vector<2x480xbf16>, vector<480x512xbf16>, vector<2x512xf32> -> vector<2x512xf32>
    %c0_3 = arith.constant 0 : index
    %c0_4 = arith.constant 0 : index
    %4 = vector.load %arg2[%c0_3, %c0_4] : memref<1x512xf32, #tpu.memory_space<vmem>>, vector<1x512xf32>
    %5 = vector.broadcast %4 : vector<1x512xf32> to vector<2x512xf32>
    %6 = arith.addf %3, %5 : vector<2x512xf32>
    %cst_5 = arith.constant 0.000000e+00 : f32
    %7 = vector.broadcast %cst_5 : f32 to vector<2x512xf32>
    %8 = arith.maximumf %6, %7 : vector<2x512xf32>
    %9 = arith.truncf %8 : vector<2x512xf32> to vector<2x512xbf16>
    %c0_6 = arith.constant 0 : index
    %c0_7 = arith.constant 0 : index
    %10 = vector.load %arg3[%c0_6, %c0_7] : memref<512x384xbf16, #tpu.memory_space<vmem>>, vector<512x384xbf16>
    %cst_8 = arith.constant dense<0.000000e+00> : vector<2x384xf32>
    %11 = tpu.matmul %9, %10, %cst_8 {dimension_numbers = #tpu.dot_dimension_numbers<[1], [0], [0], [1], [0, 0, 1, 1], [], []>} : vector<2x512xbf16>, vector<512x384xbf16>, vector<2x384xf32> -> vector<2x384xf32>
    %c0_9 = arith.constant 0 : index
    %c0_10 = arith.constant 0 : index
    %12 = vector.load %arg4[%c0_9, %c0_10] : memref<1x384xf32, #tpu.memory_space<vmem>>, vector<1x384xf32>
    %13 = vector.broadcast %12 : vector<1x384xf32> to vector<2x384xf32>
    %14 = arith.addf %11, %13 : vector<2x384xf32>
    %cst_11 = arith.constant 0.000000e+00 : f32
    %15 = vector.broadcast %cst_11 : f32 to vector<2x384xf32>
    %16 = arith.maximumf %14, %15 : vector<2x384xf32>
    %17 = arith.truncf %16 : vector<2x384xf32> to vector<2x384xbf16>
    %c0_12 = arith.constant 0 : index
    %c0_13 = arith.constant 0 : index
    %18 = vector.load %arg5[%c0_12, %c0_13] : memref<384x128xbf16, #tpu.memory_space<vmem>>, vector<384x128xbf16>
    %cst_14 = arith.constant dense<0.000000e+00> : vector<2x128xf32>
    %19 = tpu.matmul %17, %18, %cst_14 {dimension_numbers = #tpu.dot_dimension_numbers<[1], [0], [0], [1], [0, 0, 1, 1], [], []>} : vector<2x384xbf16>, vector<384x128xbf16>, vector<2x128xf32> -> vector<2x128xf32>
    %c0_15 = arith.constant 0 : index
    %c0_16 = arith.constant 0 : index
    %20 = vector.load %arg6[%c0_15, %c0_16] : memref<1x128xf32, #tpu.memory_space<vmem>>, vector<1x128xf32>
    %21 = vector.broadcast %20 : vector<1x128xf32> to vector<2x128xf32>
    %22 = arith.addf %19, %21 : vector<2x128xf32>
    %cst_17 = arith.constant 0.000000e+00 : f32
    %23 = vector.broadcast %cst_17 : f32 to vector<2x128xf32>
    %24 = arith.maximumf %22, %23 : vector<2x128xf32>
    %25 = arith.truncf %24 : vector<2x128xf32> to vector<2x128xbf16>
    %c0_18 = arith.constant 0 : index
    %c0_19 = arith.constant 0 : index
    %26 = vector.load %arg7[%c0_18, %c0_19] : memref<128x128xbf16, #tpu.memory_space<vmem>>, vector<128x128xbf16>
    %cst_20 = arith.constant dense<0.000000e+00> : vector<2x128xf32>
    %27 = tpu.matmul %25, %26, %cst_20 {dimension_numbers = #tpu.dot_dimension_numbers<[1], [0], [0], [1], [0, 0, 1, 1], [], []>} : vector<2x128xbf16>, vector<128x128xbf16>, vector<2x128xf32> -> vector<2x128xf32>
    %c0_21 = arith.constant 0 : index
    %c0_22 = arith.constant 0 : index
    %28 = vector.load %arg8[%c0_21, %c0_22] : memref<1x128xf32, #tpu.memory_space<vmem>>, vector<1x128xf32>
    %29 = vector.broadcast %28 : vector<1x128xf32> to vector<2x128xf32>
    %30 = arith.addf %27, %29 : vector<2x128xf32>
    %c0_23 = arith.constant 0 : index
    %c0_24 = arith.constant 0 : index
    %31 = vector.load %arg9[%c0_23, %c0_24] : memref<2x128xf32, #tpu.memory_space<vmem>>, vector<2x128xf32>
    tpu.vector_store %arg9[%c0_23, %c0_24], %30 {strides = array<i32>} : memref<2x128xf32, #tpu.memory_space<vmem>>, vector<2x128xf32>,
    return
  }
}

</mosaic_0001>

<llo_original>
// kernel: tigranet_forward.6
$region0: #{tigranet_forward.6}
  #allocation0 [shape = 'u32[]', space=smem, size = 0x4, offset = 0x4, fixed_abs, tag = 'smem constant byte address 0x4 - core index']
  #allocation1 [shape = 'u32[144,128]{1,0:T(1,128)}', space=vmem, size = 0x12000, scoped, tag = 'internal scratch']
  #allocation2 [shape = 'f32[768,128]{1,0:T(8,128)}', space=vmem, size = 0x60000, scoped, tag = 'scratch operand']
  %s0 = inlined_call_operand.vmem [shape: bf16[768,64], index: 0, kind: input, shape index: {}]
  %s1 = inlined_call_operand.vmem [shape: f32[16,768], index: 1, kind: input, shape index: {}]
  %s2 = inlined_call_operand.vmem [shape: f32[64,128], index: 2, kind: input, shape index: {}]
  %s3 = inlined_call_operand.vmem [shape: f32[64,128], index: 3, kind: input, shape index: {}]
  %s4 = inlined_call_operand.vmem [shape: f32[2,16,128], index: 4, kind: output, shape index: {}]
  %s5 = sld [smem:[#allocation0]]
  $region26: #{tigranet_forward.6} parent=0
    _
  %s7 = ssub.s32 1, %s5
  %s8 = scalar_select 0, %s7, %s5
  // Predicated region
  $region2: #{tigranet_forward.6} parent=0 // pred_check
    _
  $region3: #{tigranet_forward.6} parent=0 // pred_check_branch
    %10 = sbr.rel (0) target = $region5
  $region4: #{tigranet_forward.6} parent=0 // pred_region
    _
  $region5: #{tigranet_forward.6} parent=0 // pred_fallthru
    _
  // Predicated region
  $region6: #{tigranet_forward.6} parent=0 // pred_check
    _
  $region7: #{tigranet_forward.6} parent=0 // pred_check_branch
    %12 = sbr.rel (0) target = $region9
  $region8: #{tigranet_forward.6} parent=0 // pred_region
    _
  $region9: #{tigranet_forward.6} parent=0 // pred_fallthru
    _
  // Predicated region
  $region10: #{tigranet_forward.6} parent=0 // pred_check
    _
  $region11: #{tigranet_forward.6} parent=0 // pred_check_branch
    %14 = sbr.rel (0) target = $region13
  $region12: #{tigranet_forward.6} parent=0 // pred_region
    _
  $region13: #{tigranet_forward.6} parent=0 // pred_fallthru
    _
  // Predicated region
  $region14: #{tigranet_forward.6} parent=0 // pred_check
    _
  $region15: #{tigranet_forward.6} parent=0 // pred_check_branch
    %16 = sbr.rel (0) target = $region17
  $region16: #{tigranet_forward.6} parent=0 // pred_region
    _
  $region17: #{tigranet_forward.6} parent=0 // pred_fallthru
    _
  %v18 = vld [vmem:[%s2] sm:$0xff]
  %v19 = vld [vmem:[%s2 + $0x8] sm:$0xff]
  %v20 = vld [vmem:[%s2 + $0x10] sm:$0xff]
  %v21 = vld [vmem:[%s2 + $0x18] sm:$0xff]
  %v22 = vld [vmem:[%s2 + $0x20] sm:$0xff]
  %v23 = vld [vmem:[%s2 + $0x28] sm:$0xff]
  %v24 = vld [vmem:[%s2 + $0x30] sm:$0xff]
  %v25 = vld [vmem:[%s2 + $0x38] sm:$0xff]
  %v26 = vld [vmem:[%s3] sm:$0xff]
  %v27 = vld [vmem:[%s3 + $0x8] sm:$0xff]
  %v28 = vld [vmem:[%s3 + $0x10] sm:$0xff]
  %v29 = vld [vmem:[%s3 + $0x18] sm:$0xff]
  %v30 = vld [vmem:[%s3 + $0x20] sm:$0xff]
  %v31 = vld [vmem:[%s3 + $0x28] sm:$0xff]
  %v32 = vld [vmem:[%s3 + $0x30] sm:$0xff]
  %v33 = vld [vmem:[%s3 + $0x38] sm:$0xff]
  %v34 = vmul.f32 %v18, %v26
  %v35 = vmul.f32 %v19, %v27
  %v36 = vmul.f32 %v20, %v28
  %v37 = vmul.f32 %v21, %v29
  %v38 = vmul.f32 %v22, %v30
  %v39 = vmul.f32 %v23, %v31
  %v40 = vmul.f32 %v24, %v32
  %v41 = vmul.f32 %v25, %v33
  %v42 = vpack.c.bf16 %v35, %v34
  %v43 = vpack.c.bf16 %v37, %v36
  %v44 = vpack.c.bf16 %v39, %v38
  %v45 = vpack.c.bf16 %v41, %v40
  %v46 = vld [vmem:[%s0] sm:$0xf]
  %v47 = vld [vmem:[%s0 + $0x4] sm:$0xf]
  %v48 = vld [vmem:[%s0 + $0x8] sm:$0xf]
  %v49 = vld [vmem:[%s0 + $0xc] sm:$0xf]
  %v50 = vld [vmem:[%s0 + $0x10] sm:$0xf]
  %v51 = vld [vmem:[%s0 + $0x14] sm:$0xf]
  %v52 = vld [vmem:[%s0 + $0x18] sm:$0xf]
  %v53 = vld [vmem:[%s0 + $0x1c] sm:$0xf]
  %v54 = vld [vmem:[%s0 + $0x20] sm:$0xf]
  %v55 = vld [vmem:[%s0 + $0x24] sm:$0xf]
  %v56 = vld [vmem:[%s0 + $0x28] sm:$0xf]
  %v57 = vld [vmem:[%s0 + $0x2c] sm:$0xf]
  %v58 = vld [vmem:[%s0 + $0x30] sm:$0xf]
  %v59 = vld [vmem:[%s0 + $0x34] sm:$0xf]
  %v60 = vld [vmem:[%s0 + $0x38] sm:$0xf]
  %v61 = vld [vmem:[%s0 + $0x3c] sm:$0xf]
  %v62 = vld [vmem:[%s0 + $0x40] sm:$0xf]
  %v63 = vld [vmem:[%s0 + $0x44] sm:$0xf]
  %v64 = vld [vmem:[%s0 + $0x48] sm:$0xf]
  %v65 = vld [vmem:[%s0 + $0x4c] sm:$0xf]
  %v66 = vld [vmem:[%s0 + $0x50] sm:$0xf]
  %v67 = vld [vmem:[%s0 + $0x54] sm:$0xf]
  %v68 = vld [vmem:[%s0 + $0x58] sm:$0xf]
  %v69 = vld [vmem:[%s0 + $0x5c] sm:$0xf]
  %v70 = vld [vmem:[%s0 + $0x60] sm:$0xf]
  %v71 = vld [vmem:[%s0 + $0x64] sm:$0xf]
  %v72 = vld [vmem:[%s0 + $0x68] sm:$0xf]
  %v73 = vld [vmem:[%s0 + $0x6c] sm:$0xf]
  %v74 = vld [vmem:[%s0 + $0x70] sm:$0xf]
  %v75 = vld [vmem:[%s0 + $0x74] sm:$0xf]
  %v76 = vld [vmem:[%s0 + $0x78] sm:$0xf]
  %v77 = vld [vmem:[%s0 + $0x7c] sm:$0xf]
  %v78 = vld [vmem:[%s0 + $0x80] sm:$0xf]
  %v79 = vld [vmem:[%s0 + $0x84] sm:$0xf]
  %v80 = vld [vmem:[%s0 + $0x88] sm:$0xf]
  %v81 = vld [vmem:[%s0 + $0x8c] sm:$0xf]
  %v82 = vld [vmem:[%s0 + $0x90] sm:$0xf]
  %v83 = vld [vmem:[%s0 + $0x94] sm:$0xf]
  %v84 = vld [vmem:[%s0 + $0x98] sm:$0xf]
  %v85 = vld [vmem:[%s0 + $0x9c] sm:$0xf]
  %v86 = vld [vmem:[%s0 + $0xa0] sm:$0xf]
  %v87 = vld [vmem:[%s0 + $0xa4] sm:$0xf]
  %v88 = vld [vmem:[%s0 + $0xa8] sm:$0xf]
  %v89 = vld [vmem:[%s0 + $0xac] sm:$0xf]
  %v90 = vld [vmem:[%s0 + $0xb0] sm:$0xf]
  %v91 = vld [vmem:[%s0 + $0xb4] sm:$0xf]
  %v92 = vld [vmem:[%s0 + $0xb8] sm:$0xf]
  %v93 = vld [vmem:[%s0 + $0xbc] sm:$0xf]
  %v94 = vld [vmem:[%s0 + $0xc0] sm:$0xf]
  %v95 = vld [vmem:[%s0 + $0xc4] sm:$0xf]
  %v96 = vld [vmem:[%s0 + $0xc8] sm:$0xf]
  %v97 = vld [vmem:[%s0 + $0xcc] sm:$0xf]
  %v98 = vld [vmem:[%s0 + $0xd0] sm:$0xf]
  %v99 = vld [vmem:[%s0 + $0xd4] sm:$0xf]
  %v100 = vld [vmem:[%s0 + $0xd8] sm:$0xf]
  %v101 = vld [vmem:[%s0 + $0xdc] sm:$0xf]
  %v102 = vld [vmem:[%s0 + $0xe0] sm:$0xf]
  %v103 = vld [vmem:[%s0 + $0xe4] sm:$0xf]
  %v104 = vld [vmem:[%s0 + $0xe8] sm:$0xf]
  %v105 = vld [vmem:[%s0 + $0xec] sm:$0xf]
  %v106 = vld [vmem:[%s0 + $0xf0] sm:$0xf]
  %v107 = vld [vmem:[%s0 + $0xf4] sm:$0xf]
  %v108 = vld [vmem:[%s0 + $0xf8] sm:$0xf]
  %v109 = vld [vmem:[%s0 + $0xfc] sm:$0xf]
  %v110 = vld [vmem:[%s0 + $0x100] sm:$0xf]
  %v111 = vld [vmem:[%s0 + $0x104] sm:$0xf]
  %v112 = vld [vmem:[%s0 + $0x108] sm:$0xf]
  %v113 = vld [vmem:[%s0 + $0x10c] sm:$0xf]
  %v114 = vld [vmem:[%s0 + $0x110] sm:$0xf]
  %v115 = vld [vmem:[%s0 + $0x114] sm:$0xf]
  %v116 = vld [vmem:[%s0 + $0x118] sm:$0xf]
  %v117 = vld [vmem:[%s0 + $0x11c] sm:$0xf]
  %v118 = vld [vmem:[%s0 + $0x120] sm:$0xf]
  %v119 = vld [vmem:[%s0 + $0x124] sm:$0xf]
  %v120 = vld [vmem:[%s0 + $0x128] sm:$0xf]
  %v121 = vld [vmem:[%s0 + $0x12c] sm:$0xf]
  %v122 = vld [vmem:[%s0 + $0x130] sm:$0xf]
  %v123 = vld [vmem:[%s0 + $0x134] sm:$0xf]
  %v124 = vld [vmem:[%s0 + $0x138] sm:$0xf]
  %v125 = vld [vmem:[%s0 + $0x13c] sm:$0xf]
  %v126 = vld [vmem:[%s0 + $0x140] sm:$0xf]
  %v127 = vld [vmem:[%s0 + $0x144] sm:$0xf]
  %v128 = vld [vmem:[%s0 + $0x148] sm:$0xf]
  %v129 = vld [vmem:[%s0 + $0x14c] sm:$0xf]
  %v130 = vld [vmem:[%s0 + $0x150] sm:$0xf]
  %v131 = vld [vmem:[%s0 + $0x154] sm:$0xf]
  %v132 = vld [vmem:[%s0 + $0x158] sm:$0xf]
  %v133 = vld [vmem:[%s0 + $0x15c] sm:$0xf]
  %v134 = vld [vmem:[%s0 + $0x160] sm:$0xf]
  %v135 = vld [vmem:[%s0 + $0x164] sm:$0xf]
  %v136 = vld [vmem:[%s0 + $0x168] sm:$0xf]
  %v137 = vld [vmem:[%s0 + $0x16c] sm:$0xf]
  %v138 = vld [vmem:[%s0 + $0x170] sm:$0xf]
  %v139 = vld [vmem:[%s0 + $0x174] sm:$0xf]
  %v140 = vld [vmem:[%s0 + $0x178] sm:$0xf]
  %v141 = vld [vmem:[%s0 + $0x17c] sm:$0xf]
  %v238 = vunpack.c.l.b16 %v46
  %v239 = vunpack.c.l.b16 %v47
  %v240 = vunpack.c.l.b16 %v48
  %v241 = vunpack.c.l.b16 %v49
  %v242 = vunpack.c.l.b16 %v50
  %v243 = vunpack.c.l.b16 %v51
  %v244 = vunpack.c.l.b16 %v52
  %v245 = vunpack.c.l.b16 %v53
  %v246 = vunpack.c.l.b16 %v54
  %v247 = vunpack.c.l.b16 %v55
  %v248 = vunpack.c.l.b16 %v56
  %v249 = vunpack.c.l.b16 %v57
  %v250 = vunpack.c.l.b16 %v58
  %v251 = vunpack.c.l.b16 %v59
  %v252 = vunpack.c.l.b16 %v60
  %v253 = vunpack.c.l.b16 %v61
  %v254 = vunpack.c.l.b16 %v62
  %v255 = vunpack.c.l.b16 %v63
  %v256 = vunpack.c.l.b16 %v64
  %v257 = vunpack.c.l.b16 %v65
  %v258 = vunpack.c.l.b16 %v66
  %v259 = vunpack.c.l.b16 %v67
  %v260 = vunpack.c.l.b16 %v68
  %v261 = vunpack.c.l.b16 %v69
  %v262 = vunpack.c.l.b16 %v70
  %v263 = vunpack.c.l.b16 %v71
  %v264 = vunpack.c.l.b16 %v72
  %v265 = vunpack.c.l.b16 %v73
  %v266 = vunpack.c.l.b16 %v74
  %v267 = vunpack.c.l.b16 %v75
  %v268 = vunpack.c.l.b16 %v76
  %v269 = vunpack.c.l.b16 %v77
  %v270 = vunpack.c.l.b16 %v78
  %v271 = vunpack.c.l.b16 %v79
  %v272 = vunpack.c.l.b16 %v80
  %v273 = vunpack.c.l.b16 %v81
  %v274 = vunpack.c.l.b16 %v82
  %v275 = vunpack.c.l.b16 %v83
  %v276 = vunpack.c.l.b16 %v84
  %v277 = vunpack.c.l.b16 %v85
  %v278 = vunpack.c.l.b16 %v86
  %v279 = vunpack.c.l.b16 %v87
  %v280 = vunpack.c.l.b16 %v88
  %v281 = vunpack.c.l.b16 %v89
  %v282 = vunpack.c.l.b16 %v90
  %v283 = vunpack.c.l.b16 %v91
  %v284 = vunpack.c.l.b16 %v92
  %v285 = vunpack.c.l.b16 %v93
  %v286 = vunpack.c.l.b16 %v94
  %v287 = vunpack.c.l.b16 %v95
  %v288 = vunpack.c.l.b16 %v96
  %v289 = vunpack.c.l.b16 %v97
  %v290 = vunpack.c.l.b16 %v98
  %v291 = vunpack.c.l.b16 %v99
  %v292 = vunpack.c.l.b16 %v100
  %v293 = vunpack.c.l.b16 %v101
  %v294 = vunpack.c.l.b16 %v102
  %v295 = vunpack.c.l.b16 %v103
  %v296 = vunpack.c.l.b16 %v104
  %v297 = vunpack.c.l.b16 %v105
  %v298 = vunpack.c.l.b16 %v106
  %v299 = vunpack.c.l.b16 %v107
  %v300 = vunpack.c.l.b16 %v108
  %v301 = vunpack.c.l.b16 %v109
  %v302 = vunpack.c.l.b16 %v110
  %v303 = vunpack.c.l.b16 %v111
  %v304 = vunpack.c.l.b16 %v112
  %v305 = vunpack.c.l.b16 %v113
  %v306 = vunpack.c.l.b16 %v114
  %v307 = vunpack.c.l.b16 %v115
  %v308 = vunpack.c.l.b16 %v116
  %v309 = vunpack.c.l.b16 %v117
  %v310 = vunpack.c.l.b16 %v118
  %v311 = vunpack.c.l.b16 %v119
  %v312 = vunpack.c.l.b16 %v120
  %v313 = vunpack.c.l.b16 %v121
  %v314 = vunpack.c.l.b16 %v122
  %v315 = vunpack.c.l.b16 %v123
  %v316 = vunpack.c.l.b16 %v124
  %v317 = vunpack.c.l.b16 %v125
  %v318 = vunpack.c.l.b16 %v126
  %v319 = vunpack.c.l.b16 %v127
  %v320 = vunpack.c.l.b16 %v128
  %v321 = vunpack.c.l.b16 %v129
  %v322 = vunpack.c.l.b16 %v130
  %v323 = vunpack.c.l.b16 %v131
  %v324 = vunpack.c.l.b16 %v132
  %v325 = vunpack.c.l.b16 %v133
  %v326 = vunpack.c.l.b16 %v134
  %v327 = vunpack.c.l.b16 %v135
  %v328 = vunpack.c.l.b16 %v136
  %v329 = vunpack.c.l.b16 %v137
  %v330 = vunpack.c.l.b16 %v138
  %v331 = vunpack.c.l.b16 %v139
  %v332 = vunpack.c.l.b16 %v140
  %v333 = vunpack.c.l.b16 %v141
  %v334 = vpack.c.b16 %v239, %v238
  %v335 = vpack.c.b16 %v241, %v240
  %v336 = vpack.c.b16 %v243, %v242
  %v337 = vpack.c.b16 %v245, %v244
  %v338 = vpack.c.b16 %v247, %v246
  %v339 = vpack.c.b16 %v249, %v248
  %v340 = vpack.c.b16 %v251, %v250
  %v341 = vpack.c.b16 %v253, %v252
  %v342 = vpack.c.b16 %v255, %v254
  %v343 = vpack.c.b16 %v257, %v256
  %v344 = vpack.c.b16 %v259, %v258
  %v345 = vpack.c.b16 %v261, %v260
  %v346 = vpack.c.b16 %v263, %v262
  %v347 = vpack.c.b16 %v265, %v264
  %v348 = vpack.c.b16 %v267, %v266
  %v349 = vpack.c.b16 %v269, %v268
  %v350 = vpack.c.b16 %v271, %v270
  %v351 = vpack.c.b16 %v273, %v272
  %v352 = vpack.c.b16 %v275, %v274
  %v353 = vpack.c.b16 %v277, %v276
  %v354 = vpack.c.b16 %v279, %v278
  %v355 = vpack.c.b16 %v281, %v280
  %v356 = vpack.c.b16 %v283, %v282
  %v357 = vpack.c.b16 %v285, %v284
  %v358 = vpack.c.b16 %v287, %v286
  %v359 = vpack.c.b16 %v289, %v288
  %v360 = vpack.c.b16 %v291, %v290
  %v361 = vpack.c.b16 %v293, %v292
  %v362 = vpack.c.b16 %v295, %v294
  %v363 = vpack.c.b16 %v297, %v296
  %v364 = vpack.c.b16 %v299, %v298
  %v365 = vpack.c.b16 %v301, %v300
  %v366 = vpack.c.b16 %v303, %v302
  %v367 = vpack.c.b16 %v305, %v304
  %v368 = vpack.c.b16 %v307, %v306
  %v369 = vpack.c.b16 %v309, %v308
  %v370 = vpack.c.b16 %v311, %v310
  %v371 = vpack.c.b16 %v313, %v312
  %v372 = vpack.c.b16 %v315, %v314
  %v373 = vpack.c.b16 %v317, %v316
  %v374 = vpack.c.b16 %v319, %v318
  %v375 = vpack.c.b16 %v321, %v320
  %v376 = vpack.c.b16 %v323, %v322
  %v377 = vpack.c.b16 %v325, %v324
  %v378 = vpack.c.b16 %v327, %v326
  %v379 = vpack.c.b16 %v329, %v328
  %v380 = vpack.c.b16 %v331, %v330
  %v381 = vpack.c.b16 %v333, %v332
  %vm382 = vcmask 523264
  %v384 = vsel %vm382, %v334, 0
  %v387 = vsel %vm382, %v335, 0
  %v390 = vsel %vm382, %v336, 0
  %v393 = vsel %vm382, %v337, 0
  %v396 = vsel %vm382, %v338, 0
  %v399 = vsel %vm382, %v339, 0
  %v402 = vsel %vm382, %v340, 0
  %v405 = vsel %vm382, %v341, 0
  %v408 = vsel %vm382, %v342, 0
  %v411 = vsel %vm382, %v343, 0
  %v414 = vsel %vm382, %v344, 0
  %v417 = vsel %vm382, %v345, 0
  %v420 = vsel %vm382, %v346, 0
  %v423 = vsel %vm382, %v347, 0
  %v426 = vsel %vm382, %v348, 0
  %v429 = vsel %vm382, %v349, 0
  %v432 = vsel %vm382, %v350, 0
  %v435 = vsel %vm382, %v351, 0
  %v438 = vsel %vm382, %v352, 0
  %v441 = vsel %vm382, %v353, 0
  %v444 = vsel %vm382, %v354, 0
  %v447 = vsel %vm382, %v355, 0
  %v450 = vsel %vm382, %v356, 0
  %v453 = vsel %vm382, %v357, 0
  %v456 = vsel %vm382, %v358, 0
  %v459 = vsel %vm382, %v359, 0
  %v462 = vsel %vm382, %v360, 0
  %v465 = vsel %vm382, %v361, 0
  %v468 = vsel %vm382, %v362, 0
  %v471 = vsel %vm382, %v363, 0
  %v474 = vsel %vm382, %v364, 0
  %v477 = vsel %vm382, %v365, 0
  %v480 = vsel %vm382, %v366, 0
  %v483 = vsel %vm382, %v367, 0
  %v486 = vsel %vm382, %v368, 0
  %v489 = vsel %vm382, %v369, 0
  %v492 = vsel %vm382, %v370, 0
  %v495 = vsel %vm382, %v371, 0
  %v498 = vsel %vm382, %v372, 0
  %v501 = vsel %vm382, %v373, 0
  %v504 = vsel %vm382, %v374, 0
  %v507 = vsel %vm382, %v375, 0
  %v510 = vsel %vm382, %v376, 0
  %v513 = vsel %vm382, %v377, 0
  %v516 = vsel %vm382, %v378, 0
  %v519 = vsel %vm382, %v379, 0
  %v522 = vsel %vm382, %v380, 0
  %v525 = vsel %vm382, %v381, 0
  %527 = vmatprep.subr.bf16.mxu0 0
  %528 = vmatpush1.bf16.msra.mxu0 %v42
  %529 = vmatprep.subr.bf16.mxu0 0
  %530 = vmatpush1.bf16.msra.mxu0 %v43
  %531 = vmatprep.subr.bf16.mxu0 0
  %532 = vmatpush1.bf16.msra.mxu0 %v44
  %533 = vmatprep.subr.bf16.mxu0 0
  %534 = vmatpush1.bf16.msra.mxu0 %v45
  %535 = vmatprep.subr.bf16.mxu0 0
  %536 = vmatpush1.bf16.msra.mxu0 0
  %537 = vmatprep.subr.bf16.mxu0 0
  %538 = vmatpush1.bf16.msra.mxu0 0
  %539 = vmatprep.subr.bf16.mxu0 0
  %540 = vmatpush1.bf16.msra.mxu0 0
  %541 = vmatprep.subr.bf16.mxu0 0
  %542 = vmatpush1.bf16.msra.mxu0 0
  %543 = vmatprep.subr.bf16.mxu0 0
  %544 = vmatpush1.bf16.msra.mxu0 0
  %545 = vmatprep.subr.bf16.mxu0 0
  %546 = vmatpush1.bf16.msra.mxu0 0
  %547 = vmatprep.subr.bf16.mxu0 0
  %548 = vmatpush1.bf16.msra.mxu0 0
  %549 = vmatprep.subr.bf16.mxu0 0
  %550 = vmatpush1.bf16.msra.mxu0 0
  %551 = vmatprep.subr.bf16.mxu0 0
  %552 = vmatpush1.bf16.msra.mxu0 0
  %553 = vmatprep.subr.bf16.mxu0 0
  %554 = vmatpush1.bf16.msra.mxu0 0
  %555 = vmatprep.subr.bf16.mxu0 0
  %556 = vmatpush1.bf16.msra.mxu0 0
  %557 = vmatprep.subr.bf16.mxu0 0
  %558 = vmatpush1.bf16.msra.mxu0 0
  %559 = vmatprep.mubr.bf16.mxu0 0
  %560 = vmatmul.mubr.bf16.gmra.mrb[0].mxu0 %v384
  %v561 = vpop.f32.mrb[0].mxu0
  %v562 = vadd.f32 0.0, %v561
  %v563 = vpop.f32.mrb[0].mxu0
  %v564 = vpop.f32.mrb[0].mxu0
  %v565 = vadd.f32 0.0, %v564
  %v566 = vpop.f32.mrb[0].mxu0
  %567 = vmatprep.mubr.bf16.mxu0 0
  %568 = vmatmul.mubr.bf16.gmra.mrb[0].mxu0 %v387
  %v569 = vpop.f32.mrb[0].mxu0
  %v570 = vadd.f32 0.0, %v569
  %v571 = vpop.f32.mrb[0].mxu0
  %v572 = vpop.f32.mrb[0].mxu0
  %v573 = vadd.f32 0.0, %v572
  %v574 = vpop.f32.mrb[0].mxu0
  %575 = vmatprep.mubr.bf16.mxu0 0
  %576 = vmatmul.mubr.bf16.gmra.mrb[0].mxu0 %v390
  %v577 = vpop.f32.mrb[0].mxu0
  %v578 = vadd.f32 0.0, %v577
  %v579 = vpop.f32.mrb[0].mxu0
  %v580 = vpop.f32.mrb[0].mxu0
  %v581 = vadd.f32 0.0, %v580
  %v582 = vpop.f32.mrb[0].mxu0
  %583 = vmatprep.mubr.bf16.mxu0 0
  %584 = vmatmul.mubr.bf16.gmra.mrb[0].mxu0 %v393
  %v585 = vpop.f32.mrb[0].mxu0
  %v586 = vadd.f32 0.0, %v585
  %v587 = vpop.f32.mrb[0].mxu0
  %v588 = vpop.f32.mrb[0].mxu0
  %v589 = vadd.f32 0.0, %v588
  %v590 = vpop.f32.mrb[0].mxu0
  %591 = vmatprep.mubr.bf16.mxu0 0
  %592 = vmatmul.mubr.bf16.gmra.mrb[0].mxu0 %v396
  %v593 = vpop.f32.mrb[0].mxu0
  %v594 = vadd.f32 0.0, %v593
  %v595 = vpop.f32.mrb[0].mxu0
  %v596 = vpop.f32.mrb[0].mxu0
  %v597 = vadd.f32 0.0, %v596
  %v598 = vpop.f32.mrb[0].mxu0
  %599 = vmatprep.mubr.bf16.mxu0 0
  %600 = vmatmul.mubr.bf16.gmra.mrb[0].mxu0 %v399
  %v601 = vpop.f32.mrb[0].mxu0
  %v602 = vadd.f32 0.0, %v601
  %v603 = vpop.f32.mrb[0].mxu0
  %v604 = vpop.f32.mrb[0].mxu0
  %v605 = vadd.f32 0.0, %v604
  %v606 = vpop.f32.mrb[0].mxu0
  %607 = vmatprep.mubr.bf16.mxu0 0
  %608 = vmatmul.mubr.bf16.gmra.mrb[0].mxu0 %v402
  %v609 = vpop.f32.mrb[0].mxu0
  %v610 = vadd.f32 0.0, %v609
  %v611 = vpop.f32.mrb[0].mxu0
  %v612 = vpop.f32.mrb[0].mxu0
  %v613 = vadd.f32 0.0, %v612
  %v614 = vpop.f32.mrb[0].mxu0
  %615 = vmatprep.mubr.bf16.mxu0 0
  %616 = vmatmul.mubr.bf16.gmra.mrb[0].mxu0 %v405
  %v617 = vpop.f32.mrb[0].mxu0
  %v618 = vadd.f32 0.0, %v617
  %v619 = vpop.f32.mrb[0].mxu0
  %v620 = vpop.f32.mrb[0].mxu0
  %v621 = vadd.f32 0.0, %v620
  %v622 = vpop.f32.mrb[0].mxu0
  %623 = vmatprep.mubr.bf16.mxu0 0
  %624 = vmatmul.mubr.bf16.gmra.mrb[0].mxu0 %v408
  %v625 = vpop.f32.mrb[0].mxu0
  %v626 = vadd.f32 0.0, %v625
  %v627 = vpop.f32.mrb[0].mxu0
  %v628 = vpop.f32.mrb[0].mxu0
  %v629 = vadd.f32 0.0, %v628
  %v630 = vpop.f32.mrb[0].mxu0
  %631 = vmatprep.mubr.bf16.mxu0 0
  %632 = vmatmul.mubr.bf16.gmra.mrb[0].mxu0 %v411
  %v633 = vpop.f32.mrb[0].mxu0
  %v634 = vadd.f32 0.0, %v633
  %v635 = vpop.f32.mrb[0].mxu0
  %v636 = vpop.f32.mrb[0].mxu0
  %v637 = vadd.f32 0.0, %v636
  %v638 = vpop.f32.mrb[0].mxu0
  %639 = vmatprep.mubr.bf16.mxu0 0
  %640 = vmatmul.mubr.bf16.gmra.mrb[0].mxu0 %v414
  %v641 = vpop.f32.mrb[0].mxu0
  %v642 = vadd.f32 0.0, %v641
  %v643 = vpop.f32.mrb[0].mxu0
  %v644 = vpop.f32.mrb[0].mxu0
  %v645 = vadd.f32 0.0, %v644
  %v646 = vpop.f32.mrb[0].mxu0
  %647 = vmatprep.mubr.bf16.mxu0 0
  %648 = vmatmul.mubr.bf16.gmra.mrb[0].mxu0 %v417
  %v649 = vpop.f32.mrb[0].mxu0
  %v650 = vadd.f32 0.0, %v649
  %v651 = vpop.f32.mrb[0].mxu0
  %v652 = vpop.f32.mrb[0].mxu0
  %v653 = vadd.f32 0.0, %v652
  %v654 = vpop.f32.mrb[0].mxu0
  %655 = vmatprep.mubr.bf16.mxu0 0
  %656 = vmatmul.mubr.bf16.gmra.mrb[0].mxu0 %v420
  %v657 = vpop.f32.mrb[0].mxu0
  %v658 = vadd.f32 0.0, %v657
  %v659 = vpop.f32.mrb[0].mxu0
  %v660 = vpop.f32.mrb[0].mxu0
  %v661 = vadd.f32 0.0, %v660
  %v662 = vpop.f32.mrb[0].mxu0
  %663 = vmatprep.mubr.bf16.mxu0 0
  %664 = vmatmul.mubr.bf16.gmra.mrb[0].mxu0 %v423
  %v665 = vpop.f32.mrb[0].mxu0
  %v666 = vadd.f32 0.0, %v665
  %v667 = vpop.f32.mrb[0].mxu0
  %v668 = vpop.f32.mrb[0].mxu0
  %v669 = vadd.f32 0.0, %v668
  %v670 = vpop.f32.mrb[0].mxu0
  %671 = vmatprep.mubr.bf16.mxu0 0
  %672 = vmatmul.mubr.bf16.gmra.mrb[0].mxu0 %v426
  %v673 = vpop.f32.mrb[0].mxu0
  %v674 = vadd.f32 0.0, %v673
  %v675 = vpop.f32.mrb[0].mxu0
  %v676 = vpop.f32.mrb[0].mxu0
  %v677 = vadd.f32 0.0, %v676
  %v678 = vpop.f32.mrb[0].mxu0
  %679 = vmatprep.mubr.bf16.mxu0 0
  %680 = vmatmul.mubr.bf16.gmra.mrb[0].mxu0 %v429
  %v681 = vpop.f32.mrb[0].mxu0
  %v682 = vadd.f32 0.0, %v681
  %v683 = vpop.f32.mrb[0].mxu0
  %v684 = vpop.f32.mrb[0].mxu0
  %v685 = vadd.f32 0.0, %v684
  %v686 = vpop.f32.mrb[0].mxu0
  %687 = vmatprep.mubr.bf16.mxu0 0
  %688 = vmatmul.mubr.bf16.gmra.mrb[0].mxu0 %v432
  %v689 = vpop.f32.mrb[0].mxu0
  %v690 = vadd.f32 0.0, %v689
  %v691 = vpop.f32.mrb[0].mxu0
  %v692 = vpop.f32.mrb[0].mxu0
  %v693 = vadd.f32 0.0, %v692
  %v694 = vpop.f32.mrb[0].mxu0
  %695 = vmatprep.mubr.bf16.mxu0 0
  %696 = vmatmul.mubr.bf16.gmra.mrb[0].mxu0 %v435
  %v697 = vpop.f32.mrb[0].mxu0
  %v698 = vadd.f32 0.0, %v697
  %v699 = vpop.f32.mrb[0].mxu0
  %v700 = vpop.f32.mrb[0].mxu0
  %v701 = vadd.f32 0.0, %v700
  %v702 = vpop.f32.mrb[0].mxu0
  %703 = vmatprep.mubr.bf16.mxu0 0
  %704 = vmatmul.mubr.bf16.gmra.mrb[0].mxu0 %v438
  %v705 = vpop.f32.mrb[0].mxu0
  %v706 = vadd.f32 0.0, %v705
  %v707 = vpop.f32.mrb[0].mxu0
  %v708 = vpop.f32.mrb[0].mxu0
  %v709 = vadd.f32 0.0, %v708
  %v710 = vpop.f32.mrb[0].mxu0
  %711 = vmatprep.mubr.bf16.mxu0 0
  %712 = vmatmul.mubr.bf16.gmra.mrb[0].mxu0 %v441
  %v713 = vpop.f32.mrb[0].mxu0
  %v714 = vadd.f32 0.0, %v713
  %v715 = vpop.f32.mrb[0].mxu0
  %v716 = vpop.f32.mrb[0].mxu0
  %v717 = vadd.f32 0.0, %v716
  %v718 = vpop.f32.mrb[0].mxu0
  %719 = vmatprep.mubr.bf16.mxu0 0
  %720 = vmatmul.mubr.bf16.gmra.mrb[0].mxu0 %v444
  %v721 = vpop.f32.mrb[0].mxu0
  %v722 = vadd.f32 0.0, %v721
  %v723 = vpop.f32.mrb[0].mxu0
  %v724 = vpop.f32.mrb[0].mxu0
  %v725 = vadd.f32 0.0, %v724
  %v726 = vpop.f32.mrb[0].mxu0
  %727 = vmatprep.mubr.bf16.mxu0 0
  %728 = vmatmul.mubr.bf16.gmra.mrb[0].mxu0 %v447
  %v729 = vpop.f32.mrb[0].mxu0
  %v730 = vadd.f32 0.0, %v729
  %v731 = vpop.f32.mrb[0].mxu0
  %v732 = vpop.f32.mrb[0].mxu0
  %v733 = vadd.f32 0.0, %v732
  %v734 = vpop.f32.mrb[0].mxu0
  %735 = vmatprep.mubr.bf16.mxu0 0
  %736 = vmatmul.mubr.bf16.gmra.mrb[0].mxu0 %v450
  %v737 = vpop.f32.mrb[0].mxu0
  %v738 = vadd.f32 0.0, %v737
  %v739 = vpop.f32.mrb[0].mxu0
  %v740 = vpop.f32.mrb[0].mxu0
  %v741 = vadd.f32 0.0, %v740
  %v742 = vpop.f32.mrb[0].mxu0
  %743 = vmatprep.mubr.bf16.mxu0 0
  %744 = vmatmul.mubr.bf16.gmra.mrb[0].mxu0 %v453
  %v745 = vpop.f32.mrb[0].mxu0
  %v746 = vadd.f32 0.0, %v745
  %v747 = vpop.f32.mrb[0].mxu0
  %v748 = vpop.f32.mrb[0].mxu0
  %v749 = vadd.f32 0.0, %v748
  %v750 = vpop.f32.mrb[0].mxu0
  %751 = vmatprep.mubr.bf16.mxu0 0
  %752 = vmatmul.mubr.bf16.gmra.mrb[0].mxu0 %v456
  %v753 = vpop.f32.mrb[0].mxu0
  %v754 = vadd.f32 0.0, %v753
  %v755 = vpop.f32.mrb[0].mxu0
  %v756 = vpop.f32.mrb[0].mxu0
  %v757 = vadd.f32 0.0, %v756
  %v758 = vpop.f32.mrb[0].mxu0
  %759 = vmatprep.mubr.bf16.mxu0 0
  %760 = vmatmul.mubr.bf16.gmra.mrb[0].mxu0 %v459
  %v761 = vpop.f32.mrb[0].mxu0
  %v762 = vadd.f32 0.0, %v761
  %v763 = vpop.f32.mrb[0].mxu0
  %v764 = vpop.f32.mrb[0].mxu0
  %v765 = vadd.f32 0.0, %v764
  %v766 = vpop.f32.mrb[0].mxu0
  %767 = vmatprep.mubr.bf16.mxu0 0
  %768 = vmatmul.mubr.bf16.gmra.mrb[0].mxu0 %v462
  %v769 = vpop.f32.mrb[0].mxu0
  %v770 = vadd.f32 0.0, %v769
  %v771 = vpop.f32.mrb[0].mxu0
  %v772 = vpop.f32.mrb[0].mxu0
  %v773 = vadd.f32 0.0, %v772
  %v774 = vpop.f32.mrb[0].mxu0
  %775 = vmatprep.mubr.bf16.mxu0 0
  %776 = vmatmul.mubr.bf16.gmra.mrb[0].mxu0 %v465
  %v777 = vpop.f32.mrb[0].mxu0
  %v778 = vadd.f32 0.0, %v777
  %v779 = vpop.f32.mrb[0].mxu0
  %v780 = vpop.f32.mrb[0].mxu0
  %v781 = vadd.f32 0.0, %v780
  %v782 = vpop.f32.mrb[0].mxu0
  %783 = vmatprep.mubr.bf16.mxu0 0
  %784 = vmatmul.mubr.bf16.gmra.mrb[0].mxu0 %v468
  %v785 = vpop.f32.mrb[0].mxu0
  %v786 = vadd.f32 0.0, %v785
  %v787 = vpop.f32.mrb[0].mxu0
  %v788 = vpop.f32.mrb[0].mxu0
  %v789 = vadd.f32 0.0, %v788
  %v790 = vpop.f32.mrb[0].mxu0
  %791 = vmatprep.mubr.bf16.mxu0 0
  %792 = vmatmul.mubr.bf16.gmra.mrb[0].mxu0 %v471
  %v793 = vpop.f32.mrb[0].mxu0
  %v794 = vadd.f32 0.0, %v793
  %v795 = vpop.f32.mrb[0].mxu0
  %v796 = vpop.f32.mrb[0].mxu0
  %v797 = vadd.f32 0.0, %v796
  %v798 = vpop.f32.mrb[0].mxu0
  %799 = vmatprep.mubr.bf16.mxu0 0
  %800 = vmatmul.mubr.bf16.gmra.mrb[0].mxu0 %v474
  %v801 = vpop.f32.mrb[0].mxu0
  %v802 = vadd.f32 0.0, %v801
  %v803 = vpop.f32.mrb[0].mxu0
  %v804 = vpop.f32.mrb[0].mxu0
  %v805 = vadd.f32 0.0, %v804
  %v806 = vpop.f32.mrb[0].mxu0
  %807 = vmatprep.mubr.bf16.mxu0 0
  %808 = vmatmul.mubr.bf16.gmra.mrb[0].mxu0 %v477
  %v809 = vpop.f32.mrb[0].mxu0
  %v810 = vadd.f32 0.0, %v809
  %v811 = vpop.f32.mrb[0].mxu0
  %v812 = vpop.f32.mrb[0].mxu0
  %v813 = vadd.f32 0.0, %v812
  %v814 = vpop.f32.mrb[0].mxu0
  %815 = vmatprep.mubr.bf16.mxu0 0
  %816 = vmatmul.mubr.bf16.gmra.mrb[0].mxu0 %v480
  %v817 = vpop.f32.mrb[0].mxu0
  %v818 = vadd.f32 0.0, %v817
  %v819 = vpop.f32.mrb[0].mxu0
  %v820 = vpop.f32.mrb[0].mxu0
  %v821 = vadd.f32 0.0, %v820
  %v822 = vpop.f32.mrb[0].mxu0
  %823 = vmatprep.mubr.bf16.mxu0 0
  %824 = vmatmul.mubr.bf16.gmra.mrb[0].mxu0 %v483
  %v825 = vpop.f32.mrb[0].mxu0
  %v826 = vadd.f32 0.0, %v825
  %v827 = vpop.f32.mrb[0].mxu0
  %v828 = vpop.f32.mrb[0].mxu0
  %v829 = vadd.f32 0.0, %v828
  %v830 = vpop.f32.mrb[0].mxu0
  %831 = vmatprep.mubr.bf16.mxu0 0
  %832 = vmatmul.mubr.bf16.gmra.mrb[0].mxu0 %v486
  %v833 = vpop.f32.mrb[0].mxu0
  %v834 = vadd.f32 0.0, %v833
  %v835 = vpop.f32.mrb[0].mxu0
  %v836 = vpop.f32.mrb[0].mxu0
  %v837 = vadd.f32 0.0, %v836
  %v838 = vpop.f32.mrb[0].mxu0
  %839 = vmatprep.mubr.bf16.mxu0 0
  %840 = vmatmul.mubr.bf16.gmra.mrb[0].mxu0 %v489
  %v841 = vpop.f32.mrb[0].mxu0
  %v842 = vadd.f32 0.0, %v841
  %v843 = vpop.f32.mrb[0].mxu0
  %v844 = vpop.f32.mrb[0].mxu0
  %v845 = vadd.f32 0.0, %v844
  %v846 = vpop.f32.mrb[0].mxu0
  %847 = vmatprep.mubr.bf16.mxu0 0
  %848 = vmatmul.mubr.bf16.gmra.mrb[0].mxu0 %v492
  %v849 = vpop.f32.mrb[0].mxu0
  %v850 = vadd.f32 0.0, %v849
  %v851 = vpop.f32.mrb[0].mxu0
  %v852 = vpop.f32.mrb[0].mxu0
  %v853 = vadd.f32 0.0, %v852
  %v854 = vpop.f32.mrb[0].mxu0
  %855 = vmatprep.mubr.bf16.mxu0 0
  %856 = vmatmul.mubr.bf16.gmra.mrb[0].mxu0 %v495
  %v857 = vpop.f32.mrb[0].mxu0
  %v858 = vadd.f32 0.0, %v857
  %v859 = vpop.f32.mrb[0].mxu0
  %v860 = vpop.f32.mrb[0].mxu0
  %v861 = vadd.f32 0.0, %v860
  %v862 = vpop.f32.mrb[0].mxu0
  %863 = vmatprep.mubr.bf16.mxu0 0
  %864 = vmatmul.mubr.bf16.gmra.mrb[0].mxu0 %v498
  %v865 = vpop.f32.mrb[0].mxu0
  %v866 = vadd.f32 0.0, %v865
  %v867 = vpop.f32.mrb[0].mxu0
  %v868 = vpop.f32.mrb[0].mxu0
  %v869 = vadd.f32 0.0, %v868
  %v870 = vpop.f32.mrb[0].mxu0
  %871 = vmatprep.mubr.bf16.mxu0 0
  %872 = vmatmul.mubr.bf16.gmra.mrb[0].mxu0 %v501
  %v873 = vpop.f32.mrb[0].mxu0
  %v874 = vadd.f32 0.0, %v873
  %v875 = vpop.f32.mrb[0].mxu0
  %v876 = vpop.f32.mrb[0].mxu0
  %v877 = vadd.f32 0.0, %v876
  %v878 = vpop.f32.mrb[0].mxu0
  %879 = vmatprep.mubr.bf16.mxu0 0
  %880 = vmatmul.mubr.bf16.gmra.mrb[0].mxu0 %v504
  %v881 = vpop.f32.mrb[0].mxu0
  %v882 = vadd.f32 0.0, %v881
  %v883 = vpop.f32.mrb[0].mxu0
  %v884 = vpop.f32.mrb[0].mxu0
  %v885 = vadd.f32 0.0, %v884
  %v886 = vpop.f32.mrb[0].mxu0
  %887 = vmatprep.mubr.bf16.mxu0 0
  %888 = vmatmul.mubr.bf16.gmra.mrb[0].mxu0 %v507
  %v889 = vpop.f32.mrb[0].mxu0
  %v890 = vadd.f32 0.0, %v889
  %v891 = vpop.f32.mrb[0].mxu0
  %v892 = vpop.f32.mrb[0].mxu0
  %v893 = vadd.f32 0.0, %v892
  %v894 = vpop.f32.mrb[0].mxu0
  %895 = vmatprep.mubr.bf16.mxu0 0
  %896 = vmatmul.mubr.bf16.gmra.mrb[0].mxu0 %v510
  %v897 = vpop.f32.mrb[0].mxu0
  %v898 = vadd.f32 0.0, %v897
  %v899 = vpop.f32.mrb[0].mxu0
  %v900 = vpop.f32.mrb[0].mxu0
  %v901 = vadd.f32 0.0, %v900
  %v902 = vpop.f32.mrb[0].mxu0
  %903 = vmatprep.mubr.bf16.mxu0 0
  %904 = vmatmul.mubr.bf16.gmra.mrb[0].mxu0 %v513
  %v905 = vpop.f32.mrb[0].mxu0
  %v906 = vadd.f32 0.0, %v905
  %v907 = vpop.f32.mrb[0].mxu0
  %v908 = vpop.f32.mrb[0].mxu0
  %v909 = vadd.f32 0.0, %v908
  %v910 = vpop.f32.mrb[0].mxu0
  %911 = vmatprep.mubr.bf16.mxu0 0
  %912 = vmatmul.mubr.bf16.gmra.mrb[0].mxu0 %v516
  %v913 = vpop.f32.mrb[0].mxu0
  %v914 = vadd.f32 0.0, %v913
  %v915 = vpop.f32.mrb[0].mxu0
  %v916 = vpop.f32.mrb[0].mxu0
  %v917 = vadd.f32 0.0, %v916
  %v918 = vpop.f32.mrb[0].mxu0
  %919 = vmatprep.mubr.bf16.mxu0 0
  %920 = vmatmul.mubr.bf16.gmra.mrb[0].mxu0 %v519
  %v921 = vpop.f32.mrb[0].mxu0
  %v922 = vadd.f32 0.0, %v921
  %v923 = vpop.f32.mrb[0].mxu0
  %v924 = vpop.f32.mrb[0].mxu0
  %v925 = vadd.f32 0.0, %v924
  %v926 = vpop.f32.mrb[0].mxu0
  %927 = vmatprep.mubr.bf16.mxu0 0
  %928 = vmatmul.mubr.bf16.gmra.mrb[0].mxu0 %v522
  %v929 = vpop.f32.mrb[0].mxu0
  %v930 = vadd.f32 0.0, %v929
  %v931 = vpop.f32.mrb[0].mxu0
  %v932 = vpop.f32.mrb[0].mxu0
  %v933 = vadd.f32 0.0, %v932
  %v934 = vpop.f32.mrb[0].mxu0
  %935 = vmatprep.mubr.bf16.mxu0 0
  %936 = vmatmul.mubr.bf16.gmra.mrb[0].mxu0 %v525
  %v937 = vpop.f32.mrb[0].mxu0
  %v938 = vadd.f32 0.0, %v937
  %v939 = vpop.f32.mrb[0].mxu0
  %v940 = vpop.f32.mrb[0].mxu0
  %v941 = vadd.f32 0.0, %v940
  %v942 = vpop.f32.mrb[0].mxu0
  %943 = vdwg.mxu0
  %944 = vst [vmem:[#allocation2] sm:$0xff] %v562
  %945 = vst [vmem:[#allocation2 + $0x8] sm:$0xff] %v565
  %946 = vst [vmem:[#allocation2 + $0x10] sm:$0xff] %v570
  %947 = vst [vmem:[#allocation2 + $0x18] sm:$0xff] %v573
  %948 = vst [vmem:[#allocation2 + $0x20] sm:$0xff] %v578
  %949 = vst [vmem:[#allocation2 + $0x28] sm:$0xff] %v581
  %950 = vst [vmem:[#allocation2 + $0x30] sm:$0xff] %v586
  %951 = vst [vmem:[#allocation2 + $0x38] sm:$0xff] %v589
  %952 = vst [vmem:[#allocation2 + $0x40] sm:$0xff] %v594
  %953 = vst [vmem:[#allocation2 + $0x48] sm:$0xff] %v597
  %954 = vst [vmem:[#allocation2 + $0x50] sm:$0xff] %v602
  %955 = vst [vmem:[#allocation2 + $0x58] sm:$0xff] %v605
  %956 = vst [vmem:[#allocation2 + $0x60] sm:$0xff] %v610
  %957 = vst [vmem:[#allocation2 + $0x68] sm:$0xff] %v613
  %958 = vst [vmem:[#allocation2 + $0x70] sm:$0xff] %v618
  %959 = vst [vmem:[#allocation2 + $0x78] sm:$0xff] %v621
  %960 = vst [vmem:[#allocation2 + $0x80] sm:$0xff] %v626
  %961 = vst [vmem:[#allocation2 + $0x88] sm:$0xff] %v629
  %962 = vst [vmem:[#allocation2 + $0x90] sm:$0xff] %v634
  %963 = vst [vmem:[#allocation2 + $0x98] sm:$0xff] %v637
  %964 = vst [vmem:[#allocation2 + $0xa0] sm:$0xff] %v642
  %965 = vst [vmem:[#allocation2 + $0xa8] sm:$0xff] %v645
  %966 = vst [vmem:[#allocation2 + $0xb0] sm:$0xff] %v650
  %967 = vst [vmem:[#allocation2 + $0xb8] sm:$0xff] %v653
  %968 = vst [vmem:[#allocation2 + $0xc0] sm:$0xff] %v658
  %969 = vst [vmem:[#allocation2 + $0xc8] sm:$0xff] %v661
  %970 = vst [vmem:[#allocation2 + $0xd0] sm:$0xff] %v666
  %971 = vst [vmem:[#allocation2 + $0xd8] sm:$0xff] %v669
  %972 = vst [vmem:[#allocation2 + $0xe0] sm:$0xff] %v674
  %973 = vst [vmem:[#allocation2 + $0xe8] sm:$0xff] %v677
  %974 = vst [vmem:[#allocation2 + $0xf0] sm:$0xff] %v682
  %975 = vst [vmem:[#allocation2 + $0xf8] sm:$0xff] %v685
  %976 = vst [vmem:[#allocation2 + $0x100] sm:$0xff] %v690
  %977 = vst [vmem:[#allocation2 + $0x108] sm:$0xff] %v693
  %978 = vst [vmem:[#allocation2 + $0x110] sm:$0xff] %v698
  %979 = vst [vmem:[#allocation2 + $0x118] sm:$0xff] %v701
  %980 = vst [vmem:[#allocation2 + $0x120] sm:$0xff] %v706
  %981 = vst [vmem:[#allocation2 + $0x128] sm:$0xff] %v709
  %982 = vst [vmem:[#allocation2 + $0x130] sm:$0xff] %v714
  %983 = vst [vmem:[#allocation2 + $0x138] sm:$0xff] %v717
  %984 = vst [vmem:[#allocation2 + $0x140] sm:$0xff] %v722
  %985 = vst [vmem:[#allocation2 + $0x148] sm:$0xff] %v725
  %986 = vst [vmem:[#allocation2 + $0x150] sm:$0xff] %v730
  %987 = vst [vmem:[#allocation2 + $0x158] sm:$0xff] %v733
  %988 = vst [vmem:[#allocation2 + $0x160] sm:$0xff] %v738
  %989 = vst [vmem:[#allocation2 + $0x168] sm:$0xff] %v741
  %990 = vst [vmem:[#allocation2 + $0x170] sm:$0xff] %v746
  %991 = vst [vmem:[#allocation2 + $0x178] sm:$0xff] %v749
  %992 = vst [vmem:[#allocation2 + $0x180] sm:$0xff] %v754
  %993 = vst [vmem:[#allocation2 + $0x188] sm:$0xff] %v757
  %994 = vst [vmem:[#allocation2 + $0x190] sm:$0xff] %v762
  %995 = vst [vmem:[#allocation2 + $0x198] sm:$0xff] %v765
  %996 = vst [vmem:[#allocation2 + $0x1a0] sm:$0xff] %v770
  %997 = vst [vmem:[#allocation2 + $0x1a8] sm:$0xff] %v773
  %998 = vst [vmem:[#allocation2 + $0x1b0] sm:$0xff] %v778
  %999 = vst [vmem:[#allocation2 + $0x1b8] sm:$0xff] %v781
  %1000 = vst [vmem:[#allocation2 + $0x1c0] sm:$0xff] %v786
  %1001 = vst [vmem:[#allocation2 + $0x1c8] sm:$0xff] %v789
  %1002 = vst [vmem:[#allocation2 + $0x1d0] sm:$0xff] %v794
  %1003 = vst [vmem:[#allocation2 + $0x1d8] sm:$0xff] %v797
  %1004 = vst [vmem:[#allocation2 + $0x1e0] sm:$0xff] %v802
  %1005 = vst [vmem:[#allocation2 + $0x1e8] sm:$0xff] %v805
  %1006 = vst [vmem:[#allocation2 + $0x1f0] sm:$0xff] %v810
  %1007 = vst [vmem:[#allocation2 + $0x1f8] sm:$0xff] %v813
  %1008 = vst [vmem:[#allocation2 + $0x200] sm:$0xff] %v818
  %1009 = vst [vmem:[#allocation2 + $0x208] sm:$0xff] %v821
  %1010 = vst [vmem:[#allocation2 + $0x210] sm:$0xff] %v826
  %1011 = vst [vmem:[#allocation2 + $0x218] sm:$0xff] %v829
  %1012 = vst [vmem:[#allocation2 + $0x220] sm:$0xff] %v834
  %1013 = vst [vmem:[#allocation2 + $0x228] sm:$0xff] %v837
  %1014 = vst [vmem:[#allocation2 + $0x230] sm:$0xff] %v842
  %1015 = vst [vmem:[#allocation2 + $0x238] sm:$0xff] %v845
  %1016 = vst [vmem:[#allocation2 + $0x240] sm:$0xff] %v850
  %1017 = vst [vmem:[#allocation2 + $0x248] sm:$0xff] %v853
  %1018 = vst [vmem:[#allocation2 + $0x250] sm:$0xff] %v858
  %1019 = vst [vmem:[#allocation2 + $0x258] sm:$0xff] %v861
  %1020 = vst [vmem:[#allocation2 + $0x260] sm:$0xff] %v866
  %1021 = vst [vmem:[#allocation2 + $0x268] sm:$0xff] %v869
  %1022 = vst [vmem:[#allocation2 + $0x270] sm:$0xff] %v874
  %1023 = vst [vmem:[#allocation2 + $0x278] sm:$0xff] %v877
  %1024 = vst [vmem:[#allocation2 + $0x280] sm:$0xff] %v882
  %1025 = vst [vmem:[#allocation2 + $0x288] sm:$0xff] %v885
  %1026 = vst [vmem:[#allocation2 + $0x290] sm:$0xff] %v890
  %1027 = vst [vmem:[#allocation2 + $0x298] sm:$0xff] %v893
  %1028 = vst [vmem:[#allocation2 + $0x2a0] sm:$0xff] %v898
  %1029 = vst [vmem:[#allocation2 + $0x2a8] sm:$0xff] %v901
  %1030 = vst [vmem:[#allocation2 + $0x2b0] sm:$0xff] %v906
  %1031 = vst [vmem:[#allocation2 + $0x2b8] sm:$0xff] %v909
  %1032 = vst [vmem:[#allocation2 + $0x2c0] sm:$0xff] %v914
  %1033 = vst [vmem:[#allocation2 + $0x2c8] sm:$0xff] %v917
  %1034 = vst [vmem:[#allocation2 + $0x2d0] sm:$0xff] %v922
  %1035 = vst [vmem:[#allocation2 + $0x2d8] sm:$0xff] %v925
  %1036 = vst [vmem:[#allocation2 + $0x2e0] sm:$0xff] %v930
  %1037 = vst [vmem:[#allocation2 + $0x2e8] sm:$0xff] %v933
  %1038 = vst [vmem:[#allocation2 + $0x2f0] sm:$0xff] %v938
  %1039 = vst [vmem:[#allocation2 + $0x2f8] sm:$0xff] %v941
  %v1040 = vld [vmem:[#allocation2] sm:$0xff]
  %v1041 = vld [vmem:[#allocation2 + $0x8] sm:$0xff]
  %v1042 = vld [vmem:[#allocation2 + $0x10] sm:$0xff]
  %v1043 = vld [vmem:[#allocation2 + $0x18] sm:$0xff]
  %v1044 = vld [vmem:[#allocation2 + $0x20] sm:$0xff]
  %v1045 = vld [vmem:[#allocation2 + $0x28] sm:$0xff]
  %v1046 = vld [vmem:[#allocation2 + $0x30] sm:$0xff]
  %v1047 = vld [vmem:[#allocation2 + $0x38] sm:$0xff]
  %v1048 = vld [vmem:[#allocation2 + $0x40] sm:$0xff]
  %v1049 = vld [vmem:[#allocation2 + $0x48] sm:$0xff]
  %v1050 = vld [vmem:[#allocation2 + $0x50] sm:$0xff]
  %v1051 = vld [vmem:[#allocation2 + $0x58] sm:$0xff]
  %v1052 = vld [vmem:[#allocation2 + $0x60] sm:$0xff]
  %v1053 = vld [vmem:[#allocation2 + $0x68] sm:$0xff]
  %v1054 = vld [vmem:[#allocation2 + $0x70] sm:$0xff]
  %v1055 = vld [vmem:[#allocation2 + $0x78] sm:$0xff]
  %v1056 = vld [vmem:[#allocation2 + $0x80] sm:$0xff]
  %v1057 = vld [vmem:[#allocation2 + $0x88] sm:$0xff]
  %v1058 = vld [vmem:[#allocation2 + $0x90] sm:$0xff]
  %v1059 = vld [vmem:[#allocation2 + $0x98] sm:$0xff]
  %v1060 = vld [vmem:[#allocation2 + $0xa0] sm:$0xff]
  %v1061 = vld [vmem:[#allocation2 + $0xa8] sm:$0xff]
  %v1062 = vld [vmem:[#allocation2 + $0xb0] sm:$0xff]
  %v1063 = vld [vmem:[#allocation2 + $0xb8] sm:$0xff]
  %v1064 = vld [vmem:[#allocation2 + $0xc0] sm:$0xff]
  %v1065 = vld [vmem:[#allocation2 + $0xc8] sm:$0xff]
  %v1066 = vld [vmem:[#allocation2 + $0xd0] sm:$0xff]
  %v1067 = vld [vmem:[#allocation2 + $0xd8] sm:$0xff]
  %v1068 = vld [vmem:[#allocation2 + $0xe0] sm:$0xff]
  %v1069 = vld [vmem:[#allocation2 + $0xe8] sm:$0xff]
  %v1070 = vld [vmem:[#allocation2 + $0xf0] sm:$0xff]
  %v1071 = vld [vmem:[#allocation2 + $0xf8] sm:$0xff]
  %v1072 = vld [vmem:[#allocation2 + $0x100] sm:$0xff]
  %v1073 = vld [vmem:[#allocation2 + $0x108] sm:$0xff]
  %v1074 = vld [vmem:[#allocation2 + $0x110] sm:$0xff]
  %v1075 = vld [vmem:[#allocation2 + $0x118] sm:$0xff]
  %v1076 = vld [vmem:[#allocation2 + $0x120] sm:$0xff]
  %v1077 = vld [vmem:[#allocation2 + $0x128] sm:$0xff]
  %v1078 = vld [vmem:[#allocation2 + $0x130] sm:$0xff]
  %v1079 = vld [vmem:[#allocation2 + $0x138] sm:$0xff]
  %v1080 = vld [vmem:[#allocation2 + $0x140] sm:$0xff]
  %v1081 = vld [vmem:[#allocation2 + $0x148] sm:$0xff]
  %v1082 = vld [vmem:[#allocation2 + $0x150] sm:$0xff]
  %v1083 = vld [vmem:[#allocation2 + $0x158] sm:$0xff]
  %v1084 = vld [vmem:[#allocation2 + $0x160] sm:$0xff]
  %v1085 = vld [vmem:[#allocation2 + $0x168] sm:$0xff]
  %v1086 = vld [vmem:[#allocation2 + $0x170] sm:$0xff]
  %v1087 = vld [vmem:[#allocation2 + $0x178] sm:$0xff]
  %v1088 = vld [vmem:[#allocation2 + $0x180] sm:$0xff]
  %v1089 = vld [vmem:[#allocation2 + $0x188] sm:$0xff]
  %v1090 = vld [vmem:[#allocation2 + $0x190] sm:$0xff]
  %v1091 = vld [vmem:[#allocation2 + $0x198] sm:$0xff]
  %v1092 = vld [vmem:[#allocation2 + $0x1a0] sm:$0xff]
  %v1093 = vld [vmem:[#allocation2 + $0x1a8] sm:$0xff]
  %v1094 = vld [vmem:[#allocation2 + $0x1b0] sm:$0xff]
  %v1095 = vld [vmem:[#allocation2 + $0x1b8] sm:$0xff]
  %v1096 = vld [vmem:[#allocation2 + $0x1c0] sm:$0xff]
  %v1097 = vld [vmem:[#allocation2 + $0x1c8] sm:$0xff]
  %v1098 = vld [vmem:[#allocation2 + $0x1d0] sm:$0xff]
  %v1099 = vld [vmem:[#allocation2 + $0x1d8] sm:$0xff]
  %v1100 = vld [vmem:[#allocation2 + $0x1e0] sm:$0xff]
  %v1101 = vld [vmem:[#allocation2 + $0x1e8] sm:$0xff]
  %v1102 = vld [vmem:[#allocation2 + $0x1f0] sm:$0xff]
  %v1103 = vld [vmem:[#allocation2 + $0x1f8] sm:$0xff]
  %v1104 = vld [vmem:[#allocation2 + $0x200] sm:$0xff]
  %v1105 = vld [vmem:[#allocation2 + $0x208] sm:$0xff]
  %v1106 = vld [vmem:[#allocation2 + $0x210] sm:$0xff]
  %v1107 = vld [vmem:[#allocation2 + $0x218] sm:$0xff]
  %v1108 = vld [vmem:[#allocation2 + $0x220] sm:$0xff]
  %v1109 = vld [vmem:[#allocation2 + $0x228] sm:$0xff]
  %v1110 = vld [vmem:[#allocation2 + $0x230] sm:$0xff]
  %v1111 = vld [vmem:[#allocation2 + $0x238] sm:$0xff]
  %v1112 = vld [vmem:[#allocation2 + $0x240] sm:$0xff]
  %v1113 = vld [vmem:[#allocation2 + $0x248] sm:$0xff]
  %v1114 = vld [vmem:[#allocation2 + $0x250] sm:$0xff]
  %v1115 = vld [vmem:[#allocation2 + $0x258] sm:$0xff]
  %v1116 = vld [vmem:[#allocation2 + $0x260] sm:$0xff]
  %v1117 = vld [vmem:[#allocation2 + $0x268] sm:$0xff]
  %v1118 = vld [vmem:[#allocation2 + $0x270] sm:$0xff]
  %v1119 = vld [vmem:[#allocation2 + $0x278] sm:$0xff]
  %v1120 = vld [vmem:[#allocation2 + $0x280] sm:$0xff]
  %v1121 = vld [vmem:[#allocation2 + $0x288] sm:$0xff]
  %v1122 = vld [vmem:[#allocation2 + $0x290] sm:$0xff]
  %v1123 = vld [vmem:[#allocation2 + $0x298] sm:$0xff]
  %v1124 = vld [vmem:[#allocation2 + $0x2a0] sm:$0xff]
  %v1125 = vld [vmem:[#allocation2 + $0x2a8] sm:$0xff]
  %v1126 = vld [vmem:[#allocation2 + $0x2b0] sm:$0xff]
  %v1127 = vld [vmem:[#allocation2 + $0x2b8] sm:$0xff]
  %v1128 = vld [vmem:[#allocation2 + $0x2c0] sm:$0xff]
  %v1129 = vld [vmem:[#allocation2 + $0x2c8] sm:$0xff]
  %v1130 = vld [vmem:[#allocation2 + $0x2d0] sm:$0xff]
  %v1131 = vld [vmem:[#allocation2 + $0x2d8] sm:$0xff]
  %v1132 = vld [vmem:[#allocation2 + $0x2e0] sm:$0xff]
  %v1133 = vld [vmem:[#allocation2 + $0x2e8] sm:$0xff]
  %v1134 = vld [vmem:[#allocation2 + $0x2f0] sm:$0xff]
  %v1135 = vld [vmem:[#allocation2 + $0x2f8] sm:$0xff]
  %v1136 = vld [vmem:[%s1] sm:$0xff]
  %v1137 = vld [vmem:[%s1 + $0x8] sm:$0xff]
  %v1138 = vld [vmem:[%s1 + $0x10] sm:$0xff]
  %v1139 = vld [vmem:[%s1 + $0x18] sm:$0xff]
  %v1140 = vld [vmem:[%s1 + $0x20] sm:$0xff]
  %v1141 = vld [vmem:[%s1 + $0x28] sm:$0xff]
  %v1142 = vld [vmem:[%s1 + $0x30] sm:$0xff]
  %v1143 = vld [vmem:[%s1 + $0x38] sm:$0xff]
  %v1144 = vld [vmem:[%s1 + $0x40] sm:$0xff]
  %v1145 = vld [vmem:[%s1 + $0x48] sm:$0xff]
  %v1146 = vld [vmem:[%s1 + $0x50] sm:$0xff]
  %v1147 = vld [vmem:[%s1 + $0x58] sm:$0xff]
  %1148 = vmatprep.subr.mxu0 0.0
  %1149 = vmatpush1.msra.mxu0 %v1040
  %1150 = vmatprep.subr.mxu0 0.0
  %1151 = vmatpush1.msra.mxu0 %v1041
  %1152 = vmatprep.subr.mxu0 0.0
  %1153 = vmatpush1.msra.mxu0 %v1042
  %1154 = vmatprep.subr.mxu0 0.0
  %1155 = vmatpush1.msra.mxu0 %v1043
  %1156 = vmatprep.subr.mxu0 0.0
  %1157 = vmatpush1.msra.mxu0 %v1044
  %1158 = vmatprep.subr.mxu0 0.0
  %1159 = vmatpush1.msra.mxu0 %v1045
  %1160 = vmatprep.subr.mxu0 0.0
  %1161 = vmatpush1.msra.mxu0 %v1046
  %1162 = vmatprep.subr.mxu0 0.0
  %1163 = vmatpush1.msra.mxu0 %v1047
  %1164 = vmatprep.subr.mxu0 0.0
  %1165 = vmatpush1.msra.mxu0 %v1048
  %1166 = vmatprep.subr.mxu0 0.0
  %1167 = vmatpush1.msra.mxu0 %v1049
  %1168 = vmatprep.subr.mxu0 0.0
  %1169 = vmatpush1.msra.mxu0 %v1050
  %1170 = vmatprep.subr.mxu0 0.0
  %1171 = vmatpush1.msra.mxu0 %v1051
  %1172 = vmatprep.subr.mxu0 0.0
  %1173 = vmatpush1.msra.mxu0 %v1052
  %1174 = vmatprep.subr.mxu0 0.0
  %1175 = vmatpush1.msra.mxu0 %v1053
  %1176 = vmatprep.subr.mxu0 0.0
  %1177 = vmatpush1.msra.mxu0 %v1054
  %1178 = vmatprep.subr.mxu0 0.0
  %1179 = vmatpush1.msra.mxu0 %v1055
  %1180 = vmatprep.subr.mxu0 0.0
  %1181 = vmatpush1.msra.mxu0 %v1056
  %1182 = vmatprep.subr.mxu0 0.0
  %1183 = vmatpush1.msra.mxu0 %v1057
  %1184 = vmatprep.subr.mxu0 0.0
  %1185 = vmatpush1.msra.mxu0 %v1058
  %1186 = vmatprep.subr.mxu0 0.0
  %1187 = vmatpush1.msra.mxu0 %v1059
  %1188 = vmatprep.subr.mxu0 0.0
  %1189 = vmatpush1.msra.mxu0 %v1060
  %1190 = vmatprep.subr.mxu0 0.0
  %1191 = vmatpush1.msra.mxu0 %v1061
  %1192 = vmatprep.subr.mxu0 0.0
  %1193 = vmatpush1.msra.mxu0 %v1062
  %1194 = vmatprep.subr.mxu0 0.0
  %1195 = vmatpush1.msra.mxu0 %v1063
  %1196 = vmatprep.subr.mxu0 0.0
  %1197 = vmatpush1.msra.mxu0 %v1064
  %1198 = vmatprep.subr.mxu0 0.0
  %1199 = vmatpush1.msra.mxu0 %v1065
  %1200 = vmatprep.subr.mxu0 0.0
  %1201 = vmatpush1.msra.mxu0 %v1066
  %1202 = vmatprep.subr.mxu0 0.0
  %1203 = vmatpush1.msra.mxu0 %v1067
  %1204 = vmatprep.subr.mxu0 0.0
  %1205 = vmatpush1.msra.mxu0 %v1068
  %1206 = vmatprep.subr.mxu0 0.0
  %1207 = vmatpush1.msra.mxu0 %v1069
  %1208 = vmatprep.subr.mxu0 0.0
  %1209 = vmatpush1.msra.mxu0 %v1070
  %1210 = vmatprep.subr.mxu0 0.0
  %1211 = vmatpush1.msra.mxu0 %v1071
  %1212 = vmatprep.mubr.f32.mxu0 %v1137
  %1213 = vmatmul.mubr.f32.gmra.mrb[0].mxu0 %v1136
  %v1214 = vpop.f32.mrb[0].mxu0
  %v1215 = vadd.f32 0.0, %v1214
  %v1216 = vpop.f32.mrb[0].mxu0
  %1217 = vmatprep.mubr.f32.mxu0 %v1143
  %1218 = vmatmul.mubr.f32.gmra.mrb[0].mxu0 %v1142
  %v1219 = vpop.f32.mrb[0].mxu0
  %v1220 = vadd.f32 0.0, %v1219
  %v1221 = vpop.f32.mrb[0].mxu0
  %1222 = vdwg.mxu0
  %1223 = vmatprep.subr.mxu0 0.0
  %1224 = vmatpush1.msra.mxu0 %v1072
  %1225 = vmatprep.subr.mxu0 0.0
  %1226 = vmatpush1.msra.mxu0 %v1073
  %1227 = vmatprep.subr.mxu0 0.0
  %1228 = vmatpush1.msra.mxu0 %v1074
  %1229 = vmatprep.subr.mxu0 0.0
  %1230 = vmatpush1.msra.mxu0 %v1075
  %1231 = vmatprep.subr.mxu0 0.0
  %1232 = vmatpush1.msra.mxu0 %v1076
  %1233 = vmatprep.subr.mxu0 0.0
  %1234 = vmatpush1.msra.mxu0 %v1077
  %1235 = vmatprep.subr.mxu0 0.0
  %1236 = vmatpush1.msra.mxu0 %v1078
  %1237 = vmatprep.subr.mxu0 0.0
  %1238 = vmatpush1.msra.mxu0 %v1079
  %1239 = vmatprep.subr.mxu0 0.0
  %1240 = vmatpush1.msra.mxu0 %v1080
  %1241 = vmatprep.subr.mxu0 0.0
  %1242 = vmatpush1.msra.mxu0 %v1081
  %1243 = vmatprep.subr.mxu0 0.0
  %1244 = vmatpush1.msra.mxu0 %v1082
  %1245 = vmatprep.subr.mxu0 0.0
  %1246 = vmatpush1.msra.mxu0 %v1083
  %1247 = vmatprep.subr.mxu0 0.0
  %1248 = vmatpush1.msra.mxu0 %v1084
  %1249 = vmatprep.subr.mxu0 0.0
  %1250 = vmatpush1.msra.mxu0 %v1085
  %1251 = vmatprep.subr.mxu0 0.0
  %1252 = vmatpush1.msra.mxu0 %v1086
  %1253 = vmatprep.subr.mxu0 0.0
  %1254 = vmatpush1.msra.mxu0 %v1087
  %1255 = vmatprep.subr.mxu0 0.0
  %1256 = vmatpush1.msra.mxu0 %v1088
  %1257 = vmatprep.subr.mxu0 0.0
  %1258 = vmatpush1.msra.mxu0 %v1089
  %1259 = vmatprep.subr.mxu0 0.0
  %1260 = vmatpush1.msra.mxu0 %v1090
  %1261 = vmatprep.subr.mxu0 0.0
  %1262 = vmatpush1.msra.mxu0 %v1091
  %1263 = vmatprep.subr.mxu0 0.0
  %1264 = vmatpush1.msra.mxu0 %v1092
  %1265 = vmatprep.subr.mxu0 0.0
  %1266 = vmatpush1.msra.mxu0 %v1093
  %1267 = vmatprep.subr.mxu0 0.0
  %1268 = vmatpush1.msra.mxu0 %v1094
  %1269 = vmatprep.subr.mxu0 0.0
  %1270 = vmatpush1.msra.mxu0 %v1095
  %1271 = vmatprep.subr.mxu0 0.0
  %1272 = vmatpush1.msra.mxu0 %v1096
  %1273 = vmatprep.subr.mxu0 0.0
  %1274 = vmatpush1.msra.mxu0 %v1097
  %1275 = vmatprep.subr.mxu0 0.0
  %1276 = vmatpush1.msra.mxu0 %v1098
  %1277 = vmatprep.subr.mxu0 0.0
  %1278 = vmatpush1.msra.mxu0 %v1099
  %1279 = vmatprep.subr.mxu0 0.0
  %1280 = vmatpush1.msra.mxu0 %v1100
  %1281 = vmatprep.subr.mxu0 0.0
  %1282 = vmatpush1.msra.mxu0 %v1101
  %1283 = vmatprep.subr.mxu0 0.0
  %1284 = vmatpush1.msra.mxu0 %v1102
  %1285 = vmatprep.subr.mxu0 0.0
  %1286 = vmatpush1.msra.mxu0 %v1103
  %1287 = vmatprep.mubr.f32.mxu0 %v1139
  %1288 = vmatmul.mubr.f32.gmra.mrb[0].mxu0 %v1138
  %v1289 = vpop.f32.mrb[0].mxu0
  %v1290 = vadd.f32 %v1215, %v1289
  %v1291 = vpop.f32.mrb[0].mxu0
  %1292 = vmatprep.mubr.f32.mxu0 %v1145
  %1293 = vmatmul.mubr.f32.gmra.mrb[0].mxu0 %v1144
  %v1294 = vpop.f32.mrb[0].mxu0
  %v1295 = vadd.f32 %v1220, %v1294
  %v1296 = vpop.f32.mrb[0].mxu0
  %1297 = vdwg.mxu0
  %1298 = vmatprep.subr.mxu0 0.0
  %1299 = vmatpush1.msra.mxu0 %v1104
  %1300 = vmatprep.subr.mxu0 0.0
  %1301 = vmatpush1.msra.mxu0 %v1105
  %1302 = vmatprep.subr.mxu0 0.0
  %1303 = vmatpush1.msra.mxu0 %v1106
  %1304 = vmatprep.subr.mxu0 0.0
  %1305 = vmatpush1.msra.mxu0 %v1107
  %1306 = vmatprep.subr.mxu0 0.0
  %1307 = vmatpush1.msra.mxu0 %v1108
  %1308 = vmatprep.subr.mxu0 0.0
  %1309 = vmatpush1.msra.mxu0 %v1109
  %1310 = vmatprep.subr.mxu0 0.0
  %1311 = vmatpush1.msra.mxu0 %v1110
  %1312 = vmatprep.subr.mxu0 0.0
  %1313 = vmatpush1.msra.mxu0 %v1111
  %1314 = vmatprep.subr.mxu0 0.0
  %1315 = vmatpush1.msra.mxu0 %v1112
  %1316 = vmatprep.subr.mxu0 0.0
  %1317 = vmatpush1.msra.mxu0 %v1113
  %1318 = vmatprep.subr.mxu0 0.0
  %1319 = vmatpush1.msra.mxu0 %v1114
  %1320 = vmatprep.subr.mxu0 0.0
  %1321 = vmatpush1.msra.mxu0 %v1115
  %1322 = vmatprep.subr.mxu0 0.0
  %1323 = vmatpush1.msra.mxu0 %v1116
  %1324 = vmatprep.subr.mxu0 0.0
  %1325 = vmatpush1.msra.mxu0 %v1117
  %1326 = vmatprep.subr.mxu0 0.0
  %1327 = vmatpush1.msra.mxu0 %v1118
  %1328 = vmatprep.subr.mxu0 0.0
  %1329 = vmatpush1.msra.mxu0 %v1119
  %1330 = vmatprep.subr.mxu0 0.0
  %1331 = vmatpush1.msra.mxu0 %v1120
  %1332 = vmatprep.subr.mxu0 0.0
  %1333 = vmatpush1.msra.mxu0 %v1121
  %1334 = vmatprep.subr.mxu0 0.0
  %1335 = vmatpush1.msra.mxu0 %v1122
  %1336 = vmatprep.subr.mxu0 0.0
  %1337 = vmatpush1.msra.mxu0 %v1123
  %1338 = vmatprep.subr.mxu0 0.0
  %1339 = vmatpush1.msra.mxu0 %v1124
  %1340 = vmatprep.subr.mxu0 0.0
  %1341 = vmatpush1.msra.mxu0 %v1125
  %1342 = vmatprep.subr.mxu0 0.0
  %1343 = vmatpush1.msra.mxu0 %v1126
  %1344 = vmatprep.subr.mxu0 0.0
  %1345 = vmatpush1.msra.mxu0 %v1127
  %1346 = vmatprep.subr.mxu0 0.0
  %1347 = vmatpush1.msra.mxu0 %v1128
  %1348 = vmatprep.subr.mxu0 0.0
  %1349 = vmatpush1.msra.mxu0 %v1129
  %1350 = vmatprep.subr.mxu0 0.0
  %1351 = vmatpush1.msra.mxu0 %v1130
  %1352 = vmatprep.subr.mxu0 0.0
  %1353 = vmatpush1.msra.mxu0 %v1131
  %1354 = vmatprep.subr.mxu0 0.0
  %1355 = vmatpush1.msra.mxu0 %v1132
  %1356 = vmatprep.subr.mxu0 0.0
  %1357 = vmatpush1.msra.mxu0 %v1133
  %1358 = vmatprep.subr.mxu0 0.0
  %1359 = vmatpush1.msra.mxu0 %v1134
  %1360 = vmatprep.subr.mxu0 0.0
  %1361 = vmatpush1.msra.mxu0 %v1135
  %1362 = vmatprep.mubr.f32.mxu0 %v1141
  %1363 = vmatmul.mubr.f32.gmra.mrb[0].mxu0 %v1140
  %v1364 = vpop.f32.mrb[0].mxu0
  %v1365 = vadd.f32 %v1290, %v1364
  %v1366 = vpop.f32.mrb[0].mxu0
  %1367 = vmatprep.mubr.f32.mxu0 %v1147
  %1368 = vmatmul.mubr.f32.gmra.mrb[0].mxu0 %v1146
  %v1369 = vpop.f32.mrb[0].mxu0
  %v1370 = vadd.f32 %v1295, %v1369
  %v1371 = vpop.f32.mrb[0].mxu0
  %1372 = vdwg.mxu0
  %v1373 = vmul.f32 %v1040, %v1040
  %v1374 = vmul.f32 %v1041, %v1041
  %v1375 = vmul.f32 %v1042, %v1042
  %v1376 = vmul.f32 %v1043, %v1043
  %v1377 = vmul.f32 %v1044, %v1044
  %v1378 = vmul.f32 %v1045, %v1045
  %v1379 = vmul.f32 %v1046, %v1046
  %v1380 = vmul.f32 %v1047, %v1047
  %v1381 = vmul.f32 %v1048, %v1048
  %v1382 = vmul.f32 %v1049, %v1049
  %v1383 = vmul.f32 %v1050, %v1050
  %v1384 = vmul.f32 %v1051, %v1051
  %v1385 = vmul.f32 %v1052, %v1052
  %v1386 = vmul.f32 %v1053, %v1053
  %v1387 = vmul.f32 %v1054, %v1054
  %v1388 = vmul.f32 %v1055, %v1055
  %v1389 = vmul.f32 %v1056, %v1056
  %v1390 = vmul.f32 %v1057, %v1057
  %v1391 = vmul.f32 %v1058, %v1058
  %v1392 = vmul.f32 %v1059, %v1059
  %v1393 = vmul.f32 %v1060, %v1060
  %v1394 = vmul.f32 %v1061, %v1061
  %v1395 = vmul.f32 %v1062, %v1062
  %v1396 = vmul.f32 %v1063, %v1063
  %v1397 = vmul.f32 %v1064, %v1064
  %v1398 = vmul.f32 %v1065, %v1065
  %v1399 = vmul.f32 %v1066, %v1066
  %v1400 = vmul.f32 %v1067, %v1067
  %v1401 = vmul.f32 %v1068, %v1068
  %v1402 = vmul.f32 %v1069, %v1069
  %v1403 = vmul.f32 %v1070, %v1070
  %v1404 = vmul.f32 %v1071, %v1071
  %v1405 = vmul.f32 %v1072, %v1072
  %v1406 = vmul.f32 %v1073, %v1073
  %v1407 = vmul.f32 %v1074, %v1074
  %v1408 = vmul.f32 %v1075, %v1075
  %v1409 = vmul.f32 %v1076, %v1076
  %v1410 = vmul.f32 %v1077, %v1077
  %v1411 = vmul.f32 %v1078, %v1078
  %v1412 = vmul.f32 %v1079, %v1079
  %v1413 = vmul.f32 %v1080, %v1080
  %v1414 = vmul.f32 %v1081, %v1081
  %v1415 = vmul.f32 %v1082, %v1082
  %v1416 = vmul.f32 %v1083, %v1083
  %v1417 = vmul.f32 %v1084, %v1084
  %v1418 = vmul.f32 %v1085, %v1085
  %v1419 = vmul.f32 %v1086, %v1086
  %v1420 = vmul.f32 %v1087, %v1087
  %v1421 = vmul.f32 %v1088, %v1088
  %v1422 = vmul.f32 %v1089, %v1089
  %v1423 = vmul.f32 %v1090, %v1090
  %v1424 = vmul.f32 %v1091, %v1091
  %v1425 = vmul.f32 %v1092, %v1092
  %v1426 = vmul.f32 %v1093, %v1093
  %v1427 = vmul.f32 %v1094, %v1094
  %v1428 = vmul.f32 %v1095, %v1095
  %v1429 = vmul.f32 %v1096, %v1096
  %v1430 = vmul.f32 %v1097, %v1097
  %v1431 = vmul.f32 %v1098, %v1098
  %v1432 = vmul.f32 %v1099, %v1099
  %v1433 = vmul.f32 %v1100, %v1100
  %v1434 = vmul.f32 %v1101, %v1101
  %v1435 = vmul.f32 %v1102, %v1102
  %v1436 = vmul.f32 %v1103, %v1103
  %v1437 = vmul.f32 %v1104, %v1104
  %v1438 = vmul.f32 %v1105, %v1105
  %v1439 = vmul.f32 %v1106, %v1106
  %v1440 = vmul.f32 %v1107, %v1107
  %v1441 = vmul.f32 %v1108, %v1108
  %v1442 = vmul.f32 %v1109, %v1109
  %v1443 = vmul.f32 %v1110, %v1110
  %v1444 = vmul.f32 %v1111, %v1111
  %v1445 = vmul.f32 %v1112, %v1112
  %v1446 = vmul.f32 %v1113, %v1113
  %v1447 = vmul.f32 %v1114, %v1114
  %v1448 = vmul.f32 %v1115, %v1115
  %v1449 = vmul.f32 %v1116, %v1116
  %v1450 = vmul.f32 %v1117, %v1117
  %v1451 = vmul.f32 %v1118, %v1118
  %v1452 = vmul.f32 %v1119, %v1119
  %v1453 = vmul.f32 %v1120, %v1120
  %v1454 = vmul.f32 %v1121, %v1121
  %v1455 = vmul.f32 %v1122, %v1122
  %v1456 = vmul.f32 %v1123, %v1123
  %v1457 = vmul.f32 %v1124, %v1124
  %v1458 = vmul.f32 %v1125, %v1125
  %v1459 = vmul.f32 %v1126, %v1126
  %v1460 = vmul.f32 %v1127, %v1127
  %v1461 = vmul.f32 %v1128, %v1128
  %v1462 = vmul.f32 %v1129, %v1129
  %v1463 = vmul.f32 %v1130, %v1130
  %v1464 = vmul.f32 %v1131, %v1131
  %v1465 = vmul.f32 %v1132, %v1132
  %v1466 = vmul.f32 %v1133, %v1133
  %v1467 = vmul.f32 %v1134, %v1134
  %v1468 = vmul.f32 %v1135, %v1135
  %1469 = vmatprep.subr.mxu0 0.0
  %1470 = vmatpush1.msra.mxu0 %v1373
  %1471 = vmatprep.subr.mxu0 0.0
  %1472 = vmatpush1.msra.mxu0 %v1374
  %1473 = vmatprep.subr.mxu0 0.0
  %1474 = vmatpush1.msra.mxu0 %v1375
  %1475 = vmatprep.subr.mxu0 0.0
  %1476 = vmatpush1.msra.mxu0 %v1376
  %1477 = vmatprep.subr.mxu0 0.0
  %1478 = vmatpush1.msra.mxu0 %v1377
  %1479 = vmatprep.subr.mxu0 0.0
  %1480 = vmatpush1.msra.mxu0 %v1378
  %1481 = vmatprep.subr.mxu0 0.0
  %1482 = vmatpush1.msra.mxu0 %v1379
  %1483 = vmatprep.subr.mxu0 0.0
  %1484 = vmatpush1.msra.mxu0 %v1380
  %1485 = vmatprep.subr.mxu0 0.0
  %1486 = vmatpush1.msra.mxu0 %v1381
  %1487 = vmatprep.subr.mxu0 0.0
  %1488 = vmatpush1.msra.mxu0 %v1382
  %1489 = vmatprep.subr.mxu0 0.0
  %1490 = vmatpush1.msra.mxu0 %v1383
  %1491 = vmatprep.subr.mxu0 0.0
  %1492 = vmatpush1.msra.mxu0 %v1384
  %1493 = vmatprep.subr.mxu0 0.0
  %1494 = vmatpush1.msra.mxu0 %v1385
  %1495 = vmatprep.subr.mxu0 0.0
  %1496 = vmatpush1.msra.mxu0 %v1386
  %1497 = vmatprep.subr.mxu0 0.0
  %1498 = vmatpush1.msra.mxu0 %v1387
  %1499 = vmatprep.subr.mxu0 0.0
  %1500 = vmatpush1.msra.mxu0 %v1388
  %1501 = vmatprep.subr.mxu0 0.0
  %1502 = vmatpush1.msra.mxu0 %v1389
  %1503 = vmatprep.subr.mxu0 0.0
  %1504 = vmatpush1.msra.mxu0 %v1390
  %1505 = vmatprep.subr.mxu0 0.0
  %1506 = vmatpush1.msra.mxu0 %v1391
  %1507 = vmatprep.subr.mxu0 0.0
  %1508 = vmatpush1.msra.mxu0 %v1392
  %1509 = vmatprep.subr.mxu0 0.0
  %1510 = vmatpush1.msra.mxu0 %v1393
  %1511 = vmatprep.subr.mxu0 0.0
  %1512 = vmatpush1.msra.mxu0 %v1394
  %1513 = vmatprep.subr.mxu0 0.0
  %1514 = vmatpush1.msra.mxu0 %v1395
  %1515 = vmatprep.subr.mxu0 0.0
  %1516 = vmatpush1.msra.mxu0 %v1396
  %1517 = vmatprep.subr.mxu0 0.0
  %1518 = vmatpush1.msra.mxu0 %v1397
  %1519 = vmatprep.subr.mxu0 0.0
  %1520 = vmatpush1.msra.mxu0 %v1398
  %1521 = vmatprep.subr.mxu0 0.0
  %1522 = vmatpush1.msra.mxu0 %v1399
  %1523 = vmatprep.subr.mxu0 0.0
  %1524 = vmatpush1.msra.mxu0 %v1400
  %1525 = vmatprep.subr.mxu0 0.0
  %1526 = vmatpush1.msra.mxu0 %v1401
  %1527 = vmatprep.subr.mxu0 0.0
  %1528 = vmatpush1.msra.mxu0 %v1402
  %1529 = vmatprep.subr.mxu0 0.0
  %1530 = vmatpush1.msra.mxu0 %v1403
  %1531 = vmatprep.subr.mxu0 0.0
  %1532 = vmatpush1.msra.mxu0 %v1404
  %1533 = vmatprep.mubr.f32.mxu0 %v1137
  %1534 = vmatmul.mubr.f32.gmra.mrb[0].mxu0 %v1136
  %v1535 = vpop.f32.mrb[0].mxu0
  %v1536 = vadd.f32 0.0, %v1535
  %v1537 = vpop.f32.mrb[0].mxu0
  %1538 = vmatprep.mubr.f32.mxu0 %v1143
  %1539 = vmatmul.mubr.f32.gmra.mrb[0].mxu0 %v1142
  %v1540 = vpop.f32.mrb[0].mxu0
  %v1541 = vadd.f32 0.0, %v1540
  %v1542 = vpop.f32.mrb[0].mxu0
  %1543 = vdwg.mxu0
  %1544 = vmatprep.subr.mxu0 0.0
  %1545 = vmatpush1.msra.mxu0 %v1405
  %1546 = vmatprep.subr.mxu0 0.0
  %1547 = vmatpush1.msra.mxu0 %v1406
  %1548 = vmatprep.subr.mxu0 0.0
  %1549 = vmatpush1.msra.mxu0 %v1407
  %1550 = vmatprep.subr.mxu0 0.0
  %1551 = vmatpush1.msra.mxu0 %v1408
  %1552 = vmatprep.subr.mxu0 0.0
  %1553 = vmatpush1.msra.mxu0 %v1409
  %1554 = vmatprep.subr.mxu0 0.0
  %1555 = vmatpush1.msra.mxu0 %v1410
  %1556 = vmatprep.subr.mxu0 0.0
  %1557 = vmatpush1.msra.mxu0 %v1411
  %1558 = vmatprep.subr.mxu0 0.0
  %1559 = vmatpush1.msra.mxu0 %v1412
  %1560 = vmatprep.subr.mxu0 0.0
  %1561 = vmatpush1.msra.mxu0 %v1413
  %1562 = vmatprep.subr.mxu0 0.0
  %1563 = vmatpush1.msra.mxu0 %v1414
  %1564 = vmatprep.subr.mxu0 0.0
  %1565 = vmatpush1.msra.mxu0 %v1415
  %1566 = vmatprep.subr.mxu0 0.0
  %1567 = vmatpush1.msra.mxu0 %v1416
  %1568 = vmatprep.subr.mxu0 0.0
  %1569 = vmatpush1.msra.mxu0 %v1417
  %1570 = vmatprep.subr.mxu0 0.0
  %1571 = vmatpush1.msra.mxu0 %v1418
  %1572 = vmatprep.subr.mxu0 0.0
  %1573 = vmatpush1.msra.mxu0 %v1419
  %1574 = vmatprep.subr.mxu0 0.0
  %1575 = vmatpush1.msra.mxu0 %v1420
  %1576 = vmatprep.subr.mxu0 0.0
  %1577 = vmatpush1.msra.mxu0 %v1421
  %1578 = vmatprep.subr.mxu0 0.0
  %1579 = vmatpush1.msra.mxu0 %v1422
  %1580 = vmatprep.subr.mxu0 0.0
  %1581 = vmatpush1.msra.mxu0 %v1423
  %1582 = vmatprep.subr.mxu0 0.0
  %1583 = vmatpush1.msra.mxu0 %v1424
  %1584 = vmatprep.subr.mxu0 0.0
  %1585 = vmatpush1.msra.mxu0 %v1425
  %1586 = vmatprep.subr.mxu0 0.0
  %1587 = vmatpush1.msra.mxu0 %v1426
  %1588 = vmatprep.subr.mxu0 0.0
  %1589 = vmatpush1.msra.mxu0 %v1427
  %1590 = vmatprep.subr.mxu0 0.0
  %1591 = vmatpush1.msra.mxu0 %v1428
  %1592 = vmatprep.subr.mxu0 0.0
  %1593 = vmatpush1.msra.mxu0 %v1429
  %1594 = vmatprep.subr.mxu0 0.0
  %1595 = vmatpush1.msra.mxu0 %v1430
  %1596 = vmatprep.subr.mxu0 0.0
  %1597 = vmatpush1.msra.mxu0 %v1431
  %1598 = vmatprep.subr.mxu0 0.0
  %1599 = vmatpush1.msra.mxu0 %v1432
  %1600 = vmatprep.subr.mxu0 0.0
  %1601 = vmatpush1.msra.mxu0 %v1433
  %1602 = vmatprep.subr.mxu0 0.0
  %1603 = vmatpush1.msra.mxu0 %v1434
  %1604 = vmatprep.subr.mxu0 0.0
  %1605 = vmatpush1.msra.mxu0 %v1435
  %1606 = vmatprep.subr.mxu0 0.0
  %1607 = vmatpush1.msra.mxu0 %v1436
  %1608 = vmatprep.mubr.f32.mxu0 %v1139
  %1609 = vmatmul.mubr.f32.gmra.mrb[0].mxu0 %v1138
  %v1610 = vpop.f32.mrb[0].mxu0
  %v1611 = vadd.f32 %v1536, %v1610
  %v1612 = vpop.f32.mrb[0].mxu0
  %1613 = vmatprep.mubr.f32.mxu0 %v1145
  %1614 = vmatmul.mubr.f32.gmra.mrb[0].mxu0 %v1144
  %v1615 = vpop.f32.mrb[0].mxu0
  %v1616 = vadd.f32 %v1541, %v1615
  %v1617 = vpop.f32.mrb[0].mxu0
  %1618 = vdwg.mxu0
  %1619 = vmatprep.subr.mxu0 0.0
  %1620 = vmatpush1.msra.mxu0 %v1437
  %1621 = vmatprep.subr.mxu0 0.0
  %1622 = vmatpush1.msra.mxu0 %v1438
  %1623 = vmatprep.subr.mxu0 0.0
  %1624 = vmatpush1.msra.mxu0 %v1439
  %1625 = vmatprep.subr.mxu0 0.0
  %1626 = vmatpush1.msra.mxu0 %v1440
  %1627 = vmatprep.subr.mxu0 0.0
  %1628 = vmatpush1.msra.mxu0 %v1441
  %1629 = vmatprep.subr.mxu0 0.0
  %1630 = vmatpush1.msra.mxu0 %v1442
  %1631 = vmatprep.subr.mxu0 0.0
  %1632 = vmatpush1.msra.mxu0 %v1443
  %1633 = vmatprep.subr.mxu0 0.0
  %1634 = vmatpush1.msra.mxu0 %v1444
  %1635 = vmatprep.subr.mxu0 0.0
  %1636 = vmatpush1.msra.mxu0 %v1445
  %1637 = vmatprep.subr.mxu0 0.0
  %1638 = vmatpush1.msra.mxu0 %v1446
  %1639 = vmatprep.subr.mxu0 0.0
  %1640 = vmatpush1.msra.mxu0 %v1447
  %1641 = vmatprep.subr.mxu0 0.0
  %1642 = vmatpush1.msra.mxu0 %v1448
  %1643 = vmatprep.subr.mxu0 0.0
  %1644 = vmatpush1.msra.mxu0 %v1449
  %1645 = vmatprep.subr.mxu0 0.0
  %1646 = vmatpush1.msra.mxu0 %v1450
  %1647 = vmatprep.subr.mxu0 0.0
  %1648 = vmatpush1.msra.mxu0 %v1451
  %1649 = vmatprep.subr.mxu0 0.0
  %1650 = vmatpush1.msra.mxu0 %v1452
  %1651 = vmatprep.subr.mxu0 0.0
  %1652 = vmatpush1.msra.mxu0 %v1453
  %1653 = vmatprep.subr.mxu0 0.0
  %1654 = vmatpush1.msra.mxu0 %v1454
  %1655 = vmatprep.subr.mxu0 0.0
  %1656 = vmatpush1.msra.mxu0 %v1455
  %1657 = vmatprep.subr.mxu0 0.0
  %1658 = vmatpush1.msra.mxu0 %v1456
  %1659 = vmatprep.subr.mxu0 0.0
  %1660 = vmatpush1.msra.mxu0 %v1457
  %1661 = vmatprep.subr.mxu0 0.0
  %1662 = vmatpush1.msra.mxu0 %v1458
  %1663 = vmatprep.subr.mxu0 0.0
  %1664 = vmatpush1.msra.mxu0 %v1459
  %1665 = vmatprep.subr.mxu0 0.0
  %1666 = vmatpush1.msra.mxu0 %v1460
  %1667 = vmatprep.subr.mxu0 0.0
  %1668 = vmatpush1.msra.mxu0 %v1461
  %1669 = vmatprep.subr.mxu0 0.0
  %1670 = vmatpush1.msra.mxu0 %v1462
  %1671 = vmatprep.subr.mxu0 0.0
  %1672 = vmatpush1.msra.mxu0 %v1463
  %1673 = vmatprep.subr.mxu0 0.0
  %1674 = vmatpush1.msra.mxu0 %v1464
  %1675 = vmatprep.subr.mxu0 0.0
  %1676 = vmatpush1.msra.mxu0 %v1465
  %1677 = vmatprep.subr.mxu0 0.0
  %1678 = vmatpush1.msra.mxu0 %v1466
  %1679 = vmatprep.subr.mxu0 0.0
  %1680 = vmatpush1.msra.mxu0 %v1467
  %1681 = vmatprep.subr.mxu0 0.0
  %1682 = vmatpush1.msra.mxu0 %v1468
  %1683 = vmatprep.mubr.f32.mxu0 %v1141
  %1684 = vmatmul.mubr.f32.gmra.mrb[0].mxu0 %v1140
  %v1685 = vpop.f32.mrb[0].mxu0
  %v1686 = vadd.f32 %v1611, %v1685
  %v1687 = vpop.f32.mrb[0].mxu0
  %1688 = vmatprep.mubr.f32.mxu0 %v1147
  %1689 = vmatmul.mubr.f32.gmra.mrb[0].mxu0 %v1146
  %v1690 = vpop.f32.mrb[0].mxu0
  %v1691 = vadd.f32 %v1616, %v1690
  %v1692 = vpop.f32.mrb[0].mxu0
  %1693 = vdwg.mxu0
  %v1694 = vmul.f32 %v1365, %v1365
  %v1695 = vmul.f32 %v1370, %v1370
  %v1696 = vsub.f32 %v1686, %v1694
  %v1697 = vsub.f32 %v1691, %v1695
  %v1698 = vmax.f32 %v1696, 0.0
  %v1699 = vmax.f32 %v1697, 0.0
  %1700 = vst [vmem:[%s4] sm:$0xff] %v1365
  %1701 = vst [vmem:[%s4 + $0x8] sm:$0xff] %v1370
  %s1702 = scalar_lea.vmem %s4, 16
  %1703 = vst [vmem:[%s1702] sm:$0xff] %v1698
  %1704 = vst [vmem:[%s1702 + $0x8] sm:$0xff] %v1699
  // Predicated region
  $region18: #{tigranet_forward.6} parent=0 // pred_check
    _
  $region19: #{tigranet_forward.6} parent=0 // pred_check_branch
    %1706 = sbr.rel (0) target = $region21
  $region20: #{tigranet_forward.6} parent=0 // pred_region
    _
  $region21: #{tigranet_forward.6} parent=0 // pred_fallthru
    _
  // Predicated region
  $region22: #{tigranet_forward.6} parent=0 // pred_check
    _
  $region23: #{tigranet_forward.6} parent=0 // pred_check_branch
    %1708 = sbr.rel (0) target = $region25
  $region24: #{tigranet_forward.6} parent=0 // pred_region
    _
  $region25: #{tigranet_forward.6} parent=0 // pred_fallthru
    _

// kernel: tigranet_forward.4
$region0: #{tigranet_forward.4}
  #allocation0 [shape = 'u32[]', space=smem, size = 0x4, offset = 0x4, fixed_abs, tag = 'smem constant byte address 0x4 - core index']
  #allocation1 [shape = 'u32[144,128]{1,0:T(1,128)}', space=vmem, size = 0x12000, scoped, tag = 'internal scratch']
  #allocation2 [shape = 'bf16[512,128]{1,0:T(16,128)(2,1)}', space=vmem, size = 0x20000, scoped, tag = 'scratch operand']
  %s0 = inlined_call_operand.vmem [shape: bf16[512,64], index: 0, kind: input, shape index: {}]
  %s1 = inlined_call_operand.vmem [shape: f32[64,128], index: 1, kind: input, shape index: {}]
  %s2 = inlined_call_operand.vmem [shape: bf16[8,128,128], index: 2, kind: input, shape index: {}]
  %s3 = inlined_call_operand.vmem [shape: f32[1,128], index: 3, kind: input, shape index: {}]
  %s4 = inlined_call_operand.vmem [shape: f32[64,128], index: 4, kind: input, shape index: {}]
  %s5 = inlined_call_operand.vmem [shape: f32[64,128], index: 5, kind: output, shape index: {}]
  %s6 = sld [smem:[#allocation0]]
  $region30: #{tigranet_forward.4} parent=0
    _
  %s8 = ssub.s32 1, %s6
  %s9 = scalar_select 0, %s8, %s6
  // Predicated region
  $region2: #{tigranet_forward.4} parent=0 // pred_check
    _
  $region3: #{tigranet_forward.4} parent=0 // pred_check_branch
    %11 = sbr.rel (0) target = $region5
  $region4: #{tigranet_forward.4} parent=0 // pred_region
    _
  $region5: #{tigranet_forward.4} parent=0 // pred_fallthru
    _
  // Predicated region
  $region6: #{tigranet_forward.4} parent=0 // pred_check
    _
  $region7: #{tigranet_forward.4} parent=0 // pred_check_branch
    %13 = sbr.rel (0) target = $region9
  $region8: #{tigranet_forward.4} parent=0 // pred_region
    _
  $region9: #{tigranet_forward.4} parent=0 // pred_fallthru
    _
  // Predicated region
  $region10: #{tigranet_forward.4} parent=0 // pred_check
    _
  $region11: #{tigranet_forward.4} parent=0 // pred_check_branch
    %15 = sbr.rel (0) target = $region13
  $region12: #{tigranet_forward.4} parent=0 // pred_region
    _
  $region13: #{tigranet_forward.4} parent=0 // pred_fallthru
    _
  // Predicated region
  $region14: #{tigranet_forward.4} parent=0 // pred_check
    _
  $region15: #{tigranet_forward.4} parent=0 // pred_check_branch
    %17 = sbr.rel (0) target = $region17
  $region16: #{tigranet_forward.4} parent=0 // pred_region
    _
  $region17: #{tigranet_forward.4} parent=0 // pred_fallthru
    _
  // Predicated region
  $region18: #{tigranet_forward.4} parent=0 // pred_check
    _
  $region19: #{tigranet_forward.4} parent=0 // pred_check_branch
    %19 = sbr.rel (0) target = $region21
  $region20: #{tigranet_forward.4} parent=0 // pred_region
    _
  $region21: #{tigranet_forward.4} parent=0 // pred_fallthru
    _
  %v21 = vld [vmem:[%s1] sm:$0xff]
  %v22 = vld [vmem:[%s1 + $0x8] sm:$0xff]
  %v23 = vld [vmem:[%s1 + $0x10] sm:$0xff]
  %v24 = vld [vmem:[%s1 + $0x18] sm:$0xff]
  %v25 = vld [vmem:[%s1 + $0x20] sm:$0xff]
  %v26 = vld [vmem:[%s1 + $0x28] sm:$0xff]
  %v27 = vld [vmem:[%s1 + $0x30] sm:$0xff]
  %v28 = vld [vmem:[%s1 + $0x38] sm:$0xff]
  %v29 = vpack.c.bf16 %v22, %v21
  %v30 = vpack.c.bf16 %v24, %v23
  %v31 = vpack.c.bf16 %v26, %v25
  %v32 = vpack.c.bf16 %v28, %v27
  %v33 = vld [vmem:[%s0] sm:$0xf]
  %v34 = vld [vmem:[%s0 + $0x4] sm:$0xf]
  %v35 = vld [vmem:[%s0 + $0x8] sm:$0xf]
  %v36 = vld [vmem:[%s0 + $0xc] sm:$0xf]
  %v37 = vld [vmem:[%s0 + $0x10] sm:$0xf]
  %v38 = vld [vmem:[%s0 + $0x14] sm:$0xf]
  %v39 = vld [vmem:[%s0 + $0x18] sm:$0xf]
  %v40 = vld [vmem:[%s0 + $0x1c] sm:$0xf]
  %v41 = vld [vmem:[%s0 + $0x20] sm:$0xf]
  %v42 = vld [vmem:[%s0 + $0x24] sm:$0xf]
  %v43 = vld [vmem:[%s0 + $0x28] sm:$0xf]
  %v44 = vld [vmem:[%s0 + $0x2c] sm:$0xf]
  %v45 = vld [vmem:[%s0 + $0x30] sm:$0xf]
  %v46 = vld [vmem:[%s0 + $0x34] sm:$0xf]
  %v47 = vld [vmem:[%s0 + $0x38] sm:$0xf]
  %v48 = vld [vmem:[%s0 + $0x3c] sm:$0xf]
  %v49 = vld [vmem:[%s0 + $0x40] sm:$0xf]
  %v50 = vld [vmem:[%s0 + $0x44] sm:$0xf]
  %v51 = vld [vmem:[%s0 + $0x48] sm:$0xf]
  %v52 = vld [vmem:[%s0 + $0x4c] sm:$0xf]
  %v53 = vld [vmem:[%s0 + $0x50] sm:$0xf]
  %v54 = vld [vmem:[%s0 + $0x54] sm:$0xf]
  %v55 = vld [vmem:[%s0 + $0x58] sm:$0xf]
  %v56 = vld [vmem:[%s0 + $0x5c] sm:$0xf]
  %v57 = vld [vmem:[%s0 + $0x60] sm:$0xf]
  %v58 = vld [vmem:[%s0 + $0x64] sm:$0xf]
  %v59 = vld [vmem:[%s0 + $0x68] sm:$0xf]
  %v60 = vld [vmem:[%s0 + $0x6c] sm:$0xf]
  %v61 = vld [vmem:[%s0 + $0x70] sm:$0xf]
  %v62 = vld [vmem:[%s0 + $0x74] sm:$0xf]
  %v63 = vld [vmem:[%s0 + $0x78] sm:$0xf]
  %v64 = vld [vmem:[%s0 + $0x7c] sm:$0xf]
  %v65 = vld [vmem:[%s0 + $0x80] sm:$0xf]
  %v66 = vld [vmem:[%s0 + $0x84] sm:$0xf]
  %v67 = vld [vmem:[%s0 + $0x88] sm:$0xf]
  %v68 = vld [vmem:[%s0 + $0x8c] sm:$0xf]
  %v69 = vld [vmem:[%s0 + $0x90] sm:$0xf]
  %v70 = vld [vmem:[%s0 + $0x94] sm:$0xf]
  %v71 = vld [vmem:[%s0 + $0x98] sm:$0xf]
  %v72 = vld [vmem:[%s0 + $0x9c] sm:$0xf]
  %v73 = vld [vmem:[%s0 + $0xa0] sm:$0xf]
  %v74 = vld [vmem:[%s0 + $0xa4] sm:$0xf]
  %v75 = vld [vmem:[%s0 + $0xa8] sm:$0xf]
  %v76 = vld [vmem:[%s0 + $0xac] sm:$0xf]
  %v77 = vld [vmem:[%s0 + $0xb0] sm:$0xf]
  %v78 = vld [vmem:[%s0 + $0xb4] sm:$0xf]
  %v79 = vld [vmem:[%s0 + $0xb8] sm:$0xf]
  %v80 = vld [vmem:[%s0 + $0xbc] sm:$0xf]
  %v81 = vld [vmem:[%s0 + $0xc0] sm:$0xf]
  %v82 = vld [vmem:[%s0 + $0xc4] sm:$0xf]
  %v83 = vld [vmem:[%s0 + $0xc8] sm:$0xf]
  %v84 = vld [vmem:[%s0 + $0xcc] sm:$0xf]
  %v85 = vld [vmem:[%s0 + $0xd0] sm:$0xf]
  %v86 = vld [vmem:[%s0 + $0xd4] sm:$0xf]
  %v87 = vld [vmem:[%s0 + $0xd8] sm:$0xf]
  %v88 = vld [vmem:[%s0 + $0xdc] sm:$0xf]
  %v89 = vld [vmem:[%s0 + $0xe0] sm:$0xf]
  %v90 = vld [vmem:[%s0 + $0xe4] sm:$0xf]
  %v91 = vld [vmem:[%s0 + $0xe8] sm:$0xf]
  %v92 = vld [vmem:[%s0 + $0xec] sm:$0xf]
  %v93 = vld [vmem:[%s0 + $0xf0] sm:$0xf]
  %v94 = vld [vmem:[%s0 + $0xf4] sm:$0xf]
  %v95 = vld [vmem:[%s0 + $0xf8] sm:$0xf]
  %v96 = vld [vmem:[%s0 + $0xfc] sm:$0xf]
  %v161 = vunpack.c.l.b16 %v33
  %v162 = vunpack.c.l.b16 %v34
  %v163 = vunpack.c.l.b16 %v35
  %v164 = vunpack.c.l.b16 %v36
  %v165 = vunpack.c.l.b16 %v37
  %v166 = vunpack.c.l.b16 %v38
  %v167 = vunpack.c.l.b16 %v39
  %v168 = vunpack.c.l.b16 %v40
  %v169 = vunpack.c.l.b16 %v41
  %v170 = vunpack.c.l.b16 %v42
  %v171 = vunpack.c.l.b16 %v43
  %v172 = vunpack.c.l.b16 %v44
  %v173 = vunpack.c.l.b16 %v45
  %v174 = vunpack.c.l.b16 %v46
  %v175 = vunpack.c.l.b16 %v47
  %v176 = vunpack.c.l.b16 %v48
  %v177 = vunpack.c.l.b16 %v49
  %v178 = vunpack.c.l.b16 %v50
  %v179 = vunpack.c.l.b16 %v51
  %v180 = vunpack.c.l.b16 %v52
  %v181 = vunpack.c.l.b16 %v53
  %v182 = vunpack.c.l.b16 %v54
  %v183 = vunpack.c.l.b16 %v55
  %v184 = vunpack.c.l.b16 %v56
  %v185 = vunpack.c.l.b16 %v57
  %v186 = vunpack.c.l.b16 %v58
  %v187 = vunpack.c.l.b16 %v59
  %v188 = vunpack.c.l.b16 %v60
  %v189 = vunpack.c.l.b16 %v61
  %v190 = vunpack.c.l.b16 %v62
  %v191 = vunpack.c.l.b16 %v63
  %v192 = vunpack.c.l.b16 %v64
  %v193 = vunpack.c.l.b16 %v65
  %v194 = vunpack.c.l.b16 %v66
  %v195 = vunpack.c.l.b16 %v67
  %v196 = vunpack.c.l.b16 %v68
  %v197 = vunpack.c.l.b16 %v69
  %v198 = vunpack.c.l.b16 %v70
  %v199 = vunpack.c.l.b16 %v71
  %v200 = vunpack.c.l.b16 %v72
  %v201 = vunpack.c.l.b16 %v73
  %v202 = vunpack.c.l.b16 %v74
  %v203 = vunpack.c.l.b16 %v75
  %v204 = vunpack.c.l.b16 %v76
  %v205 = vunpack.c.l.b16 %v77
  %v206 = vunpack.c.l.b16 %v78
  %v207 = vunpack.c.l.b16 %v79
  %v208 = vunpack.c.l.b16 %v80
  %v209 = vunpack.c.l.b16 %v81
  %v210 = vunpack.c.l.b16 %v82
  %v211 = vunpack.c.l.b16 %v83
  %v212 = vunpack.c.l.b16 %v84
  %v213 = vunpack.c.l.b16 %v85
  %v214 = vunpack.c.l.b16 %v86
  %v215 = vunpack.c.l.b16 %v87
  %v216 = vunpack.c.l.b16 %v88
  %v217 = vunpack.c.l.b16 %v89
  %v218 = vunpack.c.l.b16 %v90
  %v219 = vunpack.c.l.b16 %v91
  %v220 = vunpack.c.l.b16 %v92
  %v221 = vunpack.c.l.b16 %v93
  %v222 = vunpack.c.l.b16 %v94
  %v223 = vunpack.c.l.b16 %v95
  %v224 = vunpack.c.l.b16 %v96
  %v225 = vpack.c.b16 %v162, %v161
  %v226 = vpack.c.b16 %v164, %v163
  %v227 = vpack.c.b16 %v166, %v165
  %v228 = vpack.c.b16 %v168, %v167
  %v229 = vpack.c.b16 %v170, %v169
  %v230 = vpack.c.b16 %v172, %v171
  %v231 = vpack.c.b16 %v174, %v173
  %v232 = vpack.c.b16 %v176, %v175
  %v233 = vpack.c.b16 %v178, %v177
  %v234 = vpack.c.b16 %v180, %v179
  %v235 = vpack.c.b16 %v182, %v181
  %v236 = vpack.c.b16 %v184, %v183
  %v237 = vpack.c.b16 %v186, %v185
  %v238 = vpack.c.b16 %v188, %v187
  %v239 = vpack.c.b16 %v190, %v189
  %v240 = vpack.c.b16 %v192, %v191
  %v241 = vpack.c.b16 %v194, %v193
  %v242 = vpack.c.b16 %v196, %v195
  %v243 = vpack.c.b16 %v198, %v197
  %v244 = vpack.c.b16 %v200, %v199
  %v245 = vpack.c.b16 %v202, %v201
  %v246 = vpack.c.b16 %v204, %v203
  %v247 = vpack.c.b16 %v206, %v205
  %v248 = vpack.c.b16 %v208, %v207
  %v249 = vpack.c.b16 %v210, %v209
  %v250 = vpack.c.b16 %v212, %v211
  %v251 = vpack.c.b16 %v214, %v213
  %v252 = vpack.c.b16 %v216, %v215
  %v253 = vpack.c.b16 %v218, %v217
  %v254 = vpack.c.b16 %v220, %v219
  %v255 = vpack.c.b16 %v222, %v221
  %v256 = vpack.c.b16 %v224, %v223
  %vm257 = vcmask 523264
  %v259 = vsel %vm257, %v225, 0
  %v262 = vsel %vm257, %v226, 0
  %v265 = vsel %vm257, %v227, 0
  %v268 = vsel %vm257, %v228, 0
  %v271 = vsel %vm257, %v229, 0
  %v274 = vsel %vm257, %v230, 0
  %v277 = vsel %vm257, %v231, 0
  %v280 = vsel %vm257, %v232, 0
  %v283 = vsel %vm257, %v233, 0
  %v286 = vsel %vm257, %v234, 0
  %v289 = vsel %vm257, %v235, 0
  %v292 = vsel %vm257, %v236, 0
  %v295 = vsel %vm257, %v237, 0
  %v298 = vsel %vm257, %v238, 0
  %v301 = vsel %vm257, %v239, 0
  %v304 = vsel %vm257, %v240, 0
  %v307 = vsel %vm257, %v241, 0
  %v310 = vsel %vm257, %v242, 0
  %v313 = vsel %vm257, %v243, 0
  %v316 = vsel %vm257, %v244, 0
  %v319 = vsel %vm257, %v245, 0
  %v322 = vsel %vm257, %v246, 0
  %v325 = vsel %vm257, %v247, 0
  %v328 = vsel %vm257, %v248, 0
  %v331 = vsel %vm257, %v249, 0
  %v334 = vsel %vm257, %v250, 0
  %v337 = vsel %vm257, %v251, 0
  %v340 = vsel %vm257, %v252, 0
  %v343 = vsel %vm257, %v253, 0
  %v346 = vsel %vm257, %v254, 0
  %v349 = vsel %vm257, %v255, 0
  %v352 = vsel %vm257, %v256, 0
  %354 = vmatprep.subr.bf16.mxu0 0
  %355 = vmatpush1.bf16.msra.mxu0 %v29
  %356 = vmatprep.subr.bf16.mxu0 0
  %357 = vmatpush1.bf16.msra.mxu0 %v30
  %358 = vmatprep.subr.bf16.mxu0 0
  %359 = vmatpush1.bf16.msra.mxu0 %v31
  %360 = vmatprep.subr.bf16.mxu0 0
  %361 = vmatpush1.bf16.msra.mxu0 %v32
  %362 = vmatprep.subr.bf16.mxu0 0
  %363 = vmatpush1.bf16.msra.mxu0 0
  %364 = vmatprep.subr.bf16.mxu0 0
  %365 = vmatpush1.bf16.msra.mxu0 0
  %366 = vmatprep.subr.bf16.mxu0 0
  %367 = vmatpush1.bf16.msra.mxu0 0
  %368 = vmatprep.subr.bf16.mxu0 0
  %369 = vmatpush1.bf16.msra.mxu0 0
  %370 = vmatprep.subr.bf16.mxu0 0
  %371 = vmatpush1.bf16.msra.mxu0 0
  %372 = vmatprep.subr.bf16.mxu0 0
  %373 = vmatpush1.bf16.msra.mxu0 0
  %374 = vmatprep.subr.bf16.mxu0 0
  %375 = vmatpush1.bf16.msra.mxu0 0
  %376 = vmatprep.subr.bf16.mxu0 0
  %377 = vmatpush1.bf16.msra.mxu0 0
  %378 = vmatprep.subr.bf16.mxu0 0
  %379 = vmatpush1.bf16.msra.mxu0 0
  %380 = vmatprep.subr.bf16.mxu0 0
  %381 = vmatpush1.bf16.msra.mxu0 0
  %382 = vmatprep.subr.bf16.mxu0 0
  %383 = vmatpush1.bf16.msra.mxu0 0
  %384 = vmatprep.subr.bf16.mxu0 0
  %385 = vmatpush1.bf16.msra.mxu0 0
  %386 = vmatprep.mubr.bf16.mxu0 0
  %387 = vmatmul.mubr.bf16.gmra.mrb[0].mxu0 %v259
  %v388 = vpop.f32.mrb[0].mxu0
  %v389 = vadd.f32 0.0, %v388
  %v390 = vpop.f32.mrb[0].mxu0
  %v391 = vpop.f32.mrb[0].mxu0
  %v392 = vadd.f32 0.0, %v391
  %v393 = vpop.f32.mrb[0].mxu0
  %394 = vmatprep.mubr.bf16.mxu0 0
  %395 = vmatmul.mubr.bf16.gmra.mrb[0].mxu0 %v262
  %v396 = vpop.f32.mrb[0].mxu0
  %v397 = vadd.f32 0.0, %v396
  %v398 = vpop.f32.mrb[0].mxu0
  %v399 = vpop.f32.mrb[0].mxu0
  %v400 = vadd.f32 0.0, %v399
  %v401 = vpop.f32.mrb[0].mxu0
  %402 = vmatprep.mubr.bf16.mxu0 0
  %403 = vmatmul.mubr.bf16.gmra.mrb[0].mxu0 %v265
  %v404 = vpop.f32.mrb[0].mxu0
  %v405 = vadd.f32 0.0, %v404
  %v406 = vpop.f32.mrb[0].mxu0
  %v407 = vpop.f32.mrb[0].mxu0
  %v408 = vadd.f32 0.0, %v407
  %v409 = vpop.f32.mrb[0].mxu0
  %410 = vmatprep.mubr.bf16.mxu0 0
  %411 = vmatmul.mubr.bf16.gmra.mrb[0].mxu0 %v268
  %v412 = vpop.f32.mrb[0].mxu0
  %v413 = vadd.f32 0.0, %v412
  %v414 = vpop.f32.mrb[0].mxu0
  %v415 = vpop.f32.mrb[0].mxu0
  %v416 = vadd.f32 0.0, %v415
  %v417 = vpop.f32.mrb[0].mxu0
  %418 = vmatprep.mubr.bf16.mxu0 0
  %419 = vmatmul.mubr.bf16.gmra.mrb[0].mxu0 %v271
  %v420 = vpop.f32.mrb[0].mxu0
  %v421 = vadd.f32 0.0, %v420
  %v422 = vpop.f32.mrb[0].mxu0
  %v423 = vpop.f32.mrb[0].mxu0
  %v424 = vadd.f32 0.0, %v423
  %v425 = vpop.f32.mrb[0].mxu0
  %426 = vmatprep.mubr.bf16.mxu0 0
  %427 = vmatmul.mubr.bf16.gmra.mrb[0].mxu0 %v274
  %v428 = vpop.f32.mrb[0].mxu0
  %v429 = vadd.f32 0.0, %v428
  %v430 = vpop.f32.mrb[0].mxu0
  %v431 = vpop.f32.mrb[0].mxu0
  %v432 = vadd.f32 0.0, %v431
  %v433 = vpop.f32.mrb[0].mxu0
  %434 = vmatprep.mubr.bf16.mxu0 0
  %435 = vmatmul.mubr.bf16.gmra.mrb[0].mxu0 %v277
  %v436 = vpop.f32.mrb[0].mxu0
  %v437 = vadd.f32 0.0, %v436
  %v438 = vpop.f32.mrb[0].mxu0
  %v439 = vpop.f32.mrb[0].mxu0
  %v440 = vadd.f32 0.0, %v439
  %v441 = vpop.f32.mrb[0].mxu0
  %442 = vmatprep.mubr.bf16.mxu0 0
  %443 = vmatmul.mubr.bf16.gmra.mrb[0].mxu0 %v280
  %v444 = vpop.f32.mrb[0].mxu0
  %v445 = vadd.f32 0.0, %v444
  %v446 = vpop.f32.mrb[0].mxu0
  %v447 = vpop.f32.mrb[0].mxu0
  %v448 = vadd.f32 0.0, %v447
  %v449 = vpop.f32.mrb[0].mxu0
  %450 = vmatprep.mubr.bf16.mxu0 0
  %451 = vmatmul.mubr.bf16.gmra.mrb[0].mxu0 %v283
  %v452 = vpop.f32.mrb[0].mxu0
  %v453 = vadd.f32 0.0, %v452
  %v454 = vpop.f32.mrb[0].mxu0
  %v455 = vpop.f32.mrb[0].mxu0
  %v456 = vadd.f32 0.0, %v455
  %v457 = vpop.f32.mrb[0].mxu0
  %458 = vmatprep.mubr.bf16.mxu0 0
  %459 = vmatmul.mubr.bf16.gmra.mrb[0].mxu0 %v286
  %v460 = vpop.f32.mrb[0].mxu0
  %v461 = vadd.f32 0.0, %v460
  %v462 = vpop.f32.mrb[0].mxu0
  %v463 = vpop.f32.mrb[0].mxu0
  %v464 = vadd.f32 0.0, %v463
  %v465 = vpop.f32.mrb[0].mxu0
  %466 = vmatprep.mubr.bf16.mxu0 0
  %467 = vmatmul.mubr.bf16.gmra.mrb[0].mxu0 %v289
  %v468 = vpop.f32.mrb[0].mxu0
  %v469 = vadd.f32 0.0, %v468
  %v470 = vpop.f32.mrb[0].mxu0
  %v471 = vpop.f32.mrb[0].mxu0
  %v472 = vadd.f32 0.0, %v471
  %v473 = vpop.f32.mrb[0].mxu0
  %474 = vmatprep.mubr.bf16.mxu0 0
  %475 = vmatmul.mubr.bf16.gmra.mrb[0].mxu0 %v292
  %v476 = vpop.f32.mrb[0].mxu0
  %v477 = vadd.f32 0.0, %v476
  %v478 = vpop.f32.mrb[0].mxu0
  %v479 = vpop.f32.mrb[0].mxu0
  %v480 = vadd.f32 0.0, %v479
  %v481 = vpop.f32.mrb[0].mxu0
  %482 = vmatprep.mubr.bf16.mxu0 0
  %483 = vmatmul.mubr.bf16.gmra.mrb[0].mxu0 %v295
  %v484 = vpop.f32.mrb[0].mxu0
  %v485 = vadd.f32 0.0, %v484
  %v486 = vpop.f32.mrb[0].mxu0
  %v487 = vpop.f32.mrb[0].mxu0
  %v488 = vadd.f32 0.0, %v487
  %v489 = vpop.f32.mrb[0].mxu0
  %490 = vmatprep.mubr.bf16.mxu0 0
  %491 = vmatmul.mubr.bf16.gmra.mrb[0].mxu0 %v298
  %v492 = vpop.f32.mrb[0].mxu0
  %v493 = vadd.f32 0.0, %v492
  %v494 = vpop.f32.mrb[0].mxu0
  %v495 = vpop.f32.mrb[0].mxu0
  %v496 = vadd.f32 0.0, %v495
  %v497 = vpop.f32.mrb[0].mxu0
  %498 = vmatprep.mubr.bf16.mxu0 0
  %499 = vmatmul.mubr.bf16.gmra.mrb[0].mxu0 %v301
  %v500 = vpop.f32.mrb[0].mxu0
  %v501 = vadd.f32 0.0, %v500
  %v502 = vpop.f32.mrb[0].mxu0
  %v503 = vpop.f32.mrb[0].mxu0
  %v504 = vadd.f32 0.0, %v503
  %v505 = vpop.f32.mrb[0].mxu0
  %506 = vmatprep.mubr.bf16.mxu0 0
  %507 = vmatmul.mubr.bf16.gmra.mrb[0].mxu0 %v304
  %v508 = vpop.f32.mrb[0].mxu0
  %v509 = vadd.f32 0.0, %v508
  %v510 = vpop.f32.mrb[0].mxu0
  %v511 = vpop.f32.mrb[0].mxu0
  %v512 = vadd.f32 0.0, %v511
  %v513 = vpop.f32.mrb[0].mxu0
  %514 = vmatprep.mubr.bf16.mxu0 0
  %515 = vmatmul.mubr.bf16.gmra.mrb[0].mxu0 %v307
  %v516 = vpop.f32.mrb[0].mxu0
  %v517 = vadd.f32 0.0, %v516
  %v518 = vpop.f32.mrb[0].mxu0
  %v519 = vpop.f32.mrb[0].mxu0
  %v520 = vadd.f32 0.0, %v519
  %v521 = vpop.f32.mrb[0].mxu0
  %522 = vmatprep.mubr.bf16.mxu0 0
  %523 = vmatmul.mubr.bf16.gmra.mrb[0].mxu0 %v310
  %v524 = vpop.f32.mrb[0].mxu0
  %v525 = vadd.f32 0.0, %v524
  %v526 = vpop.f32.mrb[0].mxu0
  %v527 = vpop.f32.mrb[0].mxu0
  %v528 = vadd.f32 0.0, %v527
  %v529 = vpop.f32.mrb[0].mxu0
  %530 = vmatprep.mubr.bf16.mxu0 0
  %531 = vmatmul.mubr.bf16.gmra.mrb[0].mxu0 %v313
  %v532 = vpop.f32.mrb[0].mxu0
  %v533 = vadd.f32 0.0, %v532
  %v534 = vpop.f32.mrb[0].mxu0
  %v535 = vpop.f32.mrb[0].mxu0
  %v536 = vadd.f32 0.0, %v535
  %v537 = vpop.f32.mrb[0].mxu0
  %538 = vmatprep.mubr.bf16.mxu0 0
  %539 = vmatmul.mubr.bf16.gmra.mrb[0].mxu0 %v316
  %v540 = vpop.f32.mrb[0].mxu0
  %v541 = vadd.f32 0.0, %v540
  %v542 = vpop.f32.mrb[0].mxu0
  %v543 = vpop.f32.mrb[0].mxu0
  %v544 = vadd.f32 0.0, %v543
  %v545 = vpop.f32.mrb[0].mxu0
  %546 = vmatprep.mubr.bf16.mxu0 0
  %547 = vmatmul.mubr.bf16.gmra.mrb[0].mxu0 %v319
  %v548 = vpop.f32.mrb[0].mxu0
  %v549 = vadd.f32 0.0, %v548
  %v550 = vpop.f32.mrb[0].mxu0
  %v551 = vpop.f32.mrb[0].mxu0
  %v552 = vadd.f32 0.0, %v551
  %v553 = vpop.f32.mrb[0].mxu0
  %554 = vmatprep.mubr.bf16.mxu0 0
  %555 = vmatmul.mubr.bf16.gmra.mrb[0].mxu0 %v322
  %v556 = vpop.f32.mrb[0].mxu0
  %v557 = vadd.f32 0.0, %v556
  %v558 = vpop.f32.mrb[0].mxu0
  %v559 = vpop.f32.mrb[0].mxu0
  %v560 = vadd.f32 0.0, %v559
  %v561 = vpop.f32.mrb[0].mxu0
  %562 = vmatprep.mubr.bf16.mxu0 0
  %563 = vmatmul.mubr.bf16.gmra.mrb[0].mxu0 %v325
  %v564 = vpop.f32.mrb[0].mxu0
  %v565 = vadd.f32 0.0, %v564
  %v566 = vpop.f32.mrb[0].mxu0
  %v567 = vpop.f32.mrb[0].mxu0
  %v568 = vadd.f32 0.0, %v567
  %v569 = vpop.f32.mrb[0].mxu0
  %570 = vmatprep.mubr.bf16.mxu0 0
  %571 = vmatmul.mubr.bf16.gmra.mrb[0].mxu0 %v328
  %v572 = vpop.f32.mrb[0].mxu0
  %v573 = vadd.f32 0.0, %v572
  %v574 = vpop.f32.mrb[0].mxu0
  %v575 = vpop.f32.mrb[0].mxu0
  %v576 = vadd.f32 0.0, %v575
  %v577 = vpop.f32.mrb[0].mxu0
  %578 = vmatprep.mubr.bf16.mxu0 0
  %579 = vmatmul.mubr.bf16.gmra.mrb[0].mxu0 %v331
  %v580 = vpop.f32.mrb[0].mxu0
  %v581 = vadd.f32 0.0, %v580
  %v582 = vpop.f32.mrb[0].mxu0
  %v583 = vpop.f32.mrb[0].mxu0
  %v584 = vadd.f32 0.0, %v583
  %v585 = vpop.f32.mrb[0].mxu0
  %586 = vmatprep.mubr.bf16.mxu0 0
  %587 = vmatmul.mubr.bf16.gmra.mrb[0].mxu0 %v334
  %v588 = vpop.f32.mrb[0].mxu0
  %v589 = vadd.f32 0.0, %v588
  %v590 = vpop.f32.mrb[0].mxu0
  %v591 = vpop.f32.mrb[0].mxu0
  %v592 = vadd.f32 0.0, %v591
  %v593 = vpop.f32.mrb[0].mxu0
  %594 = vmatprep.mubr.bf16.mxu0 0
  %595 = vmatmul.mubr.bf16.gmra.mrb[0].mxu0 %v337
  %v596 = vpop.f32.mrb[0].mxu0
  %v597 = vadd.f32 0.0, %v596
  %v598 = vpop.f32.mrb[0].mxu0
  %v599 = vpop.f32.mrb[0].mxu0
  %v600 = vadd.f32 0.0, %v599
  %v601 = vpop.f32.mrb[0].mxu0
  %602 = vmatprep.mubr.bf16.mxu0 0
  %603 = vmatmul.mubr.bf16.gmra.mrb[0].mxu0 %v340
  %v604 = vpop.f32.mrb[0].mxu0
  %v605 = vadd.f32 0.0, %v604
  %v606 = vpop.f32.mrb[0].mxu0
  %v607 = vpop.f32.mrb[0].mxu0
  %v608 = vadd.f32 0.0, %v607
  %v609 = vpop.f32.mrb[0].mxu0
  %610 = vmatprep.mubr.bf16.mxu0 0
  %611 = vmatmul.mubr.bf16.gmra.mrb[0].mxu0 %v343
  %v612 = vpop.f32.mrb[0].mxu0
  %v613 = vadd.f32 0.0, %v612
  %v614 = vpop.f32.mrb[0].mxu0
  %v615 = vpop.f32.mrb[0].mxu0
  %v616 = vadd.f32 0.0, %v615
  %v617 = vpop.f32.mrb[0].mxu0
  %618 = vmatprep.mubr.bf16.mxu0 0
  %619 = vmatmul.mubr.bf16.gmra.mrb[0].mxu0 %v346
  %v620 = vpop.f32.mrb[0].mxu0
  %v621 = vadd.f32 0.0, %v620
  %v622 = vpop.f32.mrb[0].mxu0
  %v623 = vpop.f32.mrb[0].mxu0
  %v624 = vadd.f32 0.0, %v623
  %v625 = vpop.f32.mrb[0].mxu0
  %626 = vmatprep.mubr.bf16.mxu0 0
  %627 = vmatmul.mubr.bf16.gmra.mrb[0].mxu0 %v349
  %v628 = vpop.f32.mrb[0].mxu0
  %v629 = vadd.f32 0.0, %v628
  %v630 = vpop.f32.mrb[0].mxu0
  %v631 = vpop.f32.mrb[0].mxu0
  %v632 = vadd.f32 0.0, %v631
  %v633 = vpop.f32.mrb[0].mxu0
  %634 = vmatprep.mubr.bf16.mxu0 0
  %635 = vmatmul.mubr.bf16.gmra.mrb[0].mxu0 %v352
  %v636 = vpop.f32.mrb[0].mxu0
  %v637 = vadd.f32 0.0, %v636
  %v638 = vpop.f32.mrb[0].mxu0
  %v639 = vpop.f32.mrb[0].mxu0
  %v640 = vadd.f32 0.0, %v639
  %v641 = vpop.f32.mrb[0].mxu0
  %642 = vdwg.mxu0
  %v643 = vpack.c.bf16 %v392, %v389
  %v644 = vpack.c.bf16 %v400, %v397
  %v645 = vpack.c.bf16 %v408, %v405
  %v646 = vpack.c.bf16 %v416, %v413
  %v647 = vpack.c.bf16 %v424, %v421
  %v648 = vpack.c.bf16 %v432, %v429
  %v649 = vpack.c.bf16 %v440, %v437
  %v650 = vpack.c.bf16 %v448, %v445
  %v651 = vpack.c.bf16 %v456, %v453
  %v652 = vpack.c.bf16 %v464, %v461
  %v653 = vpack.c.bf16 %v472, %v469
  %v654 = vpack.c.bf16 %v480, %v477
  %v655 = vpack.c.bf16 %v488, %v485
  %v656 = vpack.c.bf16 %v496, %v493
  %v657 = vpack.c.bf16 %v504, %v501
  %v658 = vpack.c.bf16 %v512, %v509
  %v659 = vpack.c.bf16 %v520, %v517
  %v660 = vpack.c.bf16 %v528, %v525
  %v661 = vpack.c.bf16 %v536, %v533
  %v662 = vpack.c.bf16 %v544, %v541
  %v663 = vpack.c.bf16 %v552, %v549
  %v664 = vpack.c.bf16 %v560, %v557
  %v665 = vpack.c.bf16 %v568, %v565
  %v666 = vpack.c.bf16 %v576, %v573
  %v667 = vpack.c.bf16 %v584, %v581
  %v668 = vpack.c.bf16 %v592, %v589
  %v669 = vpack.c.bf16 %v600, %v597
  %v670 = vpack.c.bf16 %v608, %v605
  %v671 = vpack.c.bf16 %v616, %v613
  %v672 = vpack.c.bf16 %v624, %v621
  %v673 = vpack.c.bf16 %v632, %v629
  %v674 = vpack.c.bf16 %v640, %v637
  %675 = vst [vmem:[#allocation2] sm:$0xff] %v643
  %676 = vst [vmem:[#allocation2 + $0x8] sm:$0xff] %v644
  %677 = vst [vmem:[#allocation2 + $0x10] sm:$0xff] %v645
  %678 = vst [vmem:[#allocation2 + $0x18] sm:$0xff] %v646
  %679 = vst [vmem:[#allocation2 + $0x20] sm:$0xff] %v647
  %680 = vst [vmem:[#allocation2 + $0x28] sm:$0xff] %v648
  %681 = vst [vmem:[#allocation2 + $0x30] sm:$0xff] %v649
  %682 = vst [vmem:[#allocation2 + $0x38] sm:$0xff] %v650
  %683 = vst [vmem:[#allocation2 + $0x40] sm:$0xff] %v651
  %684 = vst [vmem:[#allocation2 + $0x48] sm:$0xff] %v652
  %685 = vst [vmem:[#allocation2 + $0x50] sm:$0xff] %v653
  %686 = vst [vmem:[#allocation2 + $0x58] sm:$0xff] %v654
  %687 = vst [vmem:[#allocation2 + $0x60] sm:$0xff] %v655
  %688 = vst [vmem:[#allocation2 + $0x68] sm:$0xff] %v656
  %689 = vst [vmem:[#allocation2 + $0x70] sm:$0xff] %v657
  %690 = vst [vmem:[#allocation2 + $0x78] sm:$0xff] %v658
  %691 = vst [vmem:[#allocation2 + $0x80] sm:$0xff] %v659
  %692 = vst [vmem:[#allocation2 + $0x88] sm:$0xff] %v660
  %693 = vst [vmem:[#allocation2 + $0x90] sm:$0xff] %v661
  %694 = vst [vmem:[#allocation2 + $0x98] sm:$0xff] %v662
  %695 = vst [vmem:[#allocation2 + $0xa0] sm:$0xff] %v663
  %696 = vst [vmem:[#allocation2 + $0xa8] sm:$0xff] %v664
  %697 = vst [vmem:[#allocation2 + $0xb0] sm:$0xff] %v665
  %698 = vst [vmem:[#allocation2 + $0xb8] sm:$0xff] %v666
  %699 = vst [vmem:[#allocation2 + $0xc0] sm:$0xff] %v667
  %700 = vst [vmem:[#allocation2 + $0xc8] sm:$0xff] %v668
  %701 = vst [vmem:[#allocation2 + $0xd0] sm:$0xff] %v669
  %702 = vst [vmem:[#allocation2 + $0xd8] sm:$0xff] %v670
  %703 = vst [vmem:[#allocation2 + $0xe0] sm:$0xff] %v671
  %704 = vst [vmem:[#allocation2 + $0xe8] sm:$0xff] %v672
  %705 = vst [vmem:[#allocation2 + $0xf0] sm:$0xff] %v673
  %706 = vst [vmem:[#allocation2 + $0xf8] sm:$0xff] %v674
  %v707 = vld [vmem:[#allocation2] sm:$0xff]
  %v708 = vld [vmem:[#allocation2 + $0x8] sm:$0xff]
  %v709 = vld [vmem:[#allocation2 + $0x10] sm:$0xff]
  %v710 = vld [vmem:[#allocation2 + $0x18] sm:$0xff]
  %v711 = vld [vmem:[%s2] sm:$0xf]
  %v712 = vld [vmem:[%s2 + $0x4] sm:$0xf]
  %v713 = vld [vmem:[%s2 + $0x8] sm:$0xf]
  %v714 = vld [vmem:[%s2 + $0xc] sm:$0xf]
  %v715 = vld [vmem:[%s2 + $0x10] sm:$0xf]
  %v716 = vld [vmem:[%s2 + $0x14] sm:$0xf]
  %v717 = vld [vmem:[%s2 + $0x18] sm:$0xf]
  %v718 = vld [vmem:[%s2 + $0x1c] sm:$0xf]
  %v719 = vld [vmem:[%s2 + $0x20] sm:$0xf]
  %v720 = vld [vmem:[%s2 + $0x24] sm:$0xf]
  %v721 = vld [vmem:[%s2 + $0x28] sm:$0xf]
  %v722 = vld [vmem:[%s2 + $0x2c] sm:$0xf]
  %v723 = vld [vmem:[%s2 + $0x30] sm:$0xf]
  %v724 = vld [vmem:[%s2 + $0x34] sm:$0xf]
  %v725 = vld [vmem:[%s2 + $0x38] sm:$0xf]
  %v726 = vld [vmem:[%s2 + $0x3c] sm:$0xf]
  %v727 = vld [vmem:[#allocation2 + $0x20] sm:$0xff]
  %v728 = vld [vmem:[#allocation2 + $0x28] sm:$0xff]
  %v729 = vld [vmem:[#allocation2 + $0x30] sm:$0xff]
  %v730 = vld [vmem:[#allocation2 + $0x38] sm:$0xff]
  %s731 = scalar_lea.vmem %s2, 64
  %v732 = vld [vmem:[%s731] sm:$0xf]
  %v733 = vld [vmem:[%s731 + $0x4] sm:$0xf]
  %v734 = vld [vmem:[%s731 + $0x8] sm:$0xf]
  %v735 = vld [vmem:[%s731 + $0xc] sm:$0xf]
  %v736 = vld [vmem:[%s731 + $0x10] sm:$0xf]
  %v737 = vld [vmem:[%s731 + $0x14] sm:$0xf]
  %v738 = vld [vmem:[%s731 + $0x18] sm:$0xf]
  %v739 = vld [vmem:[%s731 + $0x1c] sm:$0xf]
  %v740 = vld [vmem:[%s731 + $0x20] sm:$0xf]
  %v741 = vld [vmem:[%s731 + $0x24] sm:$0xf]
  %v742 = vld [vmem:[%s731 + $0x28] sm:$0xf]
  %v743 = vld [vmem:[%s731 + $0x2c] sm:$0xf]
  %v744 = vld [vmem:[%s731 + $0x30] sm:$0xf]
  %v745 = vld [vmem:[%s731 + $0x34] sm:$0xf]
  %v746 = vld [vmem:[%s731 + $0x38] sm:$0xf]
  %v747 = vld [vmem:[%s731 + $0x3c] sm:$0xf]
  %v764 = vunpack.c.l.b16 %v732
  %v765 = vunpack.c.l.b16 %v733
  %v766 = vunpack.c.l.b16 %v734
  %v767 = vunpack.c.l.b16 %v735
  %v768 = vunpack.c.l.b16 %v736
  %v769 = vunpack.c.l.b16 %v737
  %v770 = vunpack.c.l.b16 %v738
  %v771 = vunpack.c.l.b16 %v739
  %v772 = vunpack.c.l.b16 %v740
  %v773 = vunpack.c.l.b16 %v741
  %v774 = vunpack.c.l.b16 %v742
  %v775 = vunpack.c.l.b16 %v743
  %v776 = vunpack.c.l.b16 %v744
  %v777 = vunpack.c.l.b16 %v745
  %v778 = vunpack.c.l.b16 %v746
  %v779 = vunpack.c.l.b16 %v747
  %v780 = vpack.c.b16 %v765, %v764
  %v781 = vpack.c.b16 %v767, %v766
  %v782 = vpack.c.b16 %v769, %v768
  %v783 = vpack.c.b16 %v771, %v770
  %v784 = vpack.c.b16 %v773, %v772
  %v785 = vpack.c.b16 %v775, %v774
  %v786 = vpack.c.b16 %v777, %v776
  %v787 = vpack.c.b16 %v779, %v778
  %796 = vmatprep.subr.bf16.mxu0 0
  %797 = vmatpush1.bf16.msra.mxu0 %v780
  %798 = vmatprep.subr.bf16.mxu0 0
  %799 = vmatpush1.bf16.msra.mxu0 %v781
  %800 = vmatprep.subr.bf16.mxu0 0
  %801 = vmatpush1.bf16.msra.mxu0 %v782
  %802 = vmatprep.subr.bf16.mxu0 0
  %803 = vmatpush1.bf16.msra.mxu0 %v783
  %804 = vmatprep.subr.bf16.mxu0 0
  %805 = vmatpush1.bf16.msra.mxu0 %v784
  %806 = vmatprep.subr.bf16.mxu0 0
  %807 = vmatpush1.bf16.msra.mxu0 %v785
  %808 = vmatprep.subr.bf16.mxu0 0
  %809 = vmatpush1.bf16.msra.mxu0 %v786
  %810 = vmatprep.subr.bf16.mxu0 0
  %811 = vmatpush1.bf16.msra.mxu0 %v787
  %812 = vmatprep.subr.bf16.mxu0 0
  %813 = vmatpush1.bf16.msra.mxu0 0
  %814 = vmatprep.subr.bf16.mxu0 0
  %815 = vmatpush1.bf16.msra.mxu0 0
  %816 = vmatprep.subr.bf16.mxu0 0
  %817 = vmatpush1.bf16.msra.mxu0 0
  %818 = vmatprep.subr.bf16.mxu0 0
  %819 = vmatpush1.bf16.msra.mxu0 0
  %820 = vmatprep.subr.bf16.mxu0 0
  %821 = vmatpush1.bf16.msra.mxu0 0
  %822 = vmatprep.subr.bf16.mxu0 0
  %823 = vmatpush1.bf16.msra.mxu0 0
  %824 = vmatprep.subr.bf16.mxu0 0
  %825 = vmatpush1.bf16.msra.mxu0 0
  %826 = vmatprep.subr.bf16.mxu0 0
  %827 = vmatpush1.bf16.msra.mxu0 0
  %828 = vmatprep.mubr.bf16.mxu0 0
  %829 = vmatmul.mubr.bf16.gmra.mrb[0].mxu0 %v727
  %v830 = vpop.f32.mrb[0].mxu0
  %v831 = vadd.f32 0.0, %v830
  %v832 = vpop.f32.mrb[0].mxu0
  %v833 = vpop.f32.mrb[0].mxu0
  %v834 = vadd.f32 0.0, %v833
  %v835 = vpop.f32.mrb[0].mxu0
  %836 = vmatprep.mubr.bf16.mxu0 0
  %837 = vmatmul.mubr.bf16.gmra.mrb[0].mxu0 %v728
  %v838 = vpop.f32.mrb[0].mxu0
  %v839 = vadd.f32 0.0, %v838
  %v840 = vpop.f32.mrb[0].mxu0
  %v841 = vpop.f32.mrb[0].mxu0
  %v842 = vadd.f32 0.0, %v841
  %v843 = vpop.f32.mrb[0].mxu0
  %844 = vmatprep.mubr.bf16.mxu0 0
  %845 = vmatmul.mubr.bf16.gmra.mrb[0].mxu0 %v729
  %v846 = vpop.f32.mrb[0].mxu0
  %v847 = vadd.f32 0.0, %v846
  %v848 = vpop.f32.mrb[0].mxu0
  %v849 = vpop.f32.mrb[0].mxu0
  %v850 = vadd.f32 0.0, %v849
  %v851 = vpop.f32.mrb[0].mxu0
  %852 = vmatprep.mubr.bf16.mxu0 0
  %853 = vmatmul.mubr.bf16.gmra.mrb[0].mxu0 %v730
  %v854 = vpop.f32.mrb[0].mxu0
  %v855 = vadd.f32 0.0, %v854
  %v856 = vpop.f32.mrb[0].mxu0
  %v857 = vpop.f32.mrb[0].mxu0
  %v858 = vadd.f32 0.0, %v857
  %v859 = vpop.f32.mrb[0].mxu0
  %860 = vdwg.mxu0
  %v877 = vunpack.c.l.b16 %v711
  %v878 = vunpack.c.l.b16 %v712
  %v879 = vunpack.c.l.b16 %v713
  %v880 = vunpack.c.l.b16 %v714
  %v881 = vunpack.c.l.b16 %v715
  %v882 = vunpack.c.l.b16 %v716
  %v883 = vunpack.c.l.b16 %v717
  %v884 = vunpack.c.l.b16 %v718
  %v885 = vunpack.c.l.b16 %v719
  %v886 = vunpack.c.l.b16 %v720
  %v887 = vunpack.c.l.b16 %v721
  %v888 = vunpack.c.l.b16 %v722
  %v889 = vunpack.c.l.b16 %v723
  %v890 = vunpack.c.l.b16 %v724
  %v891 = vunpack.c.l.b16 %v725
  %v892 = vunpack.c.l.b16 %v726
  %v893 = vpack.c.b16 %v878, %v877
  %v894 = vpack.c.b16 %v880, %v879
  %v895 = vpack.c.b16 %v882, %v881
  %v896 = vpack.c.b16 %v884, %v883
  %v897 = vpack.c.b16 %v886, %v885
  %v898 = vpack.c.b16 %v888, %v887
  %v899 = vpack.c.b16 %v890, %v889
  %v900 = vpack.c.b16 %v892, %v891
  %909 = vmatprep.subr.bf16.mxu0 0
  %910 = vmatpush1.bf16.msra.mxu0 %v893
  %911 = vmatprep.subr.bf16.mxu0 0
  %912 = vmatpush1.bf16.msra.mxu0 %v894
  %913 = vmatprep.subr.bf16.mxu0 0
  %914 = vmatpush1.bf16.msra.mxu0 %v895
  %915 = vmatprep.subr.bf16.mxu0 0
  %916 = vmatpush1.bf16.msra.mxu0 %v896
  %917 = vmatprep.subr.bf16.mxu0 0
  %918 = vmatpush1.bf16.msra.mxu0 %v897
  %919 = vmatprep.subr.bf16.mxu0 0
  %920 = vmatpush1.bf16.msra.mxu0 %v898
  %921 = vmatprep.subr.bf16.mxu0 0
  %922 = vmatpush1.bf16.msra.mxu0 %v899
  %923 = vmatprep.subr.bf16.mxu0 0
  %924 = vmatpush1.bf16.msra.mxu0 %v900
  %925 = vmatprep.subr.bf16.mxu0 0
  %926 = vmatpush1.bf16.msra.mxu0 0
  %927 = vmatprep.subr.bf16.mxu0 0
  %928 = vmatpush1.bf16.msra.mxu0 0
  %929 = vmatprep.subr.bf16.mxu0 0
  %930 = vmatpush1.bf16.msra.mxu0 0
  %931 = vmatprep.subr.bf16.mxu0 0
  %932 = vmatpush1.bf16.msra.mxu0 0
  %933 = vmatprep.subr.bf16.mxu0 0
  %934 = vmatpush1.bf16.msra.mxu0 0
  %935 = vmatprep.subr.bf16.mxu0 0
  %936 = vmatpush1.bf16.msra.mxu0 0
  %937 = vmatprep.subr.bf16.mxu0 0
  %938 = vmatpush1.bf16.msra.mxu0 0
  %939 = vmatprep.subr.bf16.mxu0 0
  %940 = vmatpush1.bf16.msra.mxu0 0
  %941 = vmatprep.mubr.bf16.mxu0 0
  %942 = vmatmul.mubr.bf16.gmra.mrb[0].mxu0 %v707
  %v943 = vpop.f32.mrb[0].mxu0
  %v944 = vadd.f32 %v831, %v943
  %v945 = vpop.f32.mrb[0].mxu0
  %v946 = vpop.f32.mrb[0].mxu0
  %v947 = vadd.f32 %v834, %v946
  %v948 = vpop.f32.mrb[0].mxu0
  %949 = vmatprep.mubr.bf16.mxu0 0
  %950 = vmatmul.mubr.bf16.gmra.mrb[0].mxu0 %v708
  %v951 = vpop.f32.mrb[0].mxu0
  %v952 = vadd.f32 %v839, %v951
  %v953 = vpop.f32.mrb[0].mxu0
  %v954 = vpop.f32.mrb[0].mxu0
  %v955 = vadd.f32 %v842, %v954
  %v956 = vpop.f32.mrb[0].mxu0
  %957 = vmatprep.mubr.bf16.mxu0 0
  %958 = vmatmul.mubr.bf16.gmra.mrb[0].mxu0 %v709
  %v959 = vpop.f32.mrb[0].mxu0
  %v960 = vadd.f32 %v847, %v959
  %v961 = vpop.f32.mrb[0].mxu0
  %v962 = vpop.f32.mrb[0].mxu0
  %v963 = vadd.f32 %v850, %v962
  %v964 = vpop.f32.mrb[0].mxu0
  %965 = vmatprep.mubr.bf16.mxu0 0
  %966 = vmatmul.mubr.bf16.gmra.mrb[0].mxu0 %v710
  %v967 = vpop.f32.mrb[0].mxu0
  %v968 = vadd.f32 %v855, %v967
  %v969 = vpop.f32.mrb[0].mxu0
  %v970 = vpop.f32.mrb[0].mxu0
  %v971 = vadd.f32 %v858, %v970
  %v972 = vpop.f32.mrb[0].mxu0
  %973 = vdwg.mxu0
  %v974 = vld [vmem:[#allocation2 + $0x40] sm:$0xff]
  %v975 = vld [vmem:[#allocation2 + $0x48] sm:$0xff]
  %v976 = vld [vmem:[#allocation2 + $0x50] sm:$0xff]
  %v977 = vld [vmem:[#allocation2 + $0x58] sm:$0xff]
  %s978 = scalar_lea.vmem %s2, 128
  %v979 = vld [vmem:[%s978] sm:$0xf]
  %v980 = vld [vmem:[%s978 + $0x4] sm:$0xf]
  %v981 = vld [vmem:[%s978 + $0x8] sm:$0xf]
  %v982 = vld [vmem:[%s978 + $0xc] sm:$0xf]
  %v983 = vld [vmem:[%s978 + $0x10] sm:$0xf]
  %v984 = vld [vmem:[%s978 + $0x14] sm:$0xf]
  %v985 = vld [vmem:[%s978 + $0x18] sm:$0xf]
  %v986 = vld [vmem:[%s978 + $0x1c] sm:$0xf]
  %v987 = vld [vmem:[%s978 + $0x20] sm:$0xf]
  %v988 = vld [vmem:[%s978 + $0x24] sm:$0xf]
  %v989 = vld [vmem:[%s978 + $0x28] sm:$0xf]
  %v990 = vld [vmem:[%s978 + $0x2c] sm:$0xf]
  %v991 = vld [vmem:[%s978 + $0x30] sm:$0xf]
  %v992 = vld [vmem:[%s978 + $0x34] sm:$0xf]
  %v993 = vld [vmem:[%s978 + $0x38] sm:$0xf]
  %v994 = vld [vmem:[%s978 + $0x3c] sm:$0xf]
  %v1011 = vunpack.c.l.b16 %v979
  %v1012 = vunpack.c.l.b16 %v980
  %v1013 = vunpack.c.l.b16 %v981
  %v1014 = vunpack.c.l.b16 %v982
  %v1015 = vunpack.c.l.b16 %v983
  %v1016 = vunpack.c.l.b16 %v984
  %v1017 = vunpack.c.l.b16 %v985
  %v1018 = vunpack.c.l.b16 %v986
  %v1019 = vunpack.c.l.b16 %v987
  %v1020 = vunpack.c.l.b16 %v988
  %v1021 = vunpack.c.l.b16 %v989
  %v1022 = vunpack.c.l.b16 %v990
  %v1023 = vunpack.c.l.b16 %v991
  %v1024 = vunpack.c.l.b16 %v992
  %v1025 = vunpack.c.l.b16 %v993
  %v1026 = vunpack.c.l.b16 %v994
  %v1027 = vpack.c.b16 %v1012, %v1011
  %v1028 = vpack.c.b16 %v1014, %v1013
  %v1029 = vpack.c.b16 %v1016, %v1015
  %v1030 = vpack.c.b16 %v1018, %v1017
  %v1031 = vpack.c.b16 %v1020, %v1019
  %v1032 = vpack.c.b16 %v1022, %v1021
  %v1033 = vpack.c.b16 %v1024, %v1023
  %v1034 = vpack.c.b16 %v1026, %v1025
  %1043 = vmatprep.subr.bf16.mxu0 0
  %1044 = vmatpush1.bf16.msra.mxu0 %v1027
  %1045 = vmatprep.subr.bf16.mxu0 0
  %1046 = vmatpush1.bf16.msra.mxu0 %v1028
  %1047 = vmatprep.subr.bf16.mxu0 0
  %1048 = vmatpush1.bf16.msra.mxu0 %v1029
  %1049 = vmatprep.subr.bf16.mxu0 0
  %1050 = vmatpush1.bf16.msra.mxu0 %v1030
  %1051 = vmatprep.subr.bf16.mxu0 0
  %1052 = vmatpush1.bf16.msra.mxu0 %v1031
  %1053 = vmatprep.subr.bf16.mxu0 0
  %1054 = vmatpush1.bf16.msra.mxu0 %v1032
  %1055 = vmatprep.subr.bf16.mxu0 0
  %1056 = vmatpush1.bf16.msra.mxu0 %v1033
  %1057 = vmatprep.subr.bf16.mxu0 0
  %1058 = vmatpush1.bf16.msra.mxu0 %v1034
  %1059 = vmatprep.subr.bf16.mxu0 0
  %1060 = vmatpush1.bf16.msra.mxu0 0
  %1061 = vmatprep.subr.bf16.mxu0 0
  %1062 = vmatpush1.bf16.msra.mxu0 0
  %1063 = vmatprep.subr.bf16.mxu0 0
  %1064 = vmatpush1.bf16.msra.mxu0 0
  %1065 = vmatprep.subr.bf16.mxu0 0
  %1066 = vmatpush1.bf16.msra.mxu0 0
  %1067 = vmatprep.subr.bf16.mxu0 0
  %1068 = vmatpush1.bf16.msra.mxu0 0
  %1069 = vmatprep.subr.bf16.mxu0 0
  %1070 = vmatpush1.bf16.msra.mxu0 0
  %1071 = vmatprep.subr.bf16.mxu0 0
  %1072 = vmatpush1.bf16.msra.mxu0 0
  %1073 = vmatprep.subr.bf16.mxu0 0
  %1074 = vmatpush1.bf16.msra.mxu0 0
  %1075 = vmatprep.mubr.bf16.mxu0 0
  %1076 = vmatmul.mubr.bf16.gmra.mrb[0].mxu0 %v974
  %v1077 = vpop.f32.mrb[0].mxu0
  %v1078 = vadd.f32 0.0, %v1077
  %v1079 = vpop.f32.mrb[0].mxu0
  %v1080 = vpop.f32.mrb[0].mxu0
  %v1081 = vadd.f32 0.0, %v1080
  %v1082 = vpop.f32.mrb[0].mxu0
  %1083 = vmatprep.mubr.bf16.mxu0 0
  %1084 = vmatmul.mubr.bf16.gmra.mrb[0].mxu0 %v975
  %v1085 = vpop.f32.mrb[0].mxu0
  %v1086 = vadd.f32 0.0, %v1085
  %v1087 = vpop.f32.mrb[0].mxu0
  %v1088 = vpop.f32.mrb[0].mxu0
  %v1089 = vadd.f32 0.0, %v1088
  %v1090 = vpop.f32.mrb[0].mxu0
  %1091 = vmatprep.mubr.bf16.mxu0 0
  %1092 = vmatmul.mubr.bf16.gmra.mrb[0].mxu0 %v976
  %v1093 = vpop.f32.mrb[0].mxu0
  %v1094 = vadd.f32 0.0, %v1093
  %v1095 = vpop.f32.mrb[0].mxu0
  %v1096 = vpop.f32.mrb[0].mxu0
  %v1097 = vadd.f32 0.0, %v1096
  %v1098 = vpop.f32.mrb[0].mxu0
  %1099 = vmatprep.mubr.bf16.mxu0 0
  %1100 = vmatmul.mubr.bf16.gmra.mrb[0].mxu0 %v977
  %v1101 = vpop.f32.mrb[0].mxu0
  %v1102 = vadd.f32 0.0, %v1101
  %v1103 = vpop.f32.mrb[0].mxu0
  %v1104 = vpop.f32.mrb[0].mxu0
  %v1105 = vadd.f32 0.0, %v1104
  %v1106 = vpop.f32.mrb[0].mxu0
  %1107 = vdwg.mxu0
  %v1108 = vadd.f32 %v944, %v1078
  %v1109 = vadd.f32 %v947, %v1081
  %v1110 = vadd.f32 %v952, %v1086
  %v1111 = vadd.f32 %v955, %v1089
  %v1112 = vadd.f32 %v960, %v1094
  %v1113 = vadd.f32 %v963, %v1097
  %v1114 = vadd.f32 %v968, %v1102
  %v1115 = vadd.f32 %v971, %v1105
  %v1116 = vld [vmem:[#allocation2 + $0x60] sm:$0xff]
  %v1117 = vld [vmem:[#allocation2 + $0x68] sm:$0xff]
  %v1118 = vld [vmem:[#allocation2 + $0x70] sm:$0xff]
  %v1119 = vld [vmem:[#allocation2 + $0x78] sm:$0xff]
  %s1120 = scalar_lea.vmem %s2, 192
  %v1121 = vld [vmem:[%s1120] sm:$0xf]
  %v1122 = vld [vmem:[%s1120 + $0x4] sm:$0xf]
  %v1123 = vld [vmem:[%s1120 + $0x8] sm:$0xf]
  %v1124 = vld [vmem:[%s1120 + $0xc] sm:$0xf]
  %v1125 = vld [vmem:[%s1120 + $0x10] sm:$0xf]
  %v1126 = vld [vmem:[%s1120 + $0x14] sm:$0xf]
  %v1127 = vld [vmem:[%s1120 + $0x18] sm:$0xf]
  %v1128 = vld [vmem:[%s1120 + $0x1c] sm:$0xf]
  %v1129 = vld [vmem:[%s1120 + $0x20] sm:$0xf]
  %v1130 = vld [vmem:[%s1120 + $0x24] sm:$0xf]
  %v1131 = vld [vmem:[%s1120 + $0x28] sm:$0xf]
  %v1132 = vld [vmem:[%s1120 + $0x2c] sm:$0xf]
  %v1133 = vld [vmem:[%s1120 + $0x30] sm:$0xf]
  %v1134 = vld [vmem:[%s1120 + $0x34] sm:$0xf]
  %v1135 = vld [vmem:[%s1120 + $0x38] sm:$0xf]
  %v1136 = vld [vmem:[%s1120 + $0x3c] sm:$0xf]
  %v1153 = vunpack.c.l.b16 %v1121
  %v1154 = vunpack.c.l.b16 %v1122
  %v1155 = vunpack.c.l.b16 %v1123
  %v1156 = vunpack.c.l.b16 %v1124
  %v1157 = vunpack.c.l.b16 %v1125
  %v1158 = vunpack.c.l.b16 %v1126
  %v1159 = vunpack.c.l.b16 %v1127
  %v1160 = vunpack.c.l.b16 %v1128
  %v1161 = vunpack.c.l.b16 %v1129
  %v1162 = vunpack.c.l.b16 %v1130
  %v1163 = vunpack.c.l.b16 %v1131
  %v1164 = vunpack.c.l.b16 %v1132
  %v1165 = vunpack.c.l.b16 %v1133
  %v1166 = vunpack.c.l.b16 %v1134
  %v1167 = vunpack.c.l.b16 %v1135
  %v1168 = vunpack.c.l.b16 %v1136
  %v1169 = vpack.c.b16 %v1154, %v1153
  %v1170 = vpack.c.b16 %v1156, %v1155
  %v1171 = vpack.c.b16 %v1158, %v1157
  %v1172 = vpack.c.b16 %v1160, %v1159
  %v1173 = vpack.c.b16 %v1162, %v1161
  %v1174 = vpack.c.b16 %v1164, %v1163
  %v1175 = vpack.c.b16 %v1166, %v1165
  %v1176 = vpack.c.b16 %v1168, %v1167
  %1185 = vmatprep.subr.bf16.mxu0 0
  %1186 = vmatpush1.bf16.msra.mxu0 %v1169
  %1187 = vmatprep.subr.bf16.mxu0 0
  %1188 = vmatpush1.bf16.msra.mxu0 %v1170
  %1189 = vmatprep.subr.bf16.mxu0 0
  %1190 = vmatpush1.bf16.msra.mxu0 %v1171
  %1191 = vmatprep.subr.bf16.mxu0 0
  %1192 = vmatpush1.bf16.msra.mxu0 %v1172
  %1193 = vmatprep.subr.bf16.mxu0 0
  %1194 = vmatpush1.bf16.msra.mxu0 %v1173
  %1195 = vmatprep.subr.bf16.mxu0 0
  %1196 = vmatpush1.bf16.msra.mxu0 %v1174
  %1197 = vmatprep.subr.bf16.mxu0 0
  %1198 = vmatpush1.bf16.msra.mxu0 %v1175
  %1199 = vmatprep.subr.bf16.mxu0 0
  %1200 = vmatpush1.bf16.msra.mxu0 %v1176
  %1201 = vmatprep.subr.bf16.mxu0 0
  %1202 = vmatpush1.bf16.msra.mxu0 0
  %1203 = vmatprep.subr.bf16.mxu0 0
  %1204 = vmatpush1.bf16.msra.mxu0 0
  %1205 = vmatprep.subr.bf16.mxu0 0
  %1206 = vmatpush1.bf16.msra.mxu0 0
  %1207 = vmatprep.subr.bf16.mxu0 0
  %1208 = vmatpush1.bf16.msra.mxu0 0
  %1209 = vmatprep.subr.bf16.mxu0 0
  %1210 = vmatpush1.bf16.msra.mxu0 0
  %1211 = vmatprep.subr.bf16.mxu0 0
  %1212 = vmatpush1.bf16.msra.mxu0 0
  %1213 = vmatprep.subr.bf16.mxu0 0
  %1214 = vmatpush1.bf16.msra.mxu0 0
  %1215 = vmatprep.subr.bf16.mxu0 0
  %1216 = vmatpush1.bf16.msra.mxu0 0
  %1217 = vmatprep.mubr.bf16.mxu0 0
  %1218 = vmatmul.mubr.bf16.gmra.mrb[0].mxu0 %v1116
  %v1219 = vpop.f32.mrb[0].mxu0
  %v1220 = vadd.f32 0.0, %v1219
  %v1221 = vpop.f32.mrb[0].mxu0
  %v1222 = vpop.f32.mrb[0].mxu0
  %v1223 = vadd.f32 0.0, %v1222
  %v1224 = vpop.f32.mrb[0].mxu0
  %1225 = vmatprep.mubr.bf16.mxu0 0
  %1226 = vmatmul.mubr.bf16.gmra.mrb[0].mxu0 %v1117
  %v1227 = vpop.f32.mrb[0].mxu0
  %v1228 = vadd.f32 0.0, %v1227
  %v1229 = vpop.f32.mrb[0].mxu0
  %v1230 = vpop.f32.mrb[0].mxu0
  %v1231 = vadd.f32 0.0, %v1230
  %v1232 = vpop.f32.mrb[0].mxu0
  %1233 = vmatprep.mubr.bf16.mxu0 0
  %1234 = vmatmul.mubr.bf16.gmra.mrb[0].mxu0 %v1118
  %v1235 = vpop.f32.mrb[0].mxu0
  %v1236 = vadd.f32 0.0, %v1235
  %v1237 = vpop.f32.mrb[0].mxu0
  %v1238 = vpop.f32.mrb[0].mxu0
  %v1239 = vadd.f32 0.0, %v1238
  %v1240 = vpop.f32.mrb[0].mxu0
  %1241 = vmatprep.mubr.bf16.mxu0 0
  %1242 = vmatmul.mubr.bf16.gmra.mrb[0].mxu0 %v1119
  %v1243 = vpop.f32.mrb[0].mxu0
  %v1244 = vadd.f32 0.0, %v1243
  %v1245 = vpop.f32.mrb[0].mxu0
  %v1246 = vpop.f32.mrb[0].mxu0
  %v1247 = vadd.f32 0.0, %v1246
  %v1248 = vpop.f32.mrb[0].mxu0
  %1249 = vdwg.mxu0
  %v1250 = vadd.f32 %v1108, %v1220
  %v1251 = vadd.f32 %v1109, %v1223
  %v1252 = vadd.f32 %v1110, %v1228
  %v1253 = vadd.f32 %v1111, %v1231
  %v1254 = vadd.f32 %v1112, %v1236
  %v1255 = vadd.f32 %v1113, %v1239
  %v1256 = vadd.f32 %v1114, %v1244
  %v1257 = vadd.f32 %v1115, %v1247
  %v1258 = vld [vmem:[#allocation2 + $0x80] sm:$0xff]
  %v1259 = vld [vmem:[#allocation2 + $0x88] sm:$0xff]
  %v1260 = vld [vmem:[#allocation2 + $0x90] sm:$0xff]
  %v1261 = vld [vmem:[#allocation2 + $0x98] sm:$0xff]
  %s1262 = scalar_lea.vmem %s2, 256
  %v1263 = vld [vmem:[%s1262] sm:$0xf]
  %v1264 = vld [vmem:[%s1262 + $0x4] sm:$0xf]
  %v1265 = vld [vmem:[%s1262 + $0x8] sm:$0xf]
  %v1266 = vld [vmem:[%s1262 + $0xc] sm:$0xf]
  %v1267 = vld [vmem:[%s1262 + $0x10] sm:$0xf]
  %v1268 = vld [vmem:[%s1262 + $0x14] sm:$0xf]
  %v1269 = vld [vmem:[%s1262 + $0x18] sm:$0xf]
  %v1270 = vld [vmem:[%s1262 + $0x1c] sm:$0xf]
  %v1271 = vld [vmem:[%s1262 + $0x20] sm:$0xf]
  %v1272 = vld [vmem:[%s1262 + $0x24] sm:$0xf]
  %v1273 = vld [vmem:[%s1262 + $0x28] sm:$0xf]
  %v1274 = vld [vmem:[%s1262 + $0x2c] sm:$0xf]
  %v1275 = vld [vmem:[%s1262 + $0x30] sm:$0xf]
  %v1276 = vld [vmem:[%s1262 + $0x34] sm:$0xf]
  %v1277 = vld [vmem:[%s1262 + $0x38] sm:$0xf]
  %v1278 = vld [vmem:[%s1262 + $0x3c] sm:$0xf]
  %v1295 = vunpack.c.l.b16 %v1263
  %v1296 = vunpack.c.l.b16 %v1264
  %v1297 = vunpack.c.l.b16 %v1265
  %v1298 = vunpack.c.l.b16 %v1266
  %v1299 = vunpack.c.l.b16 %v1267
  %v1300 = vunpack.c.l.b16 %v1268
  %v1301 = vunpack.c.l.b16 %v1269
  %v1302 = vunpack.c.l.b16 %v1270
  %v1303 = vunpack.c.l.b16 %v1271
  %v1304 = vunpack.c.l.b16 %v1272
  %v1305 = vunpack.c.l.b16 %v1273
  %v1306 = vunpack.c.l.b16 %v1274
  %v1307 = vunpack.c.l.b16 %v1275
  %v1308 = vunpack.c.l.b16 %v1276
  %v1309 = vunpack.c.l.b16 %v1277
  %v1310 = vunpack.c.l.b16 %v1278
  %v1311 = vpack.c.b16 %v1296, %v1295
  %v1312 = vpack.c.b16 %v1298, %v1297
  %v1313 = vpack.c.b16 %v1300, %v1299
  %v1314 = vpack.c.b16 %v1302, %v1301
  %v1315 = vpack.c.b16 %v1304, %v1303
  %v1316 = vpack.c.b16 %v1306, %v1305
  %v1317 = vpack.c.b16 %v1308, %v1307
  %v1318 = vpack.c.b16 %v1310, %v1309
  %1327 = vmatprep.subr.bf16.mxu0 0
  %1328 = vmatpush1.bf16.msra.mxu0 %v1311
  %1329 = vmatprep.subr.bf16.mxu0 0
  %1330 = vmatpush1.bf16.msra.mxu0 %v1312
  %1331 = vmatprep.subr.bf16.mxu0 0
  %1332 = vmatpush1.bf16.msra.mxu0 %v1313
  %1333 = vmatprep.subr.bf16.mxu0 0
  %1334 = vmatpush1.bf16.msra.mxu0 %v1314
  %1335 = vmatprep.subr.bf16.mxu0 0
  %1336 = vmatpush1.bf16.msra.mxu0 %v1315
  %1337 = vmatprep.subr.bf16.mxu0 0
  %1338 = vmatpush1.bf16.msra.mxu0 %v1316
  %1339 = vmatprep.subr.bf16.mxu0 0
  %1340 = vmatpush1.bf16.msra.mxu0 %v1317
  %1341 = vmatprep.subr.bf16.mxu0 0
  %1342 = vmatpush1.bf16.msra.mxu0 %v1318
  %1343 = vmatprep.subr.bf16.mxu0 0
  %1344 = vmatpush1.bf16.msra.mxu0 0
  %1345 = vmatprep.subr.bf16.mxu0 0
  %1346 = vmatpush1.bf16.msra.mxu0 0
  %1347 = vmatprep.subr.bf16.mxu0 0
  %1348 = vmatpush1.bf16.msra.mxu0 0
  %1349 = vmatprep.subr.bf16.mxu0 0
  %1350 = vmatpush1.bf16.msra.mxu0 0
  %1351 = vmatprep.subr.bf16.mxu0 0
  %1352 = vmatpush1.bf16.msra.mxu0 0
  %1353 = vmatprep.subr.bf16.mxu0 0
  %1354 = vmatpush1.bf16.msra.mxu0 0
  %1355 = vmatprep.subr.bf16.mxu0 0
  %1356 = vmatpush1.bf16.msra.mxu0 0
  %1357 = vmatprep.subr.bf16.mxu0 0
  %1358 = vmatpush1.bf16.msra.mxu0 0
  %1359 = vmatprep.mubr.bf16.mxu0 0
  %1360 = vmatmul.mubr.bf16.gmra.mrb[0].mxu0 %v1258
  %v1361 = vpop.f32.mrb[0].mxu0
  %v1362 = vadd.f32 0.0, %v1361
  %v1363 = vpop.f32.mrb[0].mxu0
  %v1364 = vpop.f32.mrb[0].mxu0
  %v1365 = vadd.f32 0.0, %v1364
  %v1366 = vpop.f32.mrb[0].mxu0
  %1367 = vmatprep.mubr.bf16.mxu0 0
  %1368 = vmatmul.mubr.bf16.gmra.mrb[0].mxu0 %v1259
  %v1369 = vpop.f32.mrb[0].mxu0
  %v1370 = vadd.f32 0.0, %v1369
  %v1371 = vpop.f32.mrb[0].mxu0
  %v1372 = vpop.f32.mrb[0].mxu0
  %v1373 = vadd.f32 0.0, %v1372
  %v1374 = vpop.f32.mrb[0].mxu0
  %1375 = vmatprep.mubr.bf16.mxu0 0
  %1376 = vmatmul.mubr.bf16.gmra.mrb[0].mxu0 %v1260
  %v1377 = vpop.f32.mrb[0].mxu0
  %v1378 = vadd.f32 0.0, %v1377
  %v1379 = vpop.f32.mrb[0].mxu0
  %v1380 = vpop.f32.mrb[0].mxu0
  %v1381 = vadd.f32 0.0, %v1380
  %v1382 = vpop.f32.mrb[0].mxu0
  %1383 = vmatprep.mubr.bf16.mxu0 0
  %1384 = vmatmul.mubr.bf16.gmra.mrb[0].mxu0 %v1261
  %v1385 = vpop.f32.mrb[0].mxu0
  %v1386 = vadd.f32 0.0, %v1385
  %v1387 = vpop.f32.mrb[0].mxu0
  %v1388 = vpop.f32.mrb[0].mxu0
  %v1389 = vadd.f32 0.0, %v1388
  %v1390 = vpop.f32.mrb[0].mxu0
  %1391 = vdwg.mxu0
  %v1392 = vadd.f32 %v1250, %v1362
  %v1393 = vadd.f32 %v1251, %v1365
  %v1394 = vadd.f32 %v1252, %v1370
  %v1395 = vadd.f32 %v1253, %v1373
  %v1396 = vadd.f32 %v1254, %v1378
  %v1397 = vadd.f32 %v1255, %v1381
  %v1398 = vadd.f32 %v1256, %v1386
  %v1399 = vadd.f32 %v1257, %v1389
  %v1400 = vld [vmem:[#allocation2 + $0xa0] sm:$0xff]
  %v1401 = vld [vmem:[#allocation2 + $0xa8] sm:$0xff]
  %v1402 = vld [vmem:[#allocation2 + $0xb0] sm:$0xff]
  %v1403 = vld [vmem:[#allocation2 + $0xb8] sm:$0xff]
  %s1404 = scalar_lea.vmem %s2, 320
  %v1405 = vld [vmem:[%s1404] sm:$0xf]
  %v1406 = vld [vmem:[%s1404 + $0x4] sm:$0xf]
  %v1407 = vld [vmem:[%s1404 + $0x8] sm:$0xf]
  %v1408 = vld [vmem:[%s1404 + $0xc] sm:$0xf]
  %v1409 = vld [vmem:[%s1404 + $0x10] sm:$0xf]
  %v1410 = vld [vmem:[%s1404 + $0x14] sm:$0xf]
  %v1411 = vld [vmem:[%s1404 + $0x18] sm:$0xf]
  %v1412 = vld [vmem:[%s1404 + $0x1c] sm:$0xf]
  %v1413 = vld [vmem:[%s1404 + $0x20] sm:$0xf]
  %v1414 = vld [vmem:[%s1404 + $0x24] sm:$0xf]
  %v1415 = vld [vmem:[%s1404 + $0x28] sm:$0xf]
  %v1416 = vld [vmem:[%s1404 + $0x2c] sm:$0xf]
  %v1417 = vld [vmem:[%s1404 + $0x30] sm:$0xf]
  %v1418 = vld [vmem:[%s1404 + $0x34] sm:$0xf]
  %v1419 = vld [vmem:[%s1404 + $0x38] sm:$0xf]
  %v1420 = vld [vmem:[%s1404 + $0x3c] sm:$0xf]
  %v1437 = vunpack.c.l.b16 %v1405
  %v1438 = vunpack.c.l.b16 %v1406
  %v1439 = vunpack.c.l.b16 %v1407
  %v1440 = vunpack.c.l.b16 %v1408
  %v1441 = vunpack.c.l.b16 %v1409
  %v1442 = vunpack.c.l.b16 %v1410
  %v1443 = vunpack.c.l.b16 %v1411
  %v1444 = vunpack.c.l.b16 %v1412
  %v1445 = vunpack.c.l.b16 %v1413
  %v1446 = vunpack.c.l.b16 %v1414
  %v1447 = vunpack.c.l.b16 %v1415
  %v1448 = vunpack.c.l.b16 %v1416
  %v1449 = vunpack.c.l.b16 %v1417
  %v1450 = vunpack.c.l.b16 %v1418
  %v1451 = vunpack.c.l.b16 %v1419
  %v1452 = vunpack.c.l.b16 %v1420
  %v1453 = vpack.c.b16 %v1438, %v1437
  %v1454 = vpack.c.b16 %v1440, %v1439
  %v1455 = vpack.c.b16 %v1442, %v1441
  %v1456 = vpack.c.b16 %v1444, %v1443
  %v1457 = vpack.c.b16 %v1446, %v1445
  %v1458 = vpack.c.b16 %v1448, %v1447
  %v1459 = vpack.c.b16 %v1450, %v1449
  %v1460 = vpack.c.b16 %v1452, %v1451
  %1469 = vmatprep.subr.bf16.mxu0 0
  %1470 = vmatpush1.bf16.msra.mxu0 %v1453
  %1471 = vmatprep.subr.bf16.mxu0 0
  %1472 = vmatpush1.bf16.msra.mxu0 %v1454
  %1473 = vmatprep.subr.bf16.mxu0 0
  %1474 = vmatpush1.bf16.msra.mxu0 %v1455
  %1475 = vmatprep.subr.bf16.mxu0 0
  %1476 = vmatpush1.bf16.msra.mxu0 %v1456
  %1477 = vmatprep.subr.bf16.mxu0 0
  %1478 = vmatpush1.bf16.msra.mxu0 %v1457
  %1479 = vmatprep.subr.bf16.mxu0 0
  %1480 = vmatpush1.bf16.msra.mxu0 %v1458
  %1481 = vmatprep.subr.bf16.mxu0 0
  %1482 = vmatpush1.bf16.msra.mxu0 %v1459
  %1483 = vmatprep.subr.bf16.mxu0 0
  %1484 = vmatpush1.bf16.msra.mxu0 %v1460
  %1485 = vmatprep.subr.bf16.mxu0 0
  %1486 = vmatpush1.bf16.msra.mxu0 0
  %1487 = vmatprep.subr.bf16.mxu0 0
  %1488 = vmatpush1.bf16.msra.mxu0 0
  %1489 = vmatprep.subr.bf16.mxu0 0
  %1490 = vmatpush1.bf16.msra.mxu0 0
  %1491 = vmatprep.subr.bf16.mxu0 0
  %1492 = vmatpush1.bf16.msra.mxu0 0
  %1493 = vmatprep.subr.bf16.mxu0 0
  %1494 = vmatpush1.bf16.msra.mxu0 0
  %1495 = vmatprep.subr.bf16.mxu0 0
  %1496 = vmatpush1.bf16.msra.mxu0 0
  %1497 = vmatprep.subr.bf16.mxu0 0
  %1498 = vmatpush1.bf16.msra.mxu0 0
  %1499 = vmatprep.subr.bf16.mxu0 0
  %1500 = vmatpush1.bf16.msra.mxu0 0
  %1501 = vmatprep.mubr.bf16.mxu0 0
  %1502 = vmatmul.mubr.bf16.gmra.mrb[0].mxu0 %v1400
  %v1503 = vpop.f32.mrb[0].mxu0
  %v1504 = vadd.f32 0.0, %v1503
  %v1505 = vpop.f32.mrb[0].mxu0
  %v1506 = vpop.f32.mrb[0].mxu0
  %v1507 = vadd.f32 0.0, %v1506
  %v1508 = vpop.f32.mrb[0].mxu0
  %1509 = vmatprep.mubr.bf16.mxu0 0
  %1510 = vmatmul.mubr.bf16.gmra.mrb[0].mxu0 %v1401
  %v1511 = vpop.f32.mrb[0].mxu0
  %v1512 = vadd.f32 0.0, %v1511
  %v1513 = vpop.f32.mrb[0].mxu0
  %v1514 = vpop.f32.mrb[0].mxu0
  %v1515 = vadd.f32 0.0, %v1514
  %v1516 = vpop.f32.mrb[0].mxu0
  %1517 = vmatprep.mubr.bf16.mxu0 0
  %1518 = vmatmul.mubr.bf16.gmra.mrb[0].mxu0 %v1402
  %v1519 = vpop.f32.mrb[0].mxu0
  %v1520 = vadd.f32 0.0, %v1519
  %v1521 = vpop.f32.mrb[0].mxu0
  %v1522 = vpop.f32.mrb[0].mxu0
  %v1523 = vadd.f32 0.0, %v1522
  %v1524 = vpop.f32.mrb[0].mxu0
  %1525 = vmatprep.mubr.bf16.mxu0 0
  %1526 = vmatmul.mubr.bf16.gmra.mrb[0].mxu0 %v1403
  %v1527 = vpop.f32.mrb[0].mxu0
  %v1528 = vadd.f32 0.0, %v1527
  %v1529 = vpop.f32.mrb[0].mxu0
  %v1530 = vpop.f32.mrb[0].mxu0
  %v1531 = vadd.f32 0.0, %v1530
  %v1532 = vpop.f32.mrb[0].mxu0
  %1533 = vdwg.mxu0
  %v1534 = vadd.f32 %v1392, %v1504
  %v1535 = vadd.f32 %v1393, %v1507
  %v1536 = vadd.f32 %v1394, %v1512
  %v1537 = vadd.f32 %v1395, %v1515
  %v1538 = vadd.f32 %v1396, %v1520
  %v1539 = vadd.f32 %v1397, %v1523
  %v1540 = vadd.f32 %v1398, %v1528
  %v1541 = vadd.f32 %v1399, %v1531
  %v1542 = vld [vmem:[#allocation2 + $0xc0] sm:$0xff]
  %v1543 = vld [vmem:[#allocation2 + $0xc8] sm:$0xff]
  %v1544 = vld [vmem:[#allocation2 + $0xd0] sm:$0xff]
  %v1545 = vld [vmem:[#allocation2 + $0xd8] sm:$0xff]
  %s1546 = scalar_lea.vmem %s2, 384
  %v1547 = vld [vmem:[%s1546] sm:$0xf]
  %v1548 = vld [vmem:[%s1546 + $0x4] sm:$0xf]
  %v1549 = vld [vmem:[%s1546 + $0x8] sm:$0xf]
  %v1550 = vld [vmem:[%s1546 + $0xc] sm:$0xf]
  %v1551 = vld [vmem:[%s1546 + $0x10] sm:$0xf]
  %v1552 = vld [vmem:[%s1546 + $0x14] sm:$0xf]
  %v1553 = vld [vmem:[%s1546 + $0x18] sm:$0xf]
  %v1554 = vld [vmem:[%s1546 + $0x1c] sm:$0xf]
  %v1555 = vld [vmem:[%s1546 + $0x20] sm:$0xf]
  %v1556 = vld [vmem:[%s1546 + $0x24] sm:$0xf]
  %v1557 = vld [vmem:[%s1546 + $0x28] sm:$0xf]
  %v1558 = vld [vmem:[%s1546 + $0x2c] sm:$0xf]
  %v1559 = vld [vmem:[%s1546 + $0x30] sm:$0xf]
  %v1560 = vld [vmem:[%s1546 + $0x34] sm:$0xf]
  %v1561 = vld [vmem:[%s1546 + $0x38] sm:$0xf]
  %v1562 = vld [vmem:[%s1546 + $0x3c] sm:$0xf]
  %v1579 = vunpack.c.l.b16 %v1547
  %v1580 = vunpack.c.l.b16 %v1548
  %v1581 = vunpack.c.l.b16 %v1549
  %v1582 = vunpack.c.l.b16 %v1550
  %v1583 = vunpack.c.l.b16 %v1551
  %v1584 = vunpack.c.l.b16 %v1552
  %v1585 = vunpack.c.l.b16 %v1553
  %v1586 = vunpack.c.l.b16 %v1554
  %v1587 = vunpack.c.l.b16 %v1555
  %v1588 = vunpack.c.l.b16 %v1556
  %v1589 = vunpack.c.l.b16 %v1557
  %v1590 = vunpack.c.l.b16 %v1558
  %v1591 = vunpack.c.l.b16 %v1559
  %v1592 = vunpack.c.l.b16 %v1560
  %v1593 = vunpack.c.l.b16 %v1561
  %v1594 = vunpack.c.l.b16 %v1562
  %v1595 = vpack.c.b16 %v1580, %v1579
  %v1596 = vpack.c.b16 %v1582, %v1581
  %v1597 = vpack.c.b16 %v1584, %v1583
  %v1598 = vpack.c.b16 %v1586, %v1585
  %v1599 = vpack.c.b16 %v1588, %v1587
  %v1600 = vpack.c.b16 %v1590, %v1589
  %v1601 = vpack.c.b16 %v1592, %v1591
  %v1602 = vpack.c.b16 %v1594, %v1593
  %1611 = vmatprep.subr.bf16.mxu0 0
  %1612 = vmatpush1.bf16.msra.mxu0 %v1595
  %1613 = vmatprep.subr.bf16.mxu0 0
  %1614 = vmatpush1.bf16.msra.mxu0 %v1596
  %1615 = vmatprep.subr.bf16.mxu0 0
  %1616 = vmatpush1.bf16.msra.mxu0 %v1597
  %1617 = vmatprep.subr.bf16.mxu0 0
  %1618 = vmatpush1.bf16.msra.mxu0 %v1598
  %1619 = vmatprep.subr.bf16.mxu0 0
  %1620 = vmatpush1.bf16.msra.mxu0 %v1599
  %1621 = vmatprep.subr.bf16.mxu0 0
  %1622 = vmatpush1.bf16.msra.mxu0 %v1600
  %1623 = vmatprep.subr.bf16.mxu0 0
  %1624 = vmatpush1.bf16.msra.mxu0 %v1601
  %1625 = vmatprep.subr.bf16.mxu0 0
  %1626 = vmatpush1.bf16.msra.mxu0 %v1602
  %1627 = vmatprep.subr.bf16.mxu0 0
  %1628 = vmatpush1.bf16.msra.mxu0 0
  %1629 = vmatprep.subr.bf16.mxu0 0
  %1630 = vmatpush1.bf16.msra.mxu0 0
  %1631 = vmatprep.subr.bf16.mxu0 0
  %1632 = vmatpush1.bf16.msra.mxu0 0
  %1633 = vmatprep.subr.bf16.mxu0 0
  %1634 = vmatpush1.bf16.msra.mxu0 0
  %1635 = vmatprep.subr.bf16.mxu0 0
  %1636 = vmatpush1.bf16.msra.mxu0 0
  %1637 = vmatprep.subr.bf16.mxu0 0
  %1638 = vmatpush1.bf16.msra.mxu0 0
  %1639 = vmatprep.subr.bf16.mxu0 0
  %1640 = vmatpush1.bf16.msra.mxu0 0
  %1641 = vmatprep.subr.bf16.mxu0 0
  %1642 = vmatpush1.bf16.msra.mxu0 0
  %1643 = vmatprep.mubr.bf16.mxu0 0
  %1644 = vmatmul.mubr.bf16.gmra.mrb[0].mxu0 %v1542
  %v1645 = vpop.f32.mrb[0].mxu0
  %v1646 = vadd.f32 0.0, %v1645
  %v1647 = vpop.f32.mrb[0].mxu0
  %v1648 = vpop.f32.mrb[0].mxu0
  %v1649 = vadd.f32 0.0, %v1648
  %v1650 = vpop.f32.mrb[0].mxu0
  %1651 = vmatprep.mubr.bf16.mxu0 0
  %1652 = vmatmul.mubr.bf16.gmra.mrb[0].mxu0 %v1543
  %v1653 = vpop.f32.mrb[0].mxu0
  %v1654 = vadd.f32 0.0, %v1653
  %v1655 = vpop.f32.mrb[0].mxu0
  %v1656 = vpop.f32.mrb[0].mxu0
  %v1657 = vadd.f32 0.0, %v1656
  %v1658 = vpop.f32.mrb[0].mxu0
  %1659 = vmatprep.mubr.bf16.mxu0 0
  %1660 = vmatmul.mubr.bf16.gmra.mrb[0].mxu0 %v1544
  %v1661 = vpop.f32.mrb[0].mxu0
  %v1662 = vadd.f32 0.0, %v1661
  %v1663 = vpop.f32.mrb[0].mxu0
  %v1664 = vpop.f32.mrb[0].mxu0
  %v1665 = vadd.f32 0.0, %v1664
  %v1666 = vpop.f32.mrb[0].mxu0
  %1667 = vmatprep.mubr.bf16.mxu0 0
  %1668 = vmatmul.mubr.bf16.gmra.mrb[0].mxu0 %v1545
  %v1669 = vpop.f32.mrb[0].mxu0
  %v1670 = vadd.f32 0.0, %v1669
  %v1671 = vpop.f32.mrb[0].mxu0
  %v1672 = vpop.f32.mrb[0].mxu0
  %v1673 = vadd.f32 0.0, %v1672
  %v1674 = vpop.f32.mrb[0].mxu0
  %1675 = vdwg.mxu0
  %v1676 = vadd.f32 %v1534, %v1646
  %v1677 = vadd.f32 %v1535, %v1649
  %v1678 = vadd.f32 %v1536, %v1654
  %v1679 = vadd.f32 %v1537, %v1657
  %v1680 = vadd.f32 %v1538, %v1662
  %v1681 = vadd.f32 %v1539, %v1665
  %v1682 = vadd.f32 %v1540, %v1670
  %v1683 = vadd.f32 %v1541, %v1673
  %v1684 = vld [vmem:[#allocation2 + $0xe0] sm:$0xff]
  %v1685 = vld [vmem:[#allocation2 + $0xe8] sm:$0xff]
  %v1686 = vld [vmem:[#allocation2 + $0xf0] sm:$0xff]
  %v1687 = vld [vmem:[#allocation2 + $0xf8] sm:$0xff]
  %s1688 = scalar_lea.vmem %s2, 448
  %v1689 = vld [vmem:[%s1688] sm:$0xf]
  %v1690 = vld [vmem:[%s1688 + $0x4] sm:$0xf]
  %v1691 = vld [vmem:[%s1688 + $0x8] sm:$0xf]
  %v1692 = vld [vmem:[%s1688 + $0xc] sm:$0xf]
  %v1693 = vld [vmem:[%s1688 + $0x10] sm:$0xf]
  %v1694 = vld [vmem:[%s1688 + $0x14] sm:$0xf]
  %v1695 = vld [vmem:[%s1688 + $0x18] sm:$0xf]
  %v1696 = vld [vmem:[%s1688 + $0x1c] sm:$0xf]
  %v1697 = vld [vmem:[%s1688 + $0x20] sm:$0xf]
  %v1698 = vld [vmem:[%s1688 + $0x24] sm:$0xf]
  %v1699 = vld [vmem:[%s1688 + $0x28] sm:$0xf]
  %v1700 = vld [vmem:[%s1688 + $0x2c] sm:$0xf]
  %v1701 = vld [vmem:[%s1688 + $0x30] sm:$0xf]
  %v1702 = vld [vmem:[%s1688 + $0x34] sm:$0xf]
  %v1703 = vld [vmem:[%s1688 + $0x38] sm:$0xf]
  %v1704 = vld [vmem:[%s1688 + $0x3c] sm:$0xf]
  %v1721 = vunpack.c.l.b16 %v1689
  %v1722 = vunpack.c.l.b16 %v1690
  %v1723 = vunpack.c.l.b16 %v1691
  %v1724 = vunpack.c.l.b16 %v1692
  %v1725 = vunpack.c.l.b16 %v1693
  %v1726 = vunpack.c.l.b16 %v1694
  %v1727 = vunpack.c.l.b16 %v1695
  %v1728 = vunpack.c.l.b16 %v1696
  %v1729 = vunpack.c.l.b16 %v1697
  %v1730 = vunpack.c.l.b16 %v1698
  %v1731 = vunpack.c.l.b16 %v1699
  %v1732 = vunpack.c.l.b16 %v1700
  %v1733 = vunpack.c.l.b16 %v1701
  %v1734 = vunpack.c.l.b16 %v1702
  %v1735 = vunpack.c.l.b16 %v1703
  %v1736 = vunpack.c.l.b16 %v1704
  %v1737 = vpack.c.b16 %v1722, %v1721
  %v1738 = vpack.c.b16 %v1724, %v1723
  %v1739 = vpack.c.b16 %v1726, %v1725
  %v1740 = vpack.c.b16 %v1728, %v1727
  %v1741 = vpack.c.b16 %v1730, %v1729
  %v1742 = vpack.c.b16 %v1732, %v1731
  %v1743 = vpack.c.b16 %v1734, %v1733
  %v1744 = vpack.c.b16 %v1736, %v1735
  %1753 = vmatprep.subr.bf16.mxu0 0
  %1754 = vmatpush1.bf16.msra.mxu0 %v1737
  %1755 = vmatprep.subr.bf16.mxu0 0
  %1756 = vmatpush1.bf16.msra.mxu0 %v1738
  %1757 = vmatprep.subr.bf16.mxu0 0
  %1758 = vmatpush1.bf16.msra.mxu0 %v1739
  %1759 = vmatprep.subr.bf16.mxu0 0
  %1760 = vmatpush1.bf16.msra.mxu0 %v1740
  %1761 = vmatprep.subr.bf16.mxu0 0
  %1762 = vmatpush1.bf16.msra.mxu0 %v1741
  %1763 = vmatprep.subr.bf16.mxu0 0
  %1764 = vmatpush1.bf16.msra.mxu0 %v1742
  %1765 = vmatprep.subr.bf16.mxu0 0
  %1766 = vmatpush1.bf16.msra.mxu0 %v1743
  %1767 = vmatprep.subr.bf16.mxu0 0
  %1768 = vmatpush1.bf16.msra.mxu0 %v1744
  %1769 = vmatprep.subr.bf16.mxu0 0
  %1770 = vmatpush1.bf16.msra.mxu0 0
  %1771 = vmatprep.subr.bf16.mxu0 0
  %1772 = vmatpush1.bf16.msra.mxu0 0
  %1773 = vmatprep.subr.bf16.mxu0 0
  %1774 = vmatpush1.bf16.msra.mxu0 0
  %1775 = vmatprep.subr.bf16.mxu0 0
  %1776 = vmatpush1.bf16.msra.mxu0 0
  %1777 = vmatprep.subr.bf16.mxu0 0
  %1778 = vmatpush1.bf16.msra.mxu0 0
  %1779 = vmatprep.subr.bf16.mxu0 0
  %1780 = vmatpush1.bf16.msra.mxu0 0
  %1781 = vmatprep.subr.bf16.mxu0 0
  %1782 = vmatpush1.bf16.msra.mxu0 0
  %1783 = vmatprep.subr.bf16.mxu0 0
  %1784 = vmatpush1.bf16.msra.mxu0 0
  %1785 = vmatprep.mubr.bf16.mxu0 0
  %1786 = vmatmul.mubr.bf16.gmra.mrb[0].mxu0 %v1684
  %v1787 = vpop.f32.mrb[0].mxu0
  %v1788 = vadd.f32 0.0, %v1787
  %v1789 = vpop.f32.mrb[0].mxu0
  %v1790 = vpop.f32.mrb[0].mxu0
  %v1791 = vadd.f32 0.0, %v1790
  %v1792 = vpop.f32.mrb[0].mxu0
  %1793 = vmatprep.mubr.bf16.mxu0 0
  %1794 = vmatmul.mubr.bf16.gmra.mrb[0].mxu0 %v1685
  %v1795 = vpop.f32.mrb[0].mxu0
  %v1796 = vadd.f32 0.0, %v1795
  %v1797 = vpop.f32.mrb[0].mxu0
  %v1798 = vpop.f32.mrb[0].mxu0
  %v1799 = vadd.f32 0.0, %v1798
  %v1800 = vpop.f32.mrb[0].mxu0
  %1801 = vmatprep.mubr.bf16.mxu0 0
  %1802 = vmatmul.mubr.bf16.gmra.mrb[0].mxu0 %v1686
  %v1803 = vpop.f32.mrb[0].mxu0
  %v1804 = vadd.f32 0.0, %v1803
  %v1805 = vpop.f32.mrb[0].mxu0
  %v1806 = vpop.f32.mrb[0].mxu0
  %v1807 = vadd.f32 0.0, %v1806
  %v1808 = vpop.f32.mrb[0].mxu0
  %1809 = vmatprep.mubr.bf16.mxu0 0
  %1810 = vmatmul.mubr.bf16.gmra.mrb[0].mxu0 %v1687
  %v1811 = vpop.f32.mrb[0].mxu0
  %v1812 = vadd.f32 0.0, %v1811
  %v1813 = vpop.f32.mrb[0].mxu0
  %v1814 = vpop.f32.mrb[0].mxu0
  %v1815 = vadd.f32 0.0, %v1814
  %v1816 = vpop.f32.mrb[0].mxu0
  %1817 = vdwg.mxu0
  %v1818 = vadd.f32 %v1676, %v1788
  %v1819 = vadd.f32 %v1677, %v1791
  %v1820 = vadd.f32 %v1678, %v1796
  %v1821 = vadd.f32 %v1679, %v1799
  %v1822 = vadd.f32 %v1680, %v1804
  %v1823 = vadd.f32 %v1681, %v1807
  %v1824 = vadd.f32 %v1682, %v1812
  %v1825 = vadd.f32 %v1683, %v1815
  %v1826 = vld [vmem:[%s3] sm:$0x1]
  %v1828 = vlaneseq
  %v1829 = vshrl.u32 %v1828, 7
  %v1830 = vsub.s32 0, %v1829
  %v1831 = vrot.slane %v1826, %v1830
  %v1833 = vadd.f32 %v1818, %v1831
  %v1834 = vadd.f32 %v1819, %v1831
  %v1835 = vadd.f32 %v1820, %v1831
  %v1836 = vadd.f32 %v1821, %v1831
  %v1837 = vadd.f32 %v1822, %v1831
  %v1838 = vadd.f32 %v1823, %v1831
  %v1839 = vadd.f32 %v1824, %v1831
  %v1840 = vadd.f32 %v1825, %v1831
  %v1841 = vmax.f32 %v1833, 0.0
  %v1842 = vmax.f32 %v1834, 0.0
  %v1843 = vmax.f32 %v1835, 0.0
  %v1844 = vmax.f32 %v1836, 0.0
  %v1845 = vmax.f32 %v1837, 0.0
  %v1846 = vmax.f32 %v1838, 0.0
  %v1847 = vmax.f32 %v1839, 0.0
  %v1848 = vmax.f32 %v1840, 0.0
  %v1849 = vld [vmem:[%s4] sm:$0xff]
  %v1850 = vld [vmem:[%s4 + $0x8] sm:$0xff]
  %v1851 = vld [vmem:[%s4 + $0x10] sm:$0xff]
  %v1852 = vld [vmem:[%s4 + $0x18] sm:$0xff]
  %v1853 = vld [vmem:[%s4 + $0x20] sm:$0xff]
  %v1854 = vld [vmem:[%s4 + $0x28] sm:$0xff]
  %v1855 = vld [vmem:[%s4 + $0x30] sm:$0xff]
  %v1856 = vld [vmem:[%s4 + $0x38] sm:$0xff]
  %v1857 = vmul.f32 %v1841, %v1849
  %v1858 = vmul.f32 %v1842, %v1850
  %v1859 = vmul.f32 %v1843, %v1851
  %v1860 = vmul.f32 %v1844, %v1852
  %v1861 = vmul.f32 %v1845, %v1853
  %v1862 = vmul.f32 %v1846, %v1854
  %v1863 = vmul.f32 %v1847, %v1855
  %v1864 = vmul.f32 %v1848, %v1856
  %1865 = vst [vmem:[%s5] sm:$0xff] %v1857
  %1866 = vst [vmem:[%s5 + $0x8] sm:$0xff] %v1858
  %1867 = vst [vmem:[%s5 + $0x10] sm:$0xff] %v1859
  %1868 = vst [vmem:[%s5 + $0x18] sm:$0xff] %v1860
  %1869 = vst [vmem:[%s5 + $0x20] sm:$0xff] %v1861
  %1870 = vst [vmem:[%s5 + $0x28] sm:$0xff] %v1862
  %1871 = vst [vmem:[%s5 + $0x30] sm:$0xff] %v1863
  %1872 = vst [vmem:[%s5 + $0x38] sm:$0xff] %v1864
  // Predicated region
  $region22: #{tigranet_forward.4} parent=0 // pred_check
    _
  $region23: #{tigranet_forward.4} parent=0 // pred_check_branch
    %1874 = sbr.rel (0) target = $region25
  $region24: #{tigranet_forward.4} parent=0 // pred_region
    _
  $region25: #{tigranet_forward.4} parent=0 // pred_fallthru
    _
  // Predicated region
  $region26: #{tigranet_forward.4} parent=0 // pred_check
    _
  $region27: #{tigranet_forward.4} parent=0 // pred_check_branch
    %1876 = sbr.rel (0) target = $region29
  $region28: #{tigranet_forward.4} parent=0 // pred_region
    _
  $region29: #{tigranet_forward.4} parent=0 // pred_fallthru
    _

// kernel: tigranet_forward.7
$region0: #{tigranet_forward.7}
  #allocation0 [shape = 'u32[]', space=smem, size = 0x4, offset = 0x4, fixed_abs, tag = 'smem constant byte address 0x4 - core index']
  #allocation1 [shape = 'u32[144,128]{1,0:T(1,128)}', space=vmem, size = 0x12000, scoped, tag = 'internal scratch']
  %s0 = inlined_call_operand.vmem [shape: f32[2,480], index: 0, kind: input, shape index: {}]
  %s1 = inlined_call_operand.vmem [shape: bf16[480,512], index: 1, kind: input, shape index: {}]
  %s2 = inlined_call_operand.vmem [shape: f32[1,512], index: 2, kind: input, shape index: {}]
  %s3 = inlined_call_operand.vmem [shape: bf16[512,384], index: 3, kind: input, shape index: {}]
  %s4 = inlined_call_operand.vmem [shape: f32[1,384], index: 4, kind: input, shape index: {}]
  %s5 = inlined_call_operand.vmem [shape: bf16[384,128], index: 5, kind: input, shape index: {}]
  %s6 = inlined_call_operand.vmem [shape: f32[1,128], index: 6, kind: input, shape index: {}]
  %s7 = inlined_call_operand.vmem [shape: bf16[128,128], index: 7, kind: input, shape index: {}]
  %s8 = inlined_call_operand.vmem [shape: f32[1,128], index: 8, kind: input, shape index: {}]
  %s9 = inlined_call_operand.hbm [shape: f32[2,128], index: 9, kind: output, shape index: {}]
  %s10 = sld [smem:[#allocation0]]
  $region46: #{tigranet_forward.7} parent=0
    _
  %s12 = ssub.s32 1, %s10
  %s13 = scalar_select 0, %s12, %s10
  $region1: #{tigranet_forward.7} parent=0
    #allocation2 [shape = 'u8[1024]{0}', space=vmem, size = 0x400, scoped, tag = 'output window, operand 0, single buffered']
    #allocation3 [shape = 's32[1]{0}', space=sflag, size = 0x4, scoped, tag = 'scoped memory for tigranet_forward.7']
    %14 = vsyncpa [#allocation3], 0
    // Predicated region
    $region2: #{tigranet_forward.7} parent=1 // pred_check
      _
    $region3: #{tigranet_forward.7} parent=1 // pred_check_branch
      %16 = sbr.rel (0) target = $region5
    $region4: #{tigranet_forward.7} parent=1 // pred_region
      _
    $region5: #{tigranet_forward.7} parent=1 // pred_fallthru
      _
    // Predicated region
    $region6: #{tigranet_forward.7} parent=1 // pred_check
      _
    $region7: #{tigranet_forward.7} parent=1 // pred_check_branch
      %18 = sbr.rel (0) target = $region9
    $region8: #{tigranet_forward.7} parent=1 // pred_region
      _
    $region9: #{tigranet_forward.7} parent=1 // pred_fallthru
      _
    // Predicated region
    $region10: #{tigranet_forward.7} parent=1 // pred_check
      _
    $region11: #{tigranet_forward.7} parent=1 // pred_check_branch
      %20 = sbr.rel (0) target = $region13
    $region12: #{tigranet_forward.7} parent=1 // pred_region
      _
    $region13: #{tigranet_forward.7} parent=1 // pred_fallthru
      _
    // Predicated region
    $region14: #{tigranet_forward.7} parent=1 // pred_check
      _
    $region15: #{tigranet_forward.7} parent=1 // pred_check_branch
      %22 = sbr.rel (0) target = $region17
    $region16: #{tigranet_forward.7} parent=1 // pred_region
      _
    $region17: #{tigranet_forward.7} parent=1 // pred_fallthru
      _
    // Predicated region
    $region18: #{tigranet_forward.7} parent=1 // pred_check
      _
    $region19: #{tigranet_forward.7} parent=1 // pred_check_branch
      %24 = sbr.rel (0) target = $region21
    $region20: #{tigranet_forward.7} parent=1 // pred_region
      _
    $region21: #{tigranet_forward.7} parent=1 // pred_fallthru
      _
    // Predicated region
    $region22: #{tigranet_forward.7} parent=1 // pred_check
      _
    $region23: #{tigranet_forward.7} parent=1 // pred_check_branch
      %26 = sbr.rel (0) target = $region25
    $region24: #{tigranet_forward.7} parent=1 // pred_region
      _
    $region25: #{tigranet_forward.7} parent=1 // pred_fallthru
      _
    // Predicated region
    $region26: #{tigranet_forward.7} parent=1 // pred_check
      _
    $region27: #{tigranet_forward.7} parent=1 // pred_check_branch
      %28 = sbr.rel (0) target = $region29
    $region28: #{tigranet_forward.7} parent=1 // pred_region
      _
    $region29: #{tigranet_forward.7} parent=1 // pred_fallthru
      _
    // Predicated region
    $region30: #{tigranet_forward.7} parent=1 // pred_check
      _
    $region31: #{tigranet_forward.7} parent=1 // pred_check_branch
      %30 = sbr.rel (0) target = $region33
    $region32: #{tigranet_forward.7} parent=1 // pred_region
      _
    $region33: #{tigranet_forward.7} parent=1 // pred_fallthru
      _
    // Predicated region
    $region34: #{tigranet_forward.7} parent=1 // pred_check
      _
    $region35: #{tigranet_forward.7} parent=1 // pred_check_branch
      %32 = sbr.rel (0) target = $region37
    $region36: #{tigranet_forward.7} parent=1 // pred_region
      _
    $region37: #{tigranet_forward.7} parent=1 // pred_fallthru
      _
    %v34 = vld [vmem:[%s0] sm:$0xff]
    %v36 = vcombine.high %v34, %v34
    %v38 = vunpack.c.l.s4 1983009808
    %v39 = vunpack.c.0.s8 %v38
    %v40 = vlaneseq
    %v41 = vshrl.u32 %v40, 7
    %v42 = vsub.s32 %v39, %v41
    %v43 = vrot.slane %v34, %v42
    %v45 = vunpack.c.l.s4 1983009808
    %v46 = vunpack.c.0.s8 %v45
    %v47 = vlaneseq
    %v48 = vshrl.u32 %v47, 7
    %v49 = vsub.s32 %v46, %v48
    %v50 = vrot.slane %v36, %v49
    %v51 = vcombine.high %v43, %v43
    %v52 = vcombine.high %v50, %v50
    %v57 = vpack.c.bf16 %v43, %v43
    %v58 = vpack.c.bf16 %v51, %v51
    %v59 = vpack.c.bf16 %v50, %v50
    %v60 = vpack.c.bf16 %v52, %v52
    %v61 = vld [vmem:[%s1] sm:$0xff]
    %v62 = vld [vmem:[%s1 + $0x8] sm:$0xff]
    %v63 = vld [vmem:[%s1 + $0x10] sm:$0xff]
    %v64 = vld [vmem:[%s1 + $0x18] sm:$0xff]
    %v65 = vld [vmem:[%s1 + $0x20] sm:$0xff]
    %v66 = vld [vmem:[%s1 + $0x28] sm:$0xff]
    %v67 = vld [vmem:[%s1 + $0x30] sm:$0xff]
    %v68 = vld [vmem:[%s1 + $0x38] sm:$0xff]
    %v69 = vld [vmem:[%s1 + $0x40] sm:$0xff]
    %v70 = vld [vmem:[%s1 + $0x48] sm:$0xff]
    %v71 = vld [vmem:[%s1 + $0x50] sm:$0xff]
    %v72 = vld [vmem:[%s1 + $0x58] sm:$0xff]
    %v73 = vld [vmem:[%s1 + $0x60] sm:$0xff]
    %v74 = vld [vmem:[%s1 + $0x68] sm:$0xff]
    %v75 = vld [vmem:[%s1 + $0x70] sm:$0xff]
    %v76 = vld [vmem:[%s1 + $0x78] sm:$0xff]
    %v77 = vld [vmem:[%s1 + $0x80] sm:$0xff]
    %v78 = vld [vmem:[%s1 + $0x88] sm:$0xff]
    %v79 = vld [vmem:[%s1 + $0x90] sm:$0xff]
    %v80 = vld [vmem:[%s1 + $0x98] sm:$0xff]
    %v81 = vld [vmem:[%s1 + $0xa0] sm:$0xff]
    %v82 = vld [vmem:[%s1 + $0xa8] sm:$0xff]
    %v83 = vld [vmem:[%s1 + $0xb0] sm:$0xff]
    %v84 = vld [vmem:[%s1 + $0xb8] sm:$0xff]
    %v85 = vld [vmem:[%s1 + $0xc0] sm:$0xff]
    %v86 = vld [vmem:[%s1 + $0xc8] sm:$0xff]
    %v87 = vld [vmem:[%s1 + $0xd0] sm:$0xff]
    %v88 = vld [vmem:[%s1 + $0xd8] sm:$0xff]
    %v89 = vld [vmem:[%s1 + $0xe0] sm:$0xff]
    %v90 = vld [vmem:[%s1 + $0xe8] sm:$0xff]
    %v91 = vld [vmem:[%s1 + $0xf0] sm:$0xff]
    %v92 = vld [vmem:[%s1 + $0xf8] sm:$0xff]
    %v93 = vld [vmem:[%s1 + $0x100] sm:$0xff]
    %v94 = vld [vmem:[%s1 + $0x108] sm:$0xff]
    %v95 = vld [vmem:[%s1 + $0x110] sm:$0xff]
    %v96 = vld [vmem:[%s1 + $0x118] sm:$0xff]
    %v97 = vld [vmem:[%s1 + $0x120] sm:$0xff]
    %v98 = vld [vmem:[%s1 + $0x128] sm:$0xff]
    %v99 = vld [vmem:[%s1 + $0x130] sm:$0xff]
    %v100 = vld [vmem:[%s1 + $0x138] sm:$0xff]
    %v101 = vld [vmem:[%s1 + $0x140] sm:$0xff]
    %v102 = vld [vmem:[%s1 + $0x148] sm:$0xff]
    %v103 = vld [vmem:[%s1 + $0x150] sm:$0xff]
    %v104 = vld [vmem:[%s1 + $0x158] sm:$0xff]
    %v105 = vld [vmem:[%s1 + $0x160] sm:$0xff]
    %v106 = vld [vmem:[%s1 + $0x168] sm:$0xff]
    %v107 = vld [vmem:[%s1 + $0x170] sm:$0xff]
    %v108 = vld [vmem:[%s1 + $0x178] sm:$0xff]
    %v109 = vld [vmem:[%s1 + $0x180] sm:$0xff]
    %v110 = vld [vmem:[%s1 + $0x188] sm:$0xff]
    %v111 = vld [vmem:[%s1 + $0x190] sm:$0xff]
    %v112 = vld [vmem:[%s1 + $0x198] sm:$0xff]
    %v113 = vld [vmem:[%s1 + $0x1a0] sm:$0xff]
    %v114 = vld [vmem:[%s1 + $0x1a8] sm:$0xff]
    %v115 = vld [vmem:[%s1 + $0x1b0] sm:$0xff]
    %v116 = vld [vmem:[%s1 + $0x1b8] sm:$0xff]
    %v117 = vld [vmem:[%s1 + $0x1c0] sm:$0xff]
    %v118 = vld [vmem:[%s1 + $0x1c8] sm:$0xff]
    %v119 = vld [vmem:[%s1 + $0x1d0] sm:$0xff]
    %v120 = vld [vmem:[%s1 + $0x1d8] sm:$0xff]
    %v121 = vld [vmem:[%s1 + $0x1e0] sm:$0xff]
    %v122 = vld [vmem:[%s1 + $0x1e8] sm:$0xff]
    %v123 = vld [vmem:[%s1 + $0x1f0] sm:$0xff]
    %v124 = vld [vmem:[%s1 + $0x1f8] sm:$0xff]
    %v125 = vld [vmem:[%s1 + $0x200] sm:$0xff]
    %v126 = vld [vmem:[%s1 + $0x208] sm:$0xff]
    %v127 = vld [vmem:[%s1 + $0x210] sm:$0xff]
    %v128 = vld [vmem:[%s1 + $0x218] sm:$0xff]
    %v129 = vld [vmem:[%s1 + $0x220] sm:$0xff]
    %v130 = vld [vmem:[%s1 + $0x228] sm:$0xff]
    %v131 = vld [vmem:[%s1 + $0x230] sm:$0xff]
    %v132 = vld [vmem:[%s1 + $0x238] sm:$0xff]
    %v133 = vld [vmem:[%s1 + $0x240] sm:$0xff]
    %v134 = vld [vmem:[%s1 + $0x248] sm:$0xff]
    %v135 = vld [vmem:[%s1 + $0x250] sm:$0xff]
    %v136 = vld [vmem:[%s1 + $0x258] sm:$0xff]
    %v137 = vld [vmem:[%s1 + $0x260] sm:$0xff]
    %v138 = vld [vmem:[%s1 + $0x268] sm:$0xff]
    %v139 = vld [vmem:[%s1 + $0x270] sm:$0xff]
    %v140 = vld [vmem:[%s1 + $0x278] sm:$0xff]
    %v141 = vld [vmem:[%s1 + $0x280] sm:$0xff]
    %v142 = vld [vmem:[%s1 + $0x288] sm:$0xff]
    %v143 = vld [vmem:[%s1 + $0x290] sm:$0xff]
    %v144 = vld [vmem:[%s1 + $0x298] sm:$0xff]
    %v145 = vld [vmem:[%s1 + $0x2a0] sm:$0xff]
    %v146 = vld [vmem:[%s1 + $0x2a8] sm:$0xff]
    %v147 = vld [vmem:[%s1 + $0x2b0] sm:$0xff]
    %v148 = vld [vmem:[%s1 + $0x2b8] sm:$0xff]
    %v149 = vld [vmem:[%s1 + $0x2c0] sm:$0xff]
    %v150 = vld [vmem:[%s1 + $0x2c8] sm:$0xff]
    %v151 = vld [vmem:[%s1 + $0x2d0] sm:$0xff]
    %v152 = vld [vmem:[%s1 + $0x2d8] sm:$0xff]
    %v153 = vld [vmem:[%s1 + $0x2e0] sm:$0xff]
    %v154 = vld [vmem:[%s1 + $0x2e8] sm:$0xff]
    %v155 = vld [vmem:[%s1 + $0x2f0] sm:$0xff]
    %v156 = vld [vmem:[%s1 + $0x2f8] sm:$0xff]
    %v157 = vld [vmem:[%s1 + $0x300] sm:$0xff]
    %v158 = vld [vmem:[%s1 + $0x308] sm:$0xff]
    %v159 = vld [vmem:[%s1 + $0x310] sm:$0xff]
    %v160 = vld [vmem:[%s1 + $0x318] sm:$0xff]
    %v161 = vld [vmem:[%s1 + $0x320] sm:$0xff]
    %v162 = vld [vmem:[%s1 + $0x328] sm:$0xff]
    %v163 = vld [vmem:[%s1 + $0x330] sm:$0xff]
    %v164 = vld [vmem:[%s1 + $0x338] sm:$0xff]
    %v165 = vld [vmem:[%s1 + $0x340] sm:$0xff]
    %v166 = vld [vmem:[%s1 + $0x348] sm:$0xff]
    %v167 = vld [vmem:[%s1 + $0x350] sm:$0xff]
    %v168 = vld [vmem:[%s1 + $0x358] sm:$0xff]
    %v169 = vld [vmem:[%s1 + $0x360] sm:$0xff]
    %v170 = vld [vmem:[%s1 + $0x368] sm:$0xff]
    %v171 = vld [vmem:[%s1 + $0x370] sm:$0xff]
    %v172 = vld [vmem:[%s1 + $0x378] sm:$0xff]
    %v173 = vld [vmem:[%s1 + $0x380] sm:$0xff]
    %v174 = vld [vmem:[%s1 + $0x388] sm:$0xff]
    %v175 = vld [vmem:[%s1 + $0x390] sm:$0xff]
    %v176 = vld [vmem:[%s1 + $0x398] sm:$0xff]
    %v177 = vld [vmem:[%s1 + $0x3a0] sm:$0xff]
    %v178 = vld [vmem:[%s1 + $0x3a8] sm:$0xff]
    %v179 = vld [vmem:[%s1 + $0x3b0] sm:$0xff]
    %v180 = vld [vmem:[%s1 + $0x3b8] sm:$0xff]
    %v181 = vld [vmem:[%s2] sm:$0xf]
    %v183 = vlaneseq
    %v184 = vshrl.u32 %v183, 7
    %v185 = vsub.s32 0, %v184
    %v186 = vrot.slane %v181, %v185
    %v187 = vlaneseq
    %v188 = vshrl.u32 %v187, 7
    %v189 = vsub.s32 1, %v188
    %v190 = vrot.slane %v181, %v189
    %v191 = vlaneseq
    %v192 = vshrl.u32 %v191, 7
    %v193 = vsub.s32 2, %v192
    %v194 = vrot.slane %v181, %v193
    %v195 = vlaneseq
    %v196 = vshrl.u32 %v195, 7
    %v197 = vsub.s32 3, %v196
    %v198 = vrot.slane %v181, %v197
    %v323 = vunpack.c.l.b16 %v61
    %v324 = vunpack.c.h.b16 %v61
    %v325 = vunpack.c.l.b16 %v62
    %v326 = vunpack.c.h.b16 %v62
    %v327 = vunpack.c.l.b16 %v63
    %v328 = vunpack.c.h.b16 %v63
    %v329 = vunpack.c.l.b16 %v64
    %v330 = vunpack.c.h.b16 %v64
    %v331 = vunpack.c.l.b16 %v65
    %v332 = vunpack.c.h.b16 %v65
    %v333 = vunpack.c.l.b16 %v66
    %v334 = vunpack.c.h.b16 %v66
    %v335 = vunpack.c.l.b16 %v67
    %v336 = vunpack.c.h.b16 %v67
    %v337 = vunpack.c.l.b16 %v68
    %v338 = vunpack.c.h.b16 %v68
    %v339 = vunpack.c.l.b16 %v69
    %v340 = vunpack.c.h.b16 %v69
    %v341 = vunpack.c.l.b16 %v70
    %v342 = vunpack.c.h.b16 %v70
    %v343 = vunpack.c.l.b16 %v71
    %v344 = vunpack.c.h.b16 %v71
    %v345 = vunpack.c.l.b16 %v72
    %v346 = vunpack.c.h.b16 %v72
    %v347 = vunpack.c.l.b16 %v73
    %v348 = vunpack.c.h.b16 %v73
    %v349 = vunpack.c.l.b16 %v74
    %v350 = vunpack.c.h.b16 %v74
    %v351 = vunpack.c.l.b16 %v75
    %v352 = vunpack.c.h.b16 %v75
    %v353 = vunpack.c.l.b16 %v76
    %v354 = vunpack.c.h.b16 %v76
    %v355 = vunpack.c.l.b16 %v77
    %v356 = vunpack.c.h.b16 %v77
    %v357 = vunpack.c.l.b16 %v78
    %v358 = vunpack.c.h.b16 %v78
    %v359 = vunpack.c.l.b16 %v79
    %v360 = vunpack.c.h.b16 %v79
    %v361 = vunpack.c.l.b16 %v80
    %v362 = vunpack.c.h.b16 %v80
    %v363 = vunpack.c.l.b16 %v81
    %v364 = vunpack.c.h.b16 %v81
    %v365 = vunpack.c.l.b16 %v82
    %v366 = vunpack.c.h.b16 %v82
    %v367 = vunpack.c.l.b16 %v83
    %v368 = vunpack.c.h.b16 %v83
    %v369 = vunpack.c.l.b16 %v84
    %v370 = vunpack.c.h.b16 %v84
    %v371 = vunpack.c.l.b16 %v85
    %v372 = vunpack.c.h.b16 %v85
    %v373 = vunpack.c.l.b16 %v86
    %v374 = vunpack.c.h.b16 %v86
    %v375 = vunpack.c.l.b16 %v87
    %v376 = vunpack.c.h.b16 %v87
    %v377 = vunpack.c.l.b16 %v88
    %v378 = vunpack.c.h.b16 %v88
    %v379 = vunpack.c.l.b16 %v89
    %v380 = vunpack.c.h.b16 %v89
    %v381 = vunpack.c.l.b16 %v90
    %v382 = vunpack.c.h.b16 %v90
    %v383 = vunpack.c.l.b16 %v91
    %v384 = vunpack.c.h.b16 %v91
    %v385 = vunpack.c.l.b16 %v92
    %v386 = vunpack.c.h.b16 %v92
    %v387 = vunpack.c.l.b16 %v93
    %v388 = vunpack.c.h.b16 %v93
    %v389 = vunpack.c.l.b16 %v94
    %v390 = vunpack.c.h.b16 %v94
    %v391 = vunpack.c.l.b16 %v95
    %v392 = vunpack.c.h.b16 %v95
    %v393 = vunpack.c.l.b16 %v96
    %v394 = vunpack.c.h.b16 %v96
    %v395 = vunpack.c.l.b16 %v97
    %v396 = vunpack.c.h.b16 %v97
    %v397 = vunpack.c.l.b16 %v98
    %v398 = vunpack.c.h.b16 %v98
    %v399 = vunpack.c.l.b16 %v99
    %v400 = vunpack.c.h.b16 %v99
    %v401 = vunpack.c.l.b16 %v100
    %v402 = vunpack.c.h.b16 %v100
    %v403 = vunpack.c.l.b16 %v101
    %v404 = vunpack.c.h.b16 %v101
    %v405 = vunpack.c.l.b16 %v102
    %v406 = vunpack.c.h.b16 %v102
    %v407 = vunpack.c.l.b16 %v103
    %v408 = vunpack.c.h.b16 %v103
    %v409 = vunpack.c.l.b16 %v104
    %v410 = vunpack.c.h.b16 %v104
    %v411 = vunpack.c.l.b16 %v105
    %v412 = vunpack.c.h.b16 %v105
    %v413 = vunpack.c.l.b16 %v106
    %v414 = vunpack.c.h.b16 %v106
    %v415 = vunpack.c.l.b16 %v107
    %v416 = vunpack.c.h.b16 %v107
    %v417 = vunpack.c.l.b16 %v108
    %v418 = vunpack.c.h.b16 %v108
    %v419 = vunpack.c.l.b16 %v109
    %v420 = vunpack.c.h.b16 %v109
    %v421 = vunpack.c.l.b16 %v110
    %v422 = vunpack.c.h.b16 %v110
    %v423 = vunpack.c.l.b16 %v111
    %v424 = vunpack.c.h.b16 %v111
    %v425 = vunpack.c.l.b16 %v112
    %v426 = vunpack.c.h.b16 %v112
    %v427 = vunpack.c.l.b16 %v113
    %v428 = vunpack.c.h.b16 %v113
    %v429 = vunpack.c.l.b16 %v114
    %v430 = vunpack.c.h.b16 %v114
    %v431 = vunpack.c.l.b16 %v115
    %v432 = vunpack.c.h.b16 %v115
    %v433 = vunpack.c.l.b16 %v116
    %v434 = vunpack.c.h.b16 %v116
    %v435 = vunpack.c.l.b16 %v117
    %v436 = vunpack.c.h.b16 %v117
    %v437 = vunpack.c.l.b16 %v118
    %v438 = vunpack.c.h.b16 %v118
    %v439 = vunpack.c.l.b16 %v119
    %v440 = vunpack.c.h.b16 %v119
    %v441 = vunpack.c.l.b16 %v120
    %v442 = vunpack.c.h.b16 %v120
    %v443 = vunpack.c.l.b16 %v121
    %v444 = vunpack.c.h.b16 %v121
    %v445 = vunpack.c.l.b16 %v122
    %v446 = vunpack.c.h.b16 %v122
    %v447 = vunpack.c.l.b16 %v123
    %v448 = vunpack.c.h.b16 %v123
    %v449 = vunpack.c.l.b16 %v124
    %v450 = vunpack.c.h.b16 %v124
    %v451 = vunpack.c.l.b16 %v125
    %v452 = vunpack.c.h.b16 %v125
    %v453 = vunpack.c.l.b16 %v126
    %v454 = vunpack.c.h.b16 %v126
    %v455 = vunpack.c.l.b16 %v127
    %v456 = vunpack.c.h.b16 %v127
    %v457 = vunpack.c.l.b16 %v128
    %v458 = vunpack.c.h.b16 %v128
    %v459 = vunpack.c.l.b16 %v129
    %v460 = vunpack.c.h.b16 %v129
    %v461 = vunpack.c.l.b16 %v130
    %v462 = vunpack.c.h.b16 %v130
    %v463 = vunpack.c.l.b16 %v131
    %v464 = vunpack.c.h.b16 %v131
    %v465 = vunpack.c.l.b16 %v132
    %v466 = vunpack.c.h.b16 %v132
    %v467 = vunpack.c.l.b16 %v133
    %v468 = vunpack.c.h.b16 %v133
    %v469 = vunpack.c.l.b16 %v134
    %v470 = vunpack.c.h.b16 %v134
    %v471 = vunpack.c.l.b16 %v135
    %v472 = vunpack.c.h.b16 %v135
    %v473 = vunpack.c.l.b16 %v136
    %v474 = vunpack.c.h.b16 %v136
    %v475 = vunpack.c.l.b16 %v137
    %v476 = vunpack.c.h.b16 %v137
    %v477 = vunpack.c.l.b16 %v138
    %v478 = vunpack.c.h.b16 %v138
    %v479 = vunpack.c.l.b16 %v139
    %v480 = vunpack.c.h.b16 %v139
    %v481 = vunpack.c.l.b16 %v140
    %v482 = vunpack.c.h.b16 %v140
    %v483 = vunpack.c.l.b16 %v141
    %v484 = vunpack.c.h.b16 %v141
    %v485 = vunpack.c.l.b16 %v142
    %v486 = vunpack.c.h.b16 %v142
    %v487 = vunpack.c.l.b16 %v143
    %v488 = vunpack.c.h.b16 %v143
    %v489 = vunpack.c.l.b16 %v144
    %v490 = vunpack.c.h.b16 %v144
    %v491 = vunpack.c.l.b16 %v145
    %v492 = vunpack.c.h.b16 %v145
    %v493 = vunpack.c.l.b16 %v146
    %v494 = vunpack.c.h.b16 %v146
    %v495 = vunpack.c.l.b16 %v147
    %v496 = vunpack.c.h.b16 %v147
    %v497 = vunpack.c.l.b16 %v148
    %v498 = vunpack.c.h.b16 %v148
    %v499 = vunpack.c.l.b16 %v149
    %v500 = vunpack.c.h.b16 %v149
    %v501 = vunpack.c.l.b16 %v150
    %v502 = vunpack.c.h.b16 %v150
    %v503 = vunpack.c.l.b16 %v151
    %v504 = vunpack.c.h.b16 %v151
    %v505 = vunpack.c.l.b16 %v152
    %v506 = vunpack.c.h.b16 %v152
    %v507 = vunpack.c.l.b16 %v153
    %v508 = vunpack.c.h.b16 %v153
    %v509 = vunpack.c.l.b16 %v154
    %v510 = vunpack.c.h.b16 %v154
    %v511 = vunpack.c.l.b16 %v155
    %v512 = vunpack.c.h.b16 %v155
    %v513 = vunpack.c.l.b16 %v156
    %v514 = vunpack.c.h.b16 %v156
    %v515 = vunpack.c.l.b16 %v157
    %v516 = vunpack.c.h.b16 %v157
    %v517 = vunpack.c.l.b16 %v158
    %v518 = vunpack.c.h.b16 %v158
    %v519 = vunpack.c.l.b16 %v159
    %v520 = vunpack.c.h.b16 %v159
    %v521 = vunpack.c.l.b16 %v160
    %v522 = vunpack.c.h.b16 %v160
    %v523 = vunpack.c.l.b16 %v161
    %v524 = vunpack.c.h.b16 %v161
    %v525 = vunpack.c.l.b16 %v162
    %v526 = vunpack.c.h.b16 %v162
    %v527 = vunpack.c.l.b16 %v163
    %v528 = vunpack.c.h.b16 %v163
    %v529 = vunpack.c.l.b16 %v164
    %v530 = vunpack.c.h.b16 %v164
    %v531 = vunpack.c.l.b16 %v165
    %v532 = vunpack.c.h.b16 %v165
    %v533 = vunpack.c.l.b16 %v166
    %v534 = vunpack.c.h.b16 %v166
    %v535 = vunpack.c.l.b16 %v167
    %v536 = vunpack.c.h.b16 %v167
    %v537 = vunpack.c.l.b16 %v168
    %v538 = vunpack.c.h.b16 %v168
    %v539 = vunpack.c.l.b16 %v169
    %v540 = vunpack.c.h.b16 %v169
    %v541 = vunpack.c.l.b16 %v170
    %v542 = vunpack.c.h.b16 %v170
    %v543 = vunpack.c.l.b16 %v171
    %v544 = vunpack.c.h.b16 %v171
    %v545 = vunpack.c.l.b16 %v172
    %v546 = vunpack.c.h.b16 %v172
    %v547 = vunpack.c.l.b16 %v173
    %v548 = vunpack.c.h.b16 %v173
    %v549 = vunpack.c.l.b16 %v174
    %v550 = vunpack.c.h.b16 %v174
    %v551 = vunpack.c.l.b16 %v175
    %v552 = vunpack.c.h.b16 %v175
    %v553 = vunpack.c.l.b16 %v176
    %v554 = vunpack.c.h.b16 %v176
    %v555 = vunpack.c.l.b16 %v177
    %v556 = vunpack.c.h.b16 %v177
    %v557 = vunpack.c.l.b16 %v178
    %v558 = vunpack.c.h.b16 %v178
    %v559 = vunpack.c.l.b16 %v179
    %v560 = vunpack.c.h.b16 %v179
    %v561 = vunpack.c.l.b16 %v180
    %v562 = vunpack.c.h.b16 %v180
    %v563 = vpack.c.b16 %v327, %v323
    %v564 = vpack.c.b16 %v328, %v324
    %v565 = vpack.c.b16 %v329, %v325
    %v566 = vpack.c.b16 %v330, %v326
    %v567 = vpack.c.b16 %v335, %v331
    %v568 = vpack.c.b16 %v336, %v332
    %v569 = vpack.c.b16 %v337, %v333
    %v570 = vpack.c.b16 %v338, %v334
    %v571 = vpack.c.b16 %v343, %v339
    %v572 = vpack.c.b16 %v344, %v340
    %v573 = vpack.c.b16 %v345, %v341
    %v574 = vpack.c.b16 %v346, %v342
    %v575 = vpack.c.b16 %v351, %v347
    %v576 = vpack.c.b16 %v352, %v348
    %v577 = vpack.c.b16 %v353, %v349
    %v578 = vpack.c.b16 %v354, %v350
    %v579 = vpack.c.b16 %v359, %v355
    %v580 = vpack.c.b16 %v360, %v356
    %v581 = vpack.c.b16 %v361, %v357
    %v582 = vpack.c.b16 %v362, %v358
    %v583 = vpack.c.b16 %v367, %v363
    %v584 = vpack.c.b16 %v368, %v364
    %v585 = vpack.c.b16 %v369, %v365
    %v586 = vpack.c.b16 %v370, %v366
    %v587 = vpack.c.b16 %v375, %v371
    %v588 = vpack.c.b16 %v376, %v372
    %v589 = vpack.c.b16 %v377, %v373
    %v590 = vpack.c.b16 %v378, %v374
    %v591 = vpack.c.b16 %v383, %v379
    %v592 = vpack.c.b16 %v384, %v380
    %v593 = vpack.c.b16 %v385, %v381
    %v594 = vpack.c.b16 %v386, %v382
    %v595 = vpack.c.b16 %v391, %v387
    %v596 = vpack.c.b16 %v392, %v388
    %v597 = vpack.c.b16 %v393, %v389
    %v598 = vpack.c.b16 %v394, %v390
    %v599 = vpack.c.b16 %v399, %v395
    %v600 = vpack.c.b16 %v400, %v396
    %v601 = vpack.c.b16 %v401, %v397
    %v602 = vpack.c.b16 %v402, %v398
    %v603 = vpack.c.b16 %v407, %v403
    %v604 = vpack.c.b16 %v408, %v404
    %v605 = vpack.c.b16 %v409, %v405
    %v606 = vpack.c.b16 %v410, %v406
    %v607 = vpack.c.b16 %v415, %v411
    %v608 = vpack.c.b16 %v416, %v412
    %v609 = vpack.c.b16 %v417, %v413
    %v610 = vpack.c.b16 %v418, %v414
    %v611 = vpack.c.b16 %v423, %v419
    %v612 = vpack.c.b16 %v424, %v420
    %v613 = vpack.c.b16 %v425, %v421
    %v614 = vpack.c.b16 %v426, %v422
    %v615 = vpack.c.b16 %v431, %v427
    %v616 = vpack.c.b16 %v432, %v428
    %v617 = vpack.c.b16 %v433, %v429
    %v618 = vpack.c.b16 %v434, %v430
    %v619 = vpack.c.b16 %v439, %v435
    %v620 = vpack.c.b16 %v440, %v436
    %v621 = vpack.c.b16 %v441, %v437
    %v622 = vpack.c.b16 %v442, %v438
    %v623 = vpack.c.b16 %v447, %v443
    %v624 = vpack.c.b16 %v448, %v444
    %v625 = vpack.c.b16 %v449, %v445
    %v626 = vpack.c.b16 %v450, %v446
    %v627 = vpack.c.b16 %v455, %v451
    %v628 = vpack.c.b16 %v456, %v452
    %v629 = vpack.c.b16 %v457, %v453
    %v630 = vpack.c.b16 %v458, %v454
    %v631 = vpack.c.b16 %v463, %v459
    %v632 = vpack.c.b16 %v464, %v460
    %v633 = vpack.c.b16 %v465, %v461
    %v634 = vpack.c.b16 %v466, %v462
    %v635 = vpack.c.b16 %v471, %v467
    %v636 = vpack.c.b16 %v472, %v468
    %v637 = vpack.c.b16 %v473, %v469
    %v638 = vpack.c.b16 %v474, %v470
    %v639 = vpack.c.b16 %v479, %v475
    %v640 = vpack.c.b16 %v480, %v476
    %v641 = vpack.c.b16 %v481, %v477
    %v642 = vpack.c.b16 %v482, %v478
    %v643 = vpack.c.b16 %v487, %v483
    %v644 = vpack.c.b16 %v488, %v484
    %v645 = vpack.c.b16 %v489, %v485
    %v646 = vpack.c.b16 %v490, %v486
    %v647 = vpack.c.b16 %v495, %v491
    %v648 = vpack.c.b16 %v496, %v492
    %v649 = vpack.c.b16 %v497, %v493
    %v650 = vpack.c.b16 %v498, %v494
    %v651 = vpack.c.b16 %v503, %v499
    %v652 = vpack.c.b16 %v504, %v500
    %v653 = vpack.c.b16 %v505, %v501
    %v654 = vpack.c.b16 %v506, %v502
    %v655 = vpack.c.b16 %v511, %v507
    %v656 = vpack.c.b16 %v512, %v508
    %v657 = vpack.c.b16 %v513, %v509
    %v658 = vpack.c.b16 %v514, %v510
    %v659 = vpack.c.b16 %v519, %v515
    %v660 = vpack.c.b16 %v520, %v516
    %v661 = vpack.c.b16 %v521, %v517
    %v662 = vpack.c.b16 %v522, %v518
    %v663 = vpack.c.b16 %v527, %v523
    %v664 = vpack.c.b16 %v528, %v524
    %v665 = vpack.c.b16 %v529, %v525
    %v666 = vpack.c.b16 %v530, %v526
    %v667 = vpack.c.b16 %v535, %v531
    %v668 = vpack.c.b16 %v536, %v532
    %v669 = vpack.c.b16 %v537, %v533
    %v670 = vpack.c.b16 %v538, %v534
    %v671 = vpack.c.b16 %v543, %v539
    %v672 = vpack.c.b16 %v544, %v540
    %v673 = vpack.c.b16 %v545, %v541
    %v674 = vpack.c.b16 %v546, %v542
    %v675 = vpack.c.b16 %v551, %v547
    %v676 = vpack.c.b16 %v552, %v548
    %v677 = vpack.c.b16 %v553, %v549
    %v678 = vpack.c.b16 %v554, %v550
    %v679 = vpack.c.b16 %v559, %v555
    %v680 = vpack.c.b16 %v560, %v556
    %v681 = vpack.c.b16 %v561, %v557
    %v682 = vpack.c.b16 %v562, %v558
    %vm803 = vcmask 785408
    %v805 = vsel %vm803, %v60, 0
    %807 = vmatprep.subr.bf16.mxu0 %v564
    %808 = vmatpush1.bf16.msra.mxu0 %v563
    %809 = vmatprep.subr.bf16.mxu0 %v568
    %810 = vmatpush1.bf16.msra.mxu0 %v567
    %811 = vmatprep.subr.bf16.mxu0 %v572
    %812 = vmatpush1.bf16.msra.mxu0 %v571
    %813 = vmatprep.subr.bf16.mxu0 %v576
    %814 = vmatpush1.bf16.msra.mxu0 %v575
    %815 = vmatprep.subr.bf16.mxu0 %v580
    %816 = vmatpush1.bf16.msra.mxu0 %v579
    %817 = vmatprep.subr.bf16.mxu0 %v584
    %818 = vmatpush1.bf16.msra.mxu0 %v583
    %819 = vmatprep.subr.bf16.mxu0 %v588
    %820 = vmatpush1.bf16.msra.mxu0 %v587
    %821 = vmatprep.subr.bf16.mxu0 %v592
    %822 = vmatpush1.bf16.msra.mxu0 %v591
    %823 = vmatprep.subr.bf16.mxu0 %v596
    %824 = vmatpush1.bf16.msra.mxu0 %v595
    %825 = vmatprep.subr.bf16.mxu0 %v600
    %826 = vmatpush1.bf16.msra.mxu0 %v599
    %827 = vmatprep.subr.bf16.mxu0 %v604
    %828 = vmatpush1.bf16.msra.mxu0 %v603
    %829 = vmatprep.subr.bf16.mxu0 %v608
    %830 = vmatpush1.bf16.msra.mxu0 %v607
    %831 = vmatprep.subr.bf16.mxu0 %v612
    %832 = vmatpush1.bf16.msra.mxu0 %v611
    %833 = vmatprep.subr.bf16.mxu0 %v616
    %834 = vmatpush1.bf16.msra.mxu0 %v615
    %835 = vmatprep.subr.bf16.mxu0 %v620
    %836 = vmatpush1.bf16.msra.mxu0 %v619
    %837 = vmatprep.subr.bf16.mxu0 %v624
    %838 = vmatpush1.bf16.msra.mxu0 %v623
    %839 = vmatprep.mubr.bf16.mxu0 %v58
    %840 = vmatmul.mubr.bf16.gmra.mrb[0].mxu0 %v57
    %v841 = vpop.f32.mrb[0].mxu0
    %v842 = vadd.f32 %v186, %v841
    %v843 = vpop.f32.mrb[0].mxu0
    %v844 = vadd.f32 %v190, %v843
    %v845 = vpop.f32.mrb[0].mxu0
    %v846 = vpop.f32.mrb[0].mxu0
    %847 = vdwg.mxu0
    %848 = vmatprep.subr.bf16.mxu0 %v628
    %849 = vmatpush1.bf16.msra.mxu0 %v627
    %850 = vmatprep.subr.bf16.mxu0 %v632
    %851 = vmatpush1.bf16.msra.mxu0 %v631
    %852 = vmatprep.subr.bf16.mxu0 %v636
    %853 = vmatpush1.bf16.msra.mxu0 %v635
    %854 = vmatprep.subr.bf16.mxu0 %v640
    %855 = vmatpush1.bf16.msra.mxu0 %v639
    %856 = vmatprep.subr.bf16.mxu0 %v644
    %857 = vmatpush1.bf16.msra.mxu0 %v643
    %858 = vmatprep.subr.bf16.mxu0 %v648
    %859 = vmatpush1.bf16.msra.mxu0 %v647
    %860 = vmatprep.subr.bf16.mxu0 %v652
    %861 = vmatpush1.bf16.msra.mxu0 %v651
    %862 = vmatprep.subr.bf16.mxu0 %v656
    %863 = vmatpush1.bf16.msra.mxu0 %v655
    %864 = vmatprep.subr.bf16.mxu0 %v660
    %865 = vmatpush1.bf16.msra.mxu0 %v659
    %866 = vmatprep.subr.bf16.mxu0 %v664
    %867 = vmatpush1.bf16.msra.mxu0 %v663
    %868 = vmatprep.subr.bf16.mxu0 %v668
    %869 = vmatpush1.bf16.msra.mxu0 %v667
    %870 = vmatprep.subr.bf16.mxu0 %v672
    %871 = vmatpush1.bf16.msra.mxu0 %v671
    %872 = vmatprep.subr.bf16.mxu0 %v676
    %873 = vmatpush1.bf16.msra.mxu0 %v675
    %874 = vmatprep.subr.bf16.mxu0 %v680
    %875 = vmatpush1.bf16.msra.mxu0 %v679
    %876 = vmatprep.subr.bf16.mxu0 0
    %877 = vmatpush1.bf16.msra.mxu0 0
    %878 = vmatprep.subr.bf16.mxu0 0
    %879 = vmatpush1.bf16.msra.mxu0 0
    %880 = vmatprep.mubr.bf16.mxu0 %v805
    %881 = vmatmul.mubr.bf16.gmra.mrb[0].mxu0 %v59
    %v882 = vpop.f32.mrb[0].mxu0
    %v883 = vadd.f32 %v842, %v882
    %v884 = vpop.f32.mrb[0].mxu0
    %v885 = vadd.f32 %v844, %v884
    %v886 = vpop.f32.mrb[0].mxu0
    %v887 = vpop.f32.mrb[0].mxu0
    %888 = vdwg.mxu0
    %889 = vmatprep.subr.bf16.mxu0 %v566
    %890 = vmatpush1.bf16.msra.mxu0 %v565
    %891 = vmatprep.subr.bf16.mxu0 %v570
    %892 = vmatpush1.bf16.msra.mxu0 %v569
    %893 = vmatprep.subr.bf16.mxu0 %v574
    %894 = vmatpush1.bf16.msra.mxu0 %v573
    %895 = vmatprep.subr.bf16.mxu0 %v578
    %896 = vmatpush1.bf16.msra.mxu0 %v577
    %897 = vmatprep.subr.bf16.mxu0 %v582
    %898 = vmatpush1.bf16.msra.mxu0 %v581
    %899 = vmatprep.subr.bf16.mxu0 %v586
    %900 = vmatpush1.bf16.msra.mxu0 %v585
    %901 = vmatprep.subr.bf16.mxu0 %v590
    %902 = vmatpush1.bf16.msra.mxu0 %v589
    %903 = vmatprep.subr.bf16.mxu0 %v594
    %904 = vmatpush1.bf16.msra.mxu0 %v593
    %905 = vmatprep.subr.bf16.mxu0 %v598
    %906 = vmatpush1.bf16.msra.mxu0 %v597
    %907 = vmatprep.subr.bf16.mxu0 %v602
    %908 = vmatpush1.bf16.msra.mxu0 %v601
    %909 = vmatprep.subr.bf16.mxu0 %v606
    %910 = vmatpush1.bf16.msra.mxu0 %v605
    %911 = vmatprep.subr.bf16.mxu0 %v610
    %912 = vmatpush1.bf16.msra.mxu0 %v609
    %913 = vmatprep.subr.bf16.mxu0 %v614
    %914 = vmatpush1.bf16.msra.mxu0 %v613
    %915 = vmatprep.subr.bf16.mxu0 %v618
    %916 = vmatpush1.bf16.msra.mxu0 %v617
    %917 = vmatprep.subr.bf16.mxu0 %v622
    %918 = vmatpush1.bf16.msra.mxu0 %v621
    %919 = vmatprep.subr.bf16.mxu0 %v626
    %920 = vmatpush1.bf16.msra.mxu0 %v625
    %921 = vmatprep.mubr.bf16.mxu0 %v58
    %922 = vmatmul.mubr.bf16.gmra.mrb[0].mxu0 %v57
    %v923 = vpop.f32.mrb[0].mxu0
    %v924 = vadd.f32 %v194, %v923
    %v925 = vpop.f32.mrb[0].mxu0
    %v926 = vadd.f32 %v198, %v925
    %v927 = vpop.f32.mrb[0].mxu0
    %v928 = vpop.f32.mrb[0].mxu0
    %929 = vdwg.mxu0
    %930 = vmatprep.subr.bf16.mxu0 %v630
    %931 = vmatpush1.bf16.msra.mxu0 %v629
    %932 = vmatprep.subr.bf16.mxu0 %v634
    %933 = vmatpush1.bf16.msra.mxu0 %v633
    %934 = vmatprep.subr.bf16.mxu0 %v638
    %935 = vmatpush1.bf16.msra.mxu0 %v637
    %936 = vmatprep.subr.bf16.mxu0 %v642
    %937 = vmatpush1.bf16.msra.mxu0 %v641
    %938 = vmatprep.subr.bf16.mxu0 %v646
    %939 = vmatpush1.bf16.msra.mxu0 %v645
    %940 = vmatprep.subr.bf16.mxu0 %v650
    %941 = vmatpush1.bf16.msra.mxu0 %v649
    %942 = vmatprep.subr.bf16.mxu0 %v654
    %943 = vmatpush1.bf16.msra.mxu0 %v653
    %944 = vmatprep.subr.bf16.mxu0 %v658
    %945 = vmatpush1.bf16.msra.mxu0 %v657
    %946 = vmatprep.subr.bf16.mxu0 %v662
    %947 = vmatpush1.bf16.msra.mxu0 %v661
    %948 = vmatprep.subr.bf16.mxu0 %v666
    %949 = vmatpush1.bf16.msra.mxu0 %v665
    %950 = vmatprep.subr.bf16.mxu0 %v670
    %951 = vmatpush1.bf16.msra.mxu0 %v669
    %952 = vmatprep.subr.bf16.mxu0 %v674
    %953 = vmatpush1.bf16.msra.mxu0 %v673
    %954 = vmatprep.subr.bf16.mxu0 %v678
    %955 = vmatpush1.bf16.msra.mxu0 %v677
    %956 = vmatprep.subr.bf16.mxu0 %v682
    %957 = vmatpush1.bf16.msra.mxu0 %v681
    %958 = vmatprep.subr.bf16.mxu0 0
    %959 = vmatpush1.bf16.msra.mxu0 0
    %960 = vmatprep.subr.bf16.mxu0 0
    %961 = vmatpush1.bf16.msra.mxu0 0
    %962 = vmatprep.mubr.bf16.mxu0 %v805
    %963 = vmatmul.mubr.bf16.gmra.mrb[0].mxu0 %v59
    %v964 = vpop.f32.mrb[0].mxu0
    %v965 = vadd.f32 %v924, %v964
    %v966 = vpop.f32.mrb[0].mxu0
    %v967 = vadd.f32 %v926, %v966
    %v968 = vpop.f32.mrb[0].mxu0
    %v969 = vpop.f32.mrb[0].mxu0
    %970 = vdwg.mxu0
    %v971 = vmax.f32 %v883, 0.0
    %v972 = vmax.f32 %v885, 0.0
    %v973 = vmax.f32 %v965, 0.0
    %v974 = vmax.f32 %v967, 0.0
    %v975 = vpack.c.bf16 %v971, %v971
    %v976 = vpack.c.bf16 %v972, %v972
    %v977 = vpack.c.bf16 %v973, %v973
    %v978 = vpack.c.bf16 %v974, %v974
    %v979 = vld [vmem:[%s3] sm:$0xff]
    %v980 = vld [vmem:[%s3 + $0x8] sm:$0xf]
    %v981 = vld [vmem:[%s3 + $0xc] sm:$0xff]
    %v982 = vld [vmem:[%s3 + $0x14] sm:$0xf]
    %v983 = vld [vmem:[%s3 + $0x18] sm:$0xff]
    %v984 = vld [vmem:[%s3 + $0x20] sm:$0xf]
    %v985 = vld [vmem:[%s3 + $0x24] sm:$0xff]
    %v986 = vld [vmem:[%s3 + $0x2c] sm:$0xf]
    %v987 = vld [vmem:[%s3 + $0x30] sm:$0xff]
    %v988 = vld [vmem:[%s3 + $0x38] sm:$0xf]
    %v989 = vld [vmem:[%s3 + $0x3c] sm:$0xff]
    %v990 = vld [vmem:[%s3 + $0x44] sm:$0xf]
    %v991 = vld [vmem:[%s3 + $0x48] sm:$0xff]
    %v992 = vld [vmem:[%s3 + $0x50] sm:$0xf]
    %v993 = vld [vmem:[%s3 + $0x54] sm:$0xff]
    %v994 = vld [vmem:[%s3 + $0x5c] sm:$0xf]
    %v995 = vld [vmem:[%s3 + $0x60] sm:$0xff]
    %v996 = vld [vmem:[%s3 + $0x68] sm:$0xf]
    %v997 = vld [vmem:[%s3 + $0x6c] sm:$0xff]
    %v998 = vld [vmem:[%s3 + $0x74] sm:$0xf]
    %v999 = vld [vmem:[%s3 + $0x78] sm:$0xff]
    %v1000 = vld [vmem:[%s3 + $0x80] sm:$0xf]
    %v1001 = vld [vmem:[%s3 + $0x84] sm:$0xff]
    %v1002 = vld [vmem:[%s3 + $0x8c] sm:$0xf]
    %v1003 = vld [vmem:[%s3 + $0x90] sm:$0xff]
    %v1004 = vld [vmem:[%s3 + $0x98] sm:$0xf]
    %v1005 = vld [vmem:[%s3 + $0x9c] sm:$0xff]
    %v1006 = vld [vmem:[%s3 + $0xa4] sm:$0xf]
    %v1007 = vld [vmem:[%s3 + $0xa8] sm:$0xff]
    %v1008 = vld [vmem:[%s3 + $0xb0] sm:$0xf]
    %v1009 = vld [vmem:[%s3 + $0xb4] sm:$0xff]
    %v1010 = vld [vmem:[%s3 + $0xbc] sm:$0xf]
    %v1011 = vld [vmem:[%s3 + $0xc0] sm:$0xff]
    %v1012 = vld [vmem:[%s3 + $0xc8] sm:$0xf]
    %v1013 = vld [vmem:[%s3 + $0xcc] sm:$0xff]
    %v1014 = vld [vmem:[%s3 + $0xd4] sm:$0xf]
    %v1015 = vld [vmem:[%s3 + $0xd8] sm:$0xff]
    %v1016 = vld [vmem:[%s3 + $0xe0] sm:$0xf]
    %v1017 = vld [vmem:[%s3 + $0xe4] sm:$0xff]
    %v1018 = vld [vmem:[%s3 + $0xec] sm:$0xf]
    %v1019 = vld [vmem:[%s3 + $0xf0] sm:$0xff]
    %v1020 = vld [vmem:[%s3 + $0xf8] sm:$0xf]
    %v1021 = vld [vmem:[%s3 + $0xfc] sm:$0xff]
    %v1022 = vld [vmem:[%s3 + $0x104] sm:$0xf]
    %v1023 = vld [vmem:[%s3 + $0x108] sm:$0xff]
    %v1024 = vld [vmem:[%s3 + $0x110] sm:$0xf]
    %v1025 = vld [vmem:[%s3 + $0x114] sm:$0xff]
    %v1026 = vld [vmem:[%s3 + $0x11c] sm:$0xf]
    %v1027 = vld [vmem:[%s3 + $0x120] sm:$0xff]
    %v1028 = vld [vmem:[%s3 + $0x128] sm:$0xf]
    %v1029 = vld [vmem:[%s3 + $0x12c] sm:$0xff]
    %v1030 = vld [vmem:[%s3 + $0x134] sm:$0xf]
    %v1031 = vld [vmem:[%s3 + $0x138] sm:$0xff]
    %v1032 = vld [vmem:[%s3 + $0x140] sm:$0xf]
    %v1033 = vld [vmem:[%s3 + $0x144] sm:$0xff]
    %v1034 = vld [vmem:[%s3 + $0x14c] sm:$0xf]
    %v1035 = vld [vmem:[%s3 + $0x150] sm:$0xff]
    %v1036 = vld [vmem:[%s3 + $0x158] sm:$0xf]
    %v1037 = vld [vmem:[%s3 + $0x15c] sm:$0xff]
    %v1038 = vld [vmem:[%s3 + $0x164] sm:$0xf]
    %v1039 = vld [vmem:[%s3 + $0x168] sm:$0xff]
    %v1040 = vld [vmem:[%s3 + $0x170] sm:$0xf]
    %v1041 = vld [vmem:[%s3 + $0x174] sm:$0xff]
    %v1042 = vld [vmem:[%s3 + $0x17c] sm:$0xf]
    %v1043 = vld [vmem:[%s3 + $0x180] sm:$0xff]
    %v1044 = vld [vmem:[%s3 + $0x188] sm:$0xf]
    %v1045 = vld [vmem:[%s3 + $0x18c] sm:$0xff]
    %v1046 = vld [vmem:[%s3 + $0x194] sm:$0xf]
    %v1047 = vld [vmem:[%s3 + $0x198] sm:$0xff]
    %v1048 = vld [vmem:[%s3 + $0x1a0] sm:$0xf]
    %v1049 = vld [vmem:[%s3 + $0x1a4] sm:$0xff]
    %v1050 = vld [vmem:[%s3 + $0x1ac] sm:$0xf]
    %v1051 = vld [vmem:[%s3 + $0x1b0] sm:$0xff]
    %v1052 = vld [vmem:[%s3 + $0x1b8] sm:$0xf]
    %v1053 = vld [vmem:[%s3 + $0x1bc] sm:$0xff]
    %v1054 = vld [vmem:[%s3 + $0x1c4] sm:$0xf]
    %v1055 = vld [vmem:[%s3 + $0x1c8] sm:$0xff]
    %v1056 = vld [vmem:[%s3 + $0x1d0] sm:$0xf]
    %v1057 = vld [vmem:[%s3 + $0x1d4] sm:$0xff]
    %v1058 = vld [vmem:[%s3 + $0x1dc] sm:$0xf]
    %v1059 = vld [vmem:[%s3 + $0x1e0] sm:$0xff]
    %v1060 = vld [vmem:[%s3 + $0x1e8] sm:$0xf]
    %v1061 = vld [vmem:[%s3 + $0x1ec] sm:$0xff]
    %v1062 = vld [vmem:[%s3 + $0x1f4] sm:$0xf]
    %v1063 = vld [vmem:[%s3 + $0x1f8] sm:$0xff]
    %v1064 = vld [vmem:[%s3 + $0x200] sm:$0xf]
    %v1065 = vld [vmem:[%s3 + $0x204] sm:$0xff]
    %v1066 = vld [vmem:[%s3 + $0x20c] sm:$0xf]
    %v1067 = vld [vmem:[%s3 + $0x210] sm:$0xff]
    %v1068 = vld [vmem:[%s3 + $0x218] sm:$0xf]
    %v1069 = vld [vmem:[%s3 + $0x21c] sm:$0xff]
    %v1070 = vld [vmem:[%s3 + $0x224] sm:$0xf]
    %v1071 = vld [vmem:[%s3 + $0x228] sm:$0xff]
    %v1072 = vld [vmem:[%s3 + $0x230] sm:$0xf]
    %v1073 = vld [vmem:[%s3 + $0x234] sm:$0xff]
    %v1074 = vld [vmem:[%s3 + $0x23c] sm:$0xf]
    %v1075 = vld [vmem:[%s3 + $0x240] sm:$0xff]
    %v1076 = vld [vmem:[%s3 + $0x248] sm:$0xf]
    %v1077 = vld [vmem:[%s3 + $0x24c] sm:$0xff]
    %v1078 = vld [vmem:[%s3 + $0x254] sm:$0xf]
    %v1079 = vld [vmem:[%s3 + $0x258] sm:$0xff]
    %v1080 = vld [vmem:[%s3 + $0x260] sm:$0xf]
    %v1081 = vld [vmem:[%s3 + $0x264] sm:$0xff]
    %v1082 = vld [vmem:[%s3 + $0x26c] sm:$0xf]
    %v1083 = vld [vmem:[%s3 + $0x270] sm:$0xff]
    %v1084 = vld [vmem:[%s3 + $0x278] sm:$0xf]
    %v1085 = vld [vmem:[%s3 + $0x27c] sm:$0xff]
    %v1086 = vld [vmem:[%s3 + $0x284] sm:$0xf]
    %v1087 = vld [vmem:[%s3 + $0x288] sm:$0xff]
    %v1088 = vld [vmem:[%s3 + $0x290] sm:$0xf]
    %v1089 = vld [vmem:[%s3 + $0x294] sm:$0xff]
    %v1090 = vld [vmem:[%s3 + $0x29c] sm:$0xf]
    %v1091 = vld [vmem:[%s3 + $0x2a0] sm:$0xff]
    %v1092 = vld [vmem:[%s3 + $0x2a8] sm:$0xf]
    %v1093 = vld [vmem:[%s3 + $0x2ac] sm:$0xff]
    %v1094 = vld [vmem:[%s3 + $0x2b4] sm:$0xf]
    %v1095 = vld [vmem:[%s3 + $0x2b8] sm:$0xff]
    %v1096 = vld [vmem:[%s3 + $0x2c0] sm:$0xf]
    %v1097 = vld [vmem:[%s3 + $0x2c4] sm:$0xff]
    %v1098 = vld [vmem:[%s3 + $0x2cc] sm:$0xf]
    %v1099 = vld [vmem:[%s3 + $0x2d0] sm:$0xff]
    %v1100 = vld [vmem:[%s3 + $0x2d8] sm:$0xf]
    %v1101 = vld [vmem:[%s3 + $0x2dc] sm:$0xff]
    %v1102 = vld [vmem:[%s3 + $0x2e4] sm:$0xf]
    %v1103 = vld [vmem:[%s3 + $0x2e8] sm:$0xff]
    %v1104 = vld [vmem:[%s3 + $0x2f0] sm:$0xf]
    %v1105 = vld [vmem:[%s3 + $0x2f4] sm:$0xff]
    %v1106 = vld [vmem:[%s3 + $0x2fc] sm:$0xf]
    %v1107 = vld [vmem:[%s4] sm:$0x7]
    %v1109 = vlaneseq
    %v1110 = vshrl.u32 %v1109, 7
    %v1111 = vsub.s32 0, %v1110
    %v1112 = vrot.slane %v1107, %v1111
    %v1113 = vlaneseq
    %v1114 = vshrl.u32 %v1113, 7
    %v1115 = vsub.s32 1, %v1114
    %v1116 = vrot.slane %v1107, %v1115
    %v1117 = vlaneseq
    %v1118 = vshrl.u32 %v1117, 7
    %v1119 = vsub.s32 2, %v1118
    %v1120 = vrot.slane %v1107, %v1119
    %v1252 = vunpack.c.l.b16 %v979
    %v1253 = vunpack.c.h.b16 %v979
    %v1254 = vunpack.c.l.b16 %v980
    %v1255 = vunpack.c.l.b16 %v981
    %v1256 = vunpack.c.h.b16 %v981
    %v1257 = vunpack.c.l.b16 %v982
    %v1258 = vunpack.c.l.b16 %v983
    %v1259 = vunpack.c.h.b16 %v983
    %v1260 = vunpack.c.l.b16 %v984
    %v1261 = vunpack.c.l.b16 %v985
    %v1262 = vunpack.c.h.b16 %v985
    %v1263 = vunpack.c.l.b16 %v986
    %v1264 = vunpack.c.l.b16 %v987
    %v1265 = vunpack.c.h.b16 %v987
    %v1266 = vunpack.c.l.b16 %v988
    %v1267 = vunpack.c.l.b16 %v989
    %v1268 = vunpack.c.h.b16 %v989
    %v1269 = vunpack.c.l.b16 %v990
    %v1270 = vunpack.c.l.b16 %v991
    %v1271 = vunpack.c.h.b16 %v991
    %v1272 = vunpack.c.l.b16 %v992
    %v1273 = vunpack.c.l.b16 %v993
    %v1274 = vunpack.c.h.b16 %v993
    %v1275 = vunpack.c.l.b16 %v994
    %v1276 = vunpack.c.l.b16 %v995
    %v1277 = vunpack.c.h.b16 %v995
    %v1278 = vunpack.c.l.b16 %v996
    %v1279 = vunpack.c.l.b16 %v997
    %v1280 = vunpack.c.h.b16 %v997
    %v1281 = vunpack.c.l.b16 %v998
    %v1282 = vunpack.c.l.b16 %v999
    %v1283 = vunpack.c.h.b16 %v999
    %v1284 = vunpack.c.l.b16 %v1000
    %v1285 = vunpack.c.l.b16 %v1001
    %v1286 = vunpack.c.h.b16 %v1001
    %v1287 = vunpack.c.l.b16 %v1002
    %v1288 = vunpack.c.l.b16 %v1003
    %v1289 = vunpack.c.h.b16 %v1003
    %v1290 = vunpack.c.l.b16 %v1004
    %v1291 = vunpack.c.l.b16 %v1005
    %v1292 = vunpack.c.h.b16 %v1005
    %v1293 = vunpack.c.l.b16 %v1006
    %v1294 = vunpack.c.l.b16 %v1007
    %v1295 = vunpack.c.h.b16 %v1007
    %v1296 = vunpack.c.l.b16 %v1008
    %v1297 = vunpack.c.l.b16 %v1009
    %v1298 = vunpack.c.h.b16 %v1009
    %v1299 = vunpack.c.l.b16 %v1010
    %v1300 = vunpack.c.l.b16 %v1011
    %v1301 = vunpack.c.h.b16 %v1011
    %v1302 = vunpack.c.l.b16 %v1012
    %v1303 = vunpack.c.l.b16 %v1013
    %v1304 = vunpack.c.h.b16 %v1013
    %v1305 = vunpack.c.l.b16 %v1014
    %v1306 = vunpack.c.l.b16 %v1015
    %v1307 = vunpack.c.h.b16 %v1015
    %v1308 = vunpack.c.l.b16 %v1016
    %v1309 = vunpack.c.l.b16 %v1017
    %v1310 = vunpack.c.h.b16 %v1017
    %v1311 = vunpack.c.l.b16 %v1018
    %v1312 = vunpack.c.l.b16 %v1019
    %v1313 = vunpack.c.h.b16 %v1019
    %v1314 = vunpack.c.l.b16 %v1020
    %v1315 = vunpack.c.l.b16 %v1021
    %v1316 = vunpack.c.h.b16 %v1021
    %v1317 = vunpack.c.l.b16 %v1022
    %v1318 = vunpack.c.l.b16 %v1023
    %v1319 = vunpack.c.h.b16 %v1023
    %v1320 = vunpack.c.l.b16 %v1024
    %v1321 = vunpack.c.l.b16 %v1025
    %v1322 = vunpack.c.h.b16 %v1025
    %v1323 = vunpack.c.l.b16 %v1026
    %v1324 = vunpack.c.l.b16 %v1027
    %v1325 = vunpack.c.h.b16 %v1027
    %v1326 = vunpack.c.l.b16 %v1028
    %v1327 = vunpack.c.l.b16 %v1029
    %v1328 = vunpack.c.h.b16 %v1029
    %v1329 = vunpack.c.l.b16 %v1030
    %v1330 = vunpack.c.l.b16 %v1031
    %v1331 = vunpack.c.h.b16 %v1031
    %v1332 = vunpack.c.l.b16 %v1032
    %v1333 = vunpack.c.l.b16 %v1033
    %v1334 = vunpack.c.h.b16 %v1033
    %v1335 = vunpack.c.l.b16 %v1034
    %v1336 = vunpack.c.l.b16 %v1035
    %v1337 = vunpack.c.h.b16 %v1035
    %v1338 = vunpack.c.l.b16 %v1036
    %v1339 = vunpack.c.l.b16 %v1037
    %v1340 = vunpack.c.h.b16 %v1037
    %v1341 = vunpack.c.l.b16 %v1038
    %v1342 = vunpack.c.l.b16 %v1039
    %v1343 = vunpack.c.h.b16 %v1039
    %v1344 = vunpack.c.l.b16 %v1040
    %v1345 = vunpack.c.l.b16 %v1041
    %v1346 = vunpack.c.h.b16 %v1041
    %v1347 = vunpack.c.l.b16 %v1042
    %v1348 = vunpack.c.l.b16 %v1043
    %v1349 = vunpack.c.h.b16 %v1043
    %v1350 = vunpack.c.l.b16 %v1044
    %v1351 = vunpack.c.l.b16 %v1045
    %v1352 = vunpack.c.h.b16 %v1045
    %v1353 = vunpack.c.l.b16 %v1046
    %v1354 = vunpack.c.l.b16 %v1047
    %v1355 = vunpack.c.h.b16 %v1047
    %v1356 = vunpack.c.l.b16 %v1048
    %v1357 = vunpack.c.l.b16 %v1049
    %v1358 = vunpack.c.h.b16 %v1049
    %v1359 = vunpack.c.l.b16 %v1050
    %v1360 = vunpack.c.l.b16 %v1051
    %v1361 = vunpack.c.h.b16 %v1051
    %v1362 = vunpack.c.l.b16 %v1052
    %v1363 = vunpack.c.l.b16 %v1053
    %v1364 = vunpack.c.h.b16 %v1053
    %v1365 = vunpack.c.l.b16 %v1054
    %v1366 = vunpack.c.l.b16 %v1055
    %v1367 = vunpack.c.h.b16 %v1055
    %v1368 = vunpack.c.l.b16 %v1056
    %v1369 = vunpack.c.l.b16 %v1057
    %v1370 = vunpack.c.h.b16 %v1057
    %v1371 = vunpack.c.l.b16 %v1058
    %v1372 = vunpack.c.l.b16 %v1059
    %v1373 = vunpack.c.h.b16 %v1059
    %v1374 = vunpack.c.l.b16 %v1060
    %v1375 = vunpack.c.l.b16 %v1061
    %v1376 = vunpack.c.h.b16 %v1061
    %v1377 = vunpack.c.l.b16 %v1062
    %v1378 = vunpack.c.l.b16 %v1063
    %v1379 = vunpack.c.h.b16 %v1063
    %v1380 = vunpack.c.l.b16 %v1064
    %v1381 = vunpack.c.l.b16 %v1065
    %v1382 = vunpack.c.h.b16 %v1065
    %v1383 = vunpack.c.l.b16 %v1066
    %v1384 = vunpack.c.l.b16 %v1067
    %v1385 = vunpack.c.h.b16 %v1067
    %v1386 = vunpack.c.l.b16 %v1068
    %v1387 = vunpack.c.l.b16 %v1069
    %v1388 = vunpack.c.h.b16 %v1069
    %v1389 = vunpack.c.l.b16 %v1070
    %v1390 = vunpack.c.l.b16 %v1071
    %v1391 = vunpack.c.h.b16 %v1071
    %v1392 = vunpack.c.l.b16 %v1072
    %v1393 = vunpack.c.l.b16 %v1073
    %v1394 = vunpack.c.h.b16 %v1073
    %v1395 = vunpack.c.l.b16 %v1074
    %v1396 = vunpack.c.l.b16 %v1075
    %v1397 = vunpack.c.h.b16 %v1075
    %v1398 = vunpack.c.l.b16 %v1076
    %v1399 = vunpack.c.l.b16 %v1077
    %v1400 = vunpack.c.h.b16 %v1077
    %v1401 = vunpack.c.l.b16 %v1078
    %v1402 = vunpack.c.l.b16 %v1079
    %v1403 = vunpack.c.h.b16 %v1079
    %v1404 = vunpack.c.l.b16 %v1080
    %v1405 = vunpack.c.l.b16 %v1081
    %v1406 = vunpack.c.h.b16 %v1081
    %v1407 = vunpack.c.l.b16 %v1082
    %v1408 = vunpack.c.l.b16 %v1083
    %v1409 = vunpack.c.h.b16 %v1083
    %v1410 = vunpack.c.l.b16 %v1084
    %v1411 = vunpack.c.l.b16 %v1085
    %v1412 = vunpack.c.h.b16 %v1085
    %v1413 = vunpack.c.l.b16 %v1086
    %v1414 = vunpack.c.l.b16 %v1087
    %v1415 = vunpack.c.h.b16 %v1087
    %v1416 = vunpack.c.l.b16 %v1088
    %v1417 = vunpack.c.l.b16 %v1089
    %v1418 = vunpack.c.h.b16 %v1089
    %v1419 = vunpack.c.l.b16 %v1090
    %v1420 = vunpack.c.l.b16 %v1091
    %v1421 = vunpack.c.h.b16 %v1091
    %v1422 = vunpack.c.l.b16 %v1092
    %v1423 = vunpack.c.l.b16 %v1093
    %v1424 = vunpack.c.h.b16 %v1093
    %v1425 = vunpack.c.l.b16 %v1094
    %v1426 = vunpack.c.l.b16 %v1095
    %v1427 = vunpack.c.h.b16 %v1095
    %v1428 = vunpack.c.l.b16 %v1096
    %v1429 = vunpack.c.l.b16 %v1097
    %v1430 = vunpack.c.h.b16 %v1097
    %v1431 = vunpack.c.l.b16 %v1098
    %v1432 = vunpack.c.l.b16 %v1099
    %v1433 = vunpack.c.h.b16 %v1099
    %v1434 = vunpack.c.l.b16 %v1100
    %v1435 = vunpack.c.l.b16 %v1101
    %v1436 = vunpack.c.h.b16 %v1101
    %v1437 = vunpack.c.l.b16 %v1102
    %v1438 = vunpack.c.l.b16 %v1103
    %v1439 = vunpack.c.h.b16 %v1103
    %v1440 = vunpack.c.l.b16 %v1104
    %v1441 = vunpack.c.l.b16 %v1105
    %v1442 = vunpack.c.h.b16 %v1105
    %v1443 = vunpack.c.l.b16 %v1106
    %v1444 = vpack.c.b16 %v1255, %v1252
    %v1445 = vpack.c.b16 %v1256, %v1253
    %v1446 = vpack.c.b16 %v1257, %v1254
    %v1447 = vpack.c.b16 %v1261, %v1258
    %v1448 = vpack.c.b16 %v1262, %v1259
    %v1449 = vpack.c.b16 %v1263, %v1260
    %v1450 = vpack.c.b16 %v1267, %v1264
    %v1451 = vpack.c.b16 %v1268, %v1265
    %v1452 = vpack.c.b16 %v1269, %v1266
    %v1453 = vpack.c.b16 %v1273, %v1270
    %v1454 = vpack.c.b16 %v1274, %v1271
    %v1455 = vpack.c.b16 %v1275, %v1272
    %v1456 = vpack.c.b16 %v1279, %v1276
    %v1457 = vpack.c.b16 %v1280, %v1277
    %v1458 = vpack.c.b16 %v1281, %v1278
    %v1459 = vpack.c.b16 %v1285, %v1282
    %v1460 = vpack.c.b16 %v1286, %v1283
    %v1461 = vpack.c.b16 %v1287, %v1284
    %v1462 = vpack.c.b16 %v1291, %v1288
    %v1463 = vpack.c.b16 %v1292, %v1289
    %v1464 = vpack.c.b16 %v1293, %v1290
    %v1465 = vpack.c.b16 %v1297, %v1294
    %v1466 = vpack.c.b16 %v1298, %v1295
    %v1467 = vpack.c.b16 %v1299, %v1296
    %v1468 = vpack.c.b16 %v1303, %v1300
    %v1469 = vpack.c.b16 %v1304, %v1301
    %v1470 = vpack.c.b16 %v1305, %v1302
    %v1471 = vpack.c.b16 %v1309, %v1306
    %v1472 = vpack.c.b16 %v1310, %v1307
    %v1473 = vpack.c.b16 %v1311, %v1308
    %v1474 = vpack.c.b16 %v1315, %v1312
    %v1475 = vpack.c.b16 %v1316, %v1313
    %v1476 = vpack.c.b16 %v1317, %v1314
    %v1477 = vpack.c.b16 %v1321, %v1318
    %v1478 = vpack.c.b16 %v1322, %v1319
    %v1479 = vpack.c.b16 %v1323, %v1320
    %v1480 = vpack.c.b16 %v1327, %v1324
    %v1481 = vpack.c.b16 %v1328, %v1325
    %v1482 = vpack.c.b16 %v1329, %v1326
    %v1483 = vpack.c.b16 %v1333, %v1330
    %v1484 = vpack.c.b16 %v1334, %v1331
    %v1485 = vpack.c.b16 %v1335, %v1332
    %v1486 = vpack.c.b16 %v1339, %v1336
    %v1487 = vpack.c.b16 %v1340, %v1337
    %v1488 = vpack.c.b16 %v1341, %v1338
    %v1489 = vpack.c.b16 %v1345, %v1342
    %v1490 = vpack.c.b16 %v1346, %v1343
    %v1491 = vpack.c.b16 %v1347, %v1344
    %v1492 = vpack.c.b16 %v1351, %v1348
    %v1493 = vpack.c.b16 %v1352, %v1349
    %v1494 = vpack.c.b16 %v1353, %v1350
    %v1495 = vpack.c.b16 %v1357, %v1354
    %v1496 = vpack.c.b16 %v1358, %v1355
    %v1497 = vpack.c.b16 %v1359, %v1356
    %v1498 = vpack.c.b16 %v1363, %v1360
    %v1499 = vpack.c.b16 %v1364, %v1361
    %v1500 = vpack.c.b16 %v1365, %v1362
    %v1501 = vpack.c.b16 %v1369, %v1366
    %v1502 = vpack.c.b16 %v1370, %v1367
    %v1503 = vpack.c.b16 %v1371, %v1368
    %v1504 = vpack.c.b16 %v1375, %v1372
    %v1505 = vpack.c.b16 %v1376, %v1373
    %v1506 = vpack.c.b16 %v1377, %v1374
    %v1507 = vpack.c.b16 %v1381, %v1378
    %v1508 = vpack.c.b16 %v1382, %v1379
    %v1509 = vpack.c.b16 %v1383, %v1380
    %v1510 = vpack.c.b16 %v1387, %v1384
    %v1511 = vpack.c.b16 %v1388, %v1385
    %v1512 = vpack.c.b16 %v1389, %v1386
    %v1513 = vpack.c.b16 %v1393, %v1390
    %v1514 = vpack.c.b16 %v1394, %v1391
    %v1515 = vpack.c.b16 %v1395, %v1392
    %v1516 = vpack.c.b16 %v1399, %v1396
    %v1517 = vpack.c.b16 %v1400, %v1397
    %v1518 = vpack.c.b16 %v1401, %v1398
    %v1519 = vpack.c.b16 %v1405, %v1402
    %v1520 = vpack.c.b16 %v1406, %v1403
    %v1521 = vpack.c.b16 %v1407, %v1404
    %v1522 = vpack.c.b16 %v1411, %v1408
    %v1523 = vpack.c.b16 %v1412, %v1409
    %v1524 = vpack.c.b16 %v1413, %v1410
    %v1525 = vpack.c.b16 %v1417, %v1414
    %v1526 = vpack.c.b16 %v1418, %v1415
    %v1527 = vpack.c.b16 %v1419, %v1416
    %v1528 = vpack.c.b16 %v1423, %v1420
    %v1529 = vpack.c.b16 %v1424, %v1421
    %v1530 = vpack.c.b16 %v1425, %v1422
    %v1531 = vpack.c.b16 %v1429, %v1426
    %v1532 = vpack.c.b16 %v1430, %v1427
    %v1533 = vpack.c.b16 %v1431, %v1428
    %v1534 = vpack.c.b16 %v1435, %v1432
    %v1535 = vpack.c.b16 %v1436, %v1433
    %v1536 = vpack.c.b16 %v1437, %v1434
    %v1537 = vpack.c.b16 %v1441, %v1438
    %v1538 = vpack.c.b16 %v1442, %v1439
    %v1539 = vpack.c.b16 %v1443, %v1440
    %1636 = vmatprep.subr.bf16.mxu0 %v1445
    %1637 = vmatpush1.bf16.msra.mxu0 %v1444
    %1638 = vmatprep.subr.bf16.mxu0 %v1448
    %1639 = vmatpush1.bf16.msra.mxu0 %v1447
    %1640 = vmatprep.subr.bf16.mxu0 %v1451
    %1641 = vmatpush1.bf16.msra.mxu0 %v1450
    %1642 = vmatprep.subr.bf16.mxu0 %v1454
    %1643 = vmatpush1.bf16.msra.mxu0 %v1453
    %1644 = vmatprep.subr.bf16.mxu0 %v1457
    %1645 = vmatpush1.bf16.msra.mxu0 %v1456
    %1646 = vmatprep.subr.bf16.mxu0 %v1460
    %1647 = vmatpush1.bf16.msra.mxu0 %v1459
    %1648 = vmatprep.subr.bf16.mxu0 %v1463
    %1649 = vmatpush1.bf16.msra.mxu0 %v1462
    %1650 = vmatprep.subr.bf16.mxu0 %v1466
    %1651 = vmatpush1.bf16.msra.mxu0 %v1465
    %1652 = vmatprep.subr.bf16.mxu0 %v1469
    %1653 = vmatpush1.bf16.msra.mxu0 %v1468
    %1654 = vmatprep.subr.bf16.mxu0 %v1472
    %1655 = vmatpush1.bf16.msra.mxu0 %v1471
    %1656 = vmatprep.subr.bf16.mxu0 %v1475
    %1657 = vmatpush1.bf16.msra.mxu0 %v1474
    %1658 = vmatprep.subr.bf16.mxu0 %v1478
    %1659 = vmatpush1.bf16.msra.mxu0 %v1477
    %1660 = vmatprep.subr.bf16.mxu0 %v1481
    %1661 = vmatpush1.bf16.msra.mxu0 %v1480
    %1662 = vmatprep.subr.bf16.mxu0 %v1484
    %1663 = vmatpush1.bf16.msra.mxu0 %v1483
    %1664 = vmatprep.subr.bf16.mxu0 %v1487
    %1665 = vmatpush1.bf16.msra.mxu0 %v1486
    %1666 = vmatprep.subr.bf16.mxu0 %v1490
    %1667 = vmatpush1.bf16.msra.mxu0 %v1489
    %1668 = vmatprep.mubr.bf16.mxu0 %v976
    %1669 = vmatmul.mubr.bf16.gmra.mrb[0].mxu0 %v975
    %v1670 = vpop.f32.mrb[0].mxu0
    %v1671 = vadd.f32 %v1112, %v1670
    %v1672 = vpop.f32.mrb[0].mxu0
    %v1673 = vadd.f32 %v1116, %v1672
    %v1674 = vpop.f32.mrb[0].mxu0
    %v1675 = vpop.f32.mrb[0].mxu0
    %1676 = vdwg.mxu0
    %1677 = vmatprep.subr.bf16.mxu0 %v1493
    %1678 = vmatpush1.bf16.msra.mxu0 %v1492
    %1679 = vmatprep.subr.bf16.mxu0 %v1496
    %1680 = vmatpush1.bf16.msra.mxu0 %v1495
    %1681 = vmatprep.subr.bf16.mxu0 %v1499
    %1682 = vmatpush1.bf16.msra.mxu0 %v1498
    %1683 = vmatprep.subr.bf16.mxu0 %v1502
    %1684 = vmatpush1.bf16.msra.mxu0 %v1501
    %1685 = vmatprep.subr.bf16.mxu0 %v1505
    %1686 = vmatpush1.bf16.msra.mxu0 %v1504
    %1687 = vmatprep.subr.bf16.mxu0 %v1508
    %1688 = vmatpush1.bf16.msra.mxu0 %v1507
    %1689 = vmatprep.subr.bf16.mxu0 %v1511
    %1690 = vmatpush1.bf16.msra.mxu0 %v1510
    %1691 = vmatprep.subr.bf16.mxu0 %v1514
    %1692 = vmatpush1.bf16.msra.mxu0 %v1513
    %1693 = vmatprep.subr.bf16.mxu0 %v1517
    %1694 = vmatpush1.bf16.msra.mxu0 %v1516
    %1695 = vmatprep.subr.bf16.mxu0 %v1520
    %1696 = vmatpush1.bf16.msra.mxu0 %v1519
    %1697 = vmatprep.subr.bf16.mxu0 %v1523
    %1698 = vmatpush1.bf16.msra.mxu0 %v1522
    %1699 = vmatprep.subr.bf16.mxu0 %v1526
    %1700 = vmatpush1.bf16.msra.mxu0 %v1525
    %1701 = vmatprep.subr.bf16.mxu0 %v1529
    %1702 = vmatpush1.bf16.msra.mxu0 %v1528
    %1703 = vmatprep.subr.bf16.mxu0 %v1532
    %1704 = vmatpush1.bf16.msra.mxu0 %v1531
    %1705 = vmatprep.subr.bf16.mxu0 %v1535
    %1706 = vmatpush1.bf16.msra.mxu0 %v1534
    %1707 = vmatprep.subr.bf16.mxu0 %v1538
    %1708 = vmatpush1.bf16.msra.mxu0 %v1537
    %1709 = vmatprep.mubr.bf16.mxu0 %v978
    %1710 = vmatmul.mubr.bf16.gmra.mrb[0].mxu0 %v977
    %v1711 = vpop.f32.mrb[0].mxu0
    %v1712 = vadd.f32 %v1671, %v1711
    %v1713 = vpop.f32.mrb[0].mxu0
    %v1714 = vadd.f32 %v1673, %v1713
    %v1715 = vpop.f32.mrb[0].mxu0
    %v1716 = vpop.f32.mrb[0].mxu0
    %1717 = vdwg.mxu0
    %1718 = vmatprep.subr.bf16.mxu0 0
    %1719 = vmatpush1.bf16.msra.mxu0 %v1446
    %1720 = vmatprep.subr.bf16.mxu0 0
    %1721 = vmatpush1.bf16.msra.mxu0 %v1449
    %1722 = vmatprep.subr.bf16.mxu0 0
    %1723 = vmatpush1.bf16.msra.mxu0 %v1452
    %1724 = vmatprep.subr.bf16.mxu0 0
    %1725 = vmatpush1.bf16.msra.mxu0 %v1455
    %1726 = vmatprep.subr.bf16.mxu0 0
    %1727 = vmatpush1.bf16.msra.mxu0 %v1458
    %1728 = vmatprep.subr.bf16.mxu0 0
    %1729 = vmatpush1.bf16.msra.mxu0 %v1461
    %1730 = vmatprep.subr.bf16.mxu0 0
    %1731 = vmatpush1.bf16.msra.mxu0 %v1464
    %1732 = vmatprep.subr.bf16.mxu0 0
    %1733 = vmatpush1.bf16.msra.mxu0 %v1467
    %1734 = vmatprep.subr.bf16.mxu0 0
    %1735 = vmatpush1.bf16.msra.mxu0 %v1470
    %1736 = vmatprep.subr.bf16.mxu0 0
    %1737 = vmatpush1.bf16.msra.mxu0 %v1473
    %1738 = vmatprep.subr.bf16.mxu0 0
    %1739 = vmatpush1.bf16.msra.mxu0 %v1476
    %1740 = vmatprep.subr.bf16.mxu0 0
    %1741 = vmatpush1.bf16.msra.mxu0 %v1479
    %1742 = vmatprep.subr.bf16.mxu0 0
    %1743 = vmatpush1.bf16.msra.mxu0 %v1482
    %1744 = vmatprep.subr.bf16.mxu0 0
    %1745 = vmatpush1.bf16.msra.mxu0 %v1485
    %1746 = vmatprep.subr.bf16.mxu0 0
    %1747 = vmatpush1.bf16.msra.mxu0 %v1488
    %1748 = vmatprep.subr.bf16.mxu0 0
    %1749 = vmatpush1.bf16.msra.mxu0 %v1491
    %1750 = vmatprep.mubr.bf16.mxu0 %v976
    %1751 = vmatmul.mubr.bf16.gmra.mrb[0].mxu0 %v975
    %v1752 = vpop.f32.mrb[0].mxu0
    %v1753 = vadd.f32 %v1120, %v1752
    %v1754 = vpop.f32.mrb[0].mxu0
    %v1755 = vpop.f32.mrb[0].mxu0
    %v1756 = vpop.f32.mrb[0].mxu0
    %1757 = vdwg.mxu0
    %1758 = vmatprep.subr.bf16.mxu0 0
    %1759 = vmatpush1.bf16.msra.mxu0 %v1494
    %1760 = vmatprep.subr.bf16.mxu0 0
    %1761 = vmatpush1.bf16.msra.mxu0 %v1497
    %1762 = vmatprep.subr.bf16.mxu0 0
    %1763 = vmatpush1.bf16.msra.mxu0 %v1500
    %1764 = vmatprep.subr.bf16.mxu0 0
    %1765 = vmatpush1.bf16.msra.mxu0 %v1503
    %1766 = vmatprep.subr.bf16.mxu0 0
    %1767 = vmatpush1.bf16.msra.mxu0 %v1506
    %1768 = vmatprep.subr.bf16.mxu0 0
    %1769 = vmatpush1.bf16.msra.mxu0 %v1509
    %1770 = vmatprep.subr.bf16.mxu0 0
    %1771 = vmatpush1.bf16.msra.mxu0 %v1512
    %1772 = vmatprep.subr.bf16.mxu0 0
    %1773 = vmatpush1.bf16.msra.mxu0 %v1515
    %1774 = vmatprep.subr.bf16.mxu0 0
    %1775 = vmatpush1.bf16.msra.mxu0 %v1518
    %1776 = vmatprep.subr.bf16.mxu0 0
    %1777 = vmatpush1.bf16.msra.mxu0 %v1521
    %1778 = vmatprep.subr.bf16.mxu0 0
    %1779 = vmatpush1.bf16.msra.mxu0 %v1524
    %1780 = vmatprep.subr.bf16.mxu0 0
    %1781 = vmatpush1.bf16.msra.mxu0 %v1527
    %1782 = vmatprep.subr.bf16.mxu0 0
    %1783 = vmatpush1.bf16.msra.mxu0 %v1530
    %1784 = vmatprep.subr.bf16.mxu0 0
    %1785 = vmatpush1.bf16.msra.mxu0 %v1533
    %1786 = vmatprep.subr.bf16.mxu0 0
    %1787 = vmatpush1.bf16.msra.mxu0 %v1536
    %1788 = vmatprep.subr.bf16.mxu0 0
    %1789 = vmatpush1.bf16.msra.mxu0 %v1539
    %1790 = vmatprep.mubr.bf16.mxu0 %v978
    %1791 = vmatmul.mubr.bf16.gmra.mrb[0].mxu0 %v977
    %v1792 = vpop.f32.mrb[0].mxu0
    %v1793 = vadd.f32 %v1753, %v1792
    %v1794 = vpop.f32.mrb[0].mxu0
    %v1795 = vpop.f32.mrb[0].mxu0
    %v1796 = vpop.f32.mrb[0].mxu0
    %1797 = vdwg.mxu0
    %v1798 = vmax.f32 %v1712, 0.0
    %v1799 = vmax.f32 %v1714, 0.0
    %v1800 = vmax.f32 %v1793, 0.0
    %v1801 = vpack.c.bf16 %v1798, %v1798
    %v1802 = vpack.c.bf16 %v1799, %v1799
    %v1803 = vpack.c.bf16 %v1800, %v1800
    %v1804 = vld [vmem:[%s5] sm:$0xf]
    %v1805 = vld [vmem:[%s5 + $0x4] sm:$0xf]
    %v1806 = vld [vmem:[%s5 + $0x8] sm:$0xf]
    %v1807 = vld [vmem:[%s5 + $0xc] sm:$0xf]
    %v1808 = vld [vmem:[%s5 + $0x10] sm:$0xf]
    %v1809 = vld [vmem:[%s5 + $0x14] sm:$0xf]
    %v1810 = vld [vmem:[%s5 + $0x18] sm:$0xf]
    %v1811 = vld [vmem:[%s5 + $0x1c] sm:$0xf]
    %v1812 = vld [vmem:[%s5 + $0x20] sm:$0xf]
    %v1813 = vld [vmem:[%s5 + $0x24] sm:$0xf]
    %v1814 = vld [vmem:[%s5 + $0x28] sm:$0xf]
    %v1815 = vld [vmem:[%s5 + $0x2c] sm:$0xf]
    %v1816 = vld [vmem:[%s5 + $0x30] sm:$0xf]
    %v1817 = vld [vmem:[%s5 + $0x34] sm:$0xf]
    %v1818 = vld [vmem:[%s5 + $0x38] sm:$0xf]
    %v1819 = vld [vmem:[%s5 + $0x3c] sm:$0xf]
    %v1820 = vld [vmem:[%s5 + $0x40] sm:$0xf]
    %v1821 = vld [vmem:[%s5 + $0x44] sm:$0xf]
    %v1822 = vld [vmem:[%s5 + $0x48] sm:$0xf]
    %v1823 = vld [vmem:[%s5 + $0x4c] sm:$0xf]
    %v1824 = vld [vmem:[%s5 + $0x50] sm:$0xf]
    %v1825 = vld [vmem:[%s5 + $0x54] sm:$0xf]
    %v1826 = vld [vmem:[%s5 + $0x58] sm:$0xf]
    %v1827 = vld [vmem:[%s5 + $0x5c] sm:$0xf]
    %v1828 = vld [vmem:[%s5 + $0x60] sm:$0xf]
    %v1829 = vld [vmem:[%s5 + $0x64] sm:$0xf]
    %v1830 = vld [vmem:[%s5 + $0x68] sm:$0xf]
    %v1831 = vld [vmem:[%s5 + $0x6c] sm:$0xf]
    %v1832 = vld [vmem:[%s5 + $0x70] sm:$0xf]
    %v1833 = vld [vmem:[%s5 + $0x74] sm:$0xf]
    %v1834 = vld [vmem:[%s5 + $0x78] sm:$0xf]
    %v1835 = vld [vmem:[%s5 + $0x7c] sm:$0xf]
    %v1836 = vld [vmem:[%s5 + $0x80] sm:$0xf]
    %v1837 = vld [vmem:[%s5 + $0x84] sm:$0xf]
    %v1838 = vld [vmem:[%s5 + $0x88] sm:$0xf]
    %v1839 = vld [vmem:[%s5 + $0x8c] sm:$0xf]
    %v1840 = vld [vmem:[%s5 + $0x90] sm:$0xf]
    %v1841 = vld [vmem:[%s5 + $0x94] sm:$0xf]
    %v1842 = vld [vmem:[%s5 + $0x98] sm:$0xf]
    %v1843 = vld [vmem:[%s5 + $0x9c] sm:$0xf]
    %v1844 = vld [vmem:[%s5 + $0xa0] sm:$0xf]
    %v1845 = vld [vmem:[%s5 + $0xa4] sm:$0xf]
    %v1846 = vld [vmem:[%s5 + $0xa8] sm:$0xf]
    %v1847 = vld [vmem:[%s5 + $0xac] sm:$0xf]
    %v1848 = vld [vmem:[%s5 + $0xb0] sm:$0xf]
    %v1849 = vld [vmem:[%s5 + $0xb4] sm:$0xf]
    %v1850 = vld [vmem:[%s5 + $0xb8] sm:$0xf]
    %v1851 = vld [vmem:[%s5 + $0xbc] sm:$0xf]
    %v1852 = vld [vmem:[%s6] sm:$0x1]
    %v1854 = vlaneseq
    %v1855 = vshrl.u32 %v1854, 7
    %v1856 = vsub.s32 0, %v1855
    %v1857 = vrot.slane %v1852, %v1856
    %v1907 = vunpack.c.l.b16 %v1804
    %v1908 = vunpack.c.l.b16 %v1805
    %v1909 = vunpack.c.l.b16 %v1806
    %v1910 = vunpack.c.l.b16 %v1807
    %v1911 = vunpack.c.l.b16 %v1808
    %v1912 = vunpack.c.l.b16 %v1809
    %v1913 = vunpack.c.l.b16 %v1810
    %v1914 = vunpack.c.l.b16 %v1811
    %v1915 = vunpack.c.l.b16 %v1812
    %v1916 = vunpack.c.l.b16 %v1813
    %v1917 = vunpack.c.l.b16 %v1814
    %v1918 = vunpack.c.l.b16 %v1815
    %v1919 = vunpack.c.l.b16 %v1816
    %v1920 = vunpack.c.l.b16 %v1817
    %v1921 = vunpack.c.l.b16 %v1818
    %v1922 = vunpack.c.l.b16 %v1819
    %v1923 = vunpack.c.l.b16 %v1820
    %v1924 = vunpack.c.l.b16 %v1821
    %v1925 = vunpack.c.l.b16 %v1822
    %v1926 = vunpack.c.l.b16 %v1823
    %v1927 = vunpack.c.l.b16 %v1824
    %v1928 = vunpack.c.l.b16 %v1825
    %v1929 = vunpack.c.l.b16 %v1826
    %v1930 = vunpack.c.l.b16 %v1827
    %v1931 = vunpack.c.l.b16 %v1828
    %v1932 = vunpack.c.l.b16 %v1829
    %v1933 = vunpack.c.l.b16 %v1830
    %v1934 = vunpack.c.l.b16 %v1831
    %v1935 = vunpack.c.l.b16 %v1832
    %v1936 = vunpack.c.l.b16 %v1833
    %v1937 = vunpack.c.l.b16 %v1834
    %v1938 = vunpack.c.l.b16 %v1835
    %v1939 = vunpack.c.l.b16 %v1836
    %v1940 = vunpack.c.l.b16 %v1837
    %v1941 = vunpack.c.l.b16 %v1838
    %v1942 = vunpack.c.l.b16 %v1839
    %v1943 = vunpack.c.l.b16 %v1840
    %v1944 = vunpack.c.l.b16 %v1841
    %v1945 = vunpack.c.l.b16 %v1842
    %v1946 = vunpack.c.l.b16 %v1843
    %v1947 = vunpack.c.l.b16 %v1844
    %v1948 = vunpack.c.l.b16 %v1845
    %v1949 = vunpack.c.l.b16 %v1846
    %v1950 = vunpack.c.l.b16 %v1847
    %v1951 = vunpack.c.l.b16 %v1848
    %v1952 = vunpack.c.l.b16 %v1849
    %v1953 = vunpack.c.l.b16 %v1850
    %v1954 = vunpack.c.l.b16 %v1851
    %v1955 = vpack.c.b16 %v1908, %v1907
    %v1956 = vpack.c.b16 %v1910, %v1909
    %v1957 = vpack.c.b16 %v1912, %v1911
    %v1958 = vpack.c.b16 %v1914, %v1913
    %v1959 = vpack.c.b16 %v1916, %v1915
    %v1960 = vpack.c.b16 %v1918, %v1917
    %v1961 = vpack.c.b16 %v1920, %v1919
    %v1962 = vpack.c.b16 %v1922, %v1921
    %v1963 = vpack.c.b16 %v1924, %v1923
    %v1964 = vpack.c.b16 %v1926, %v1925
    %v1965 = vpack.c.b16 %v1928, %v1927
    %v1966 = vpack.c.b16 %v1930, %v1929
    %v1967 = vpack.c.b16 %v1932, %v1931
    %v1968 = vpack.c.b16 %v1934, %v1933
    %v1969 = vpack.c.b16 %v1936, %v1935
    %v1970 = vpack.c.b16 %v1938, %v1937
    %v1971 = vpack.c.b16 %v1940, %v1939
    %v1972 = vpack.c.b16 %v1942, %v1941
    %v1973 = vpack.c.b16 %v1944, %v1943
    %v1974 = vpack.c.b16 %v1946, %v1945
    %v1975 = vpack.c.b16 %v1948, %v1947
    %v1976 = vpack.c.b16 %v1950, %v1949
    %v1977 = vpack.c.b16 %v1952, %v1951
    %v1978 = vpack.c.b16 %v1954, %v1953
    %2003 = vmatprep.subr.bf16.mxu0 0
    %2004 = vmatpush1.bf16.msra.mxu0 %v1955
    %2005 = vmatprep.subr.bf16.mxu0 0
    %2006 = vmatpush1.bf16.msra.mxu0 %v1956
    %2007 = vmatprep.subr.bf16.mxu0 0
    %2008 = vmatpush1.bf16.msra.mxu0 %v1957
    %2009 = vmatprep.subr.bf16.mxu0 0
    %2010 = vmatpush1.bf16.msra.mxu0 %v1958
    %2011 = vmatprep.subr.bf16.mxu0 0
    %2012 = vmatpush1.bf16.msra.mxu0 %v1959
    %2013 = vmatprep.subr.bf16.mxu0 0
    %2014 = vmatpush1.bf16.msra.mxu0 %v1960
    %2015 = vmatprep.subr.bf16.mxu0 0
    %2016 = vmatpush1.bf16.msra.mxu0 %v1961
    %2017 = vmatprep.subr.bf16.mxu0 0
    %2018 = vmatpush1.bf16.msra.mxu0 %v1962
    %2019 = vmatprep.subr.bf16.mxu0 0
    %2020 = vmatpush1.bf16.msra.mxu0 %v1963
    %2021 = vmatprep.subr.bf16.mxu0 0
    %2022 = vmatpush1.bf16.msra.mxu0 %v1964
    %2023 = vmatprep.subr.bf16.mxu0 0
    %2024 = vmatpush1.bf16.msra.mxu0 %v1965
    %2025 = vmatprep.subr.bf16.mxu0 0
    %2026 = vmatpush1.bf16.msra.mxu0 %v1966
    %2027 = vmatprep.subr.bf16.mxu0 0
    %2028 = vmatpush1.bf16.msra.mxu0 %v1967
    %2029 = vmatprep.subr.bf16.mxu0 0
    %2030 = vmatpush1.bf16.msra.mxu0 %v1968
    %2031 = vmatprep.subr.bf16.mxu0 0
    %2032 = vmatpush1.bf16.msra.mxu0 %v1969
    %2033 = vmatprep.subr.bf16.mxu0 0
    %2034 = vmatpush1.bf16.msra.mxu0 %v1970
    %2035 = vmatprep.mubr.bf16.mxu0 %v1802
    %2036 = vmatmul.mubr.bf16.gmra.mrb[0].mxu0 %v1801
    %v2037 = vpop.f32.mrb[0].mxu0
    %v2038 = vadd.f32 %v1857, %v2037
    %v2039 = vpop.f32.mrb[0].mxu0
    %v2040 = vpop.f32.mrb[0].mxu0
    %v2041 = vpop.f32.mrb[0].mxu0
    %2042 = vdwg.mxu0
    %2043 = vmatprep.subr.bf16.mxu0 0
    %2044 = vmatpush1.bf16.msra.mxu0 %v1971
    %2045 = vmatprep.subr.bf16.mxu0 0
    %2046 = vmatpush1.bf16.msra.mxu0 %v1972
    %2047 = vmatprep.subr.bf16.mxu0 0
    %2048 = vmatpush1.bf16.msra.mxu0 %v1973
    %2049 = vmatprep.subr.bf16.mxu0 0
    %2050 = vmatpush1.bf16.msra.mxu0 %v1974
    %2051 = vmatprep.subr.bf16.mxu0 0
    %2052 = vmatpush1.bf16.msra.mxu0 %v1975
    %2053 = vmatprep.subr.bf16.mxu0 0
    %2054 = vmatpush1.bf16.msra.mxu0 %v1976
    %2055 = vmatprep.subr.bf16.mxu0 0
    %2056 = vmatpush1.bf16.msra.mxu0 %v1977
    %2057 = vmatprep.subr.bf16.mxu0 0
    %2058 = vmatpush1.bf16.msra.mxu0 %v1978
    %2059 = vmatprep.subr.bf16.mxu0 0
    %2060 = vmatpush1.bf16.msra.mxu0 0
    %2061 = vmatprep.subr.bf16.mxu0 0
    %2062 = vmatpush1.bf16.msra.mxu0 0
    %2063 = vmatprep.subr.bf16.mxu0 0
    %2064 = vmatpush1.bf16.msra.mxu0 0
    %2065 = vmatprep.subr.bf16.mxu0 0
    %2066 = vmatpush1.bf16.msra.mxu0 0
    %2067 = vmatprep.subr.bf16.mxu0 0
    %2068 = vmatpush1.bf16.msra.mxu0 0
    %2069 = vmatprep.subr.bf16.mxu0 0
    %2070 = vmatpush1.bf16.msra.mxu0 0
    %2071 = vmatprep.subr.bf16.mxu0 0
    %2072 = vmatpush1.bf16.msra.mxu0 0
    %2073 = vmatprep.subr.bf16.mxu0 0
    %2074 = vmatpush1.bf16.msra.mxu0 0
    %2075 = vmatprep.mubr.bf16.mxu0 0
    %2076 = vmatmul.mubr.bf16.gmra.mrb[0].mxu0 %v1803
    %v2077 = vpop.f32.mrb[0].mxu0
    %v2078 = vadd.f32 %v2038, %v2077
    %v2079 = vpop.f32.mrb[0].mxu0
    %v2080 = vpop.f32.mrb[0].mxu0
    %v2081 = vpop.f32.mrb[0].mxu0
    %2082 = vdwg.mxu0
    %v2083 = vmax.f32 %v2078, 0.0
    %v2084 = vpack.c.bf16 %v2083, %v2083
    %v2085 = vld [vmem:[%s7] sm:$0xf]
    %v2086 = vld [vmem:[%s7 + $0x4] sm:$0xf]
    %v2087 = vld [vmem:[%s7 + $0x8] sm:$0xf]
    %v2088 = vld [vmem:[%s7 + $0xc] sm:$0xf]
    %v2089 = vld [vmem:[%s7 + $0x10] sm:$0xf]
    %v2090 = vld [vmem:[%s7 + $0x14] sm:$0xf]
    %v2091 = vld [vmem:[%s7 + $0x18] sm:$0xf]
    %v2092 = vld [vmem:[%s7 + $0x1c] sm:$0xf]
    %v2093 = vld [vmem:[%s7 + $0x20] sm:$0xf]
    %v2094 = vld [vmem:[%s7 + $0x24] sm:$0xf]
    %v2095 = vld [vmem:[%s7 + $0x28] sm:$0xf]
    %v2096 = vld [vmem:[%s7 + $0x2c] sm:$0xf]
    %v2097 = vld [vmem:[%s7 + $0x30] sm:$0xf]
    %v2098 = vld [vmem:[%s7 + $0x34] sm:$0xf]
    %v2099 = vld [vmem:[%s7 + $0x38] sm:$0xf]
    %v2100 = vld [vmem:[%s7 + $0x3c] sm:$0xf]
    %v2101 = vld [vmem:[%s8] sm:$0x1]
    %v2103 = vlaneseq
    %v2104 = vshrl.u32 %v2103, 7
    %v2105 = vsub.s32 0, %v2104
    %v2106 = vrot.slane %v2101, %v2105
    %v2124 = vunpack.c.l.b16 %v2085
    %v2125 = vunpack.c.l.b16 %v2086
    %v2126 = vunpack.c.l.b16 %v2087
    %v2127 = vunpack.c.l.b16 %v2088
    %v2128 = vunpack.c.l.b16 %v2089
    %v2129 = vunpack.c.l.b16 %v2090
    %v2130 = vunpack.c.l.b16 %v2091
    %v2131 = vunpack.c.l.b16 %v2092
    %v2132 = vunpack.c.l.b16 %v2093
    %v2133 = vunpack.c.l.b16 %v2094
    %v2134 = vunpack.c.l.b16 %v2095
    %v2135 = vunpack.c.l.b16 %v2096
    %v2136 = vunpack.c.l.b16 %v2097
    %v2137 = vunpack.c.l.b16 %v2098
    %v2138 = vunpack.c.l.b16 %v2099
    %v2139 = vunpack.c.l.b16 %v2100
    %v2140 = vpack.c.b16 %v2125, %v2124
    %v2141 = vpack.c.b16 %v2127, %v2126
    %v2142 = vpack.c.b16 %v2129, %v2128
    %v2143 = vpack.c.b16 %v2131, %v2130
    %v2144 = vpack.c.b16 %v2133, %v2132
    %v2145 = vpack.c.b16 %v2135, %v2134
    %v2146 = vpack.c.b16 %v2137, %v2136
    %v2147 = vpack.c.b16 %v2139, %v2138
    %2156 = vmatprep.subr.bf16.mxu0 0
    %2157 = vmatpush1.bf16.msra.mxu0 %v2140
    %2158 = vmatprep.subr.bf16.mxu0 0
    %2159 = vmatpush1.bf16.msra.mxu0 %v2141
    %2160 = vmatprep.subr.bf16.mxu0 0
    %2161 = vmatpush1.bf16.msra.mxu0 %v2142
    %2162 = vmatprep.subr.bf16.mxu0 0
    %2163 = vmatpush1.bf16.msra.mxu0 %v2143
    %2164 = vmatprep.subr.bf16.mxu0 0
    %2165 = vmatpush1.bf16.msra.mxu0 %v2144
    %2166 = vmatprep.subr.bf16.mxu0 0
    %2167 = vmatpush1.bf16.msra.mxu0 %v2145
    %2168 = vmatprep.subr.bf16.mxu0 0
    %2169 = vmatpush1.bf16.msra.mxu0 %v2146
    %2170 = vmatprep.subr.bf16.mxu0 0
    %2171 = vmatpush1.bf16.msra.mxu0 %v2147
    %2172 = vmatprep.subr.bf16.mxu0 0
    %2173 = vmatpush1.bf16.msra.mxu0 0
    %2174 = vmatprep.subr.bf16.mxu0 0
    %2175 = vmatpush1.bf16.msra.mxu0 0
    %2176 = vmatprep.subr.bf16.mxu0 0
    %2177 = vmatpush1.bf16.msra.mxu0 0
    %2178 = vmatprep.subr.bf16.mxu0 0
    %2179 = vmatpush1.bf16.msra.mxu0 0
    %2180 = vmatprep.subr.bf16.mxu0 0
    %2181 = vmatpush1.bf16.msra.mxu0 0
    %2182 = vmatprep.subr.bf16.mxu0 0
    %2183 = vmatpush1.bf16.msra.mxu0 0
    %2184 = vmatprep.subr.bf16.mxu0 0
    %2185 = vmatpush1.bf16.msra.mxu0 0
    %2186 = vmatprep.subr.bf16.mxu0 0
    %2187 = vmatpush1.bf16.msra.mxu0 0
    %2188 = vmatprep.mubr.bf16.mxu0 0
    %2189 = vmatmul.mubr.bf16.gmra.mrb[0].mxu0 %v2084
    %v2190 = vpop.f32.mrb[0].mxu0
    %v2191 = vadd.f32 %v2106, %v2190
    %v2192 = vpop.f32.mrb[0].mxu0
    %v2193 = vpop.f32.mrb[0].mxu0
    %v2194 = vpop.f32.mrb[0].mxu0
    %2195 = vdwg.mxu0
    %2196 = vst [vmem:[#allocation2] sm:$0x3] %v2191
    // Predicated region
    $region38: #{tigranet_forward.7} parent=1 // pred_check
      _
    $region39: #{tigranet_forward.7} parent=1 // pred_check_branch
      %2198 = sbr.rel (0) target = $region41
    $region40: #{tigranet_forward.7} parent=1 // pred_region
      %s2200 = ssub.s32 32, 32
      %2201 = vsyncadd [#allocation3], %s2200
      %s2203 = sshll.u32 [#allocation2], 4
      %s2204 = int_to_ptr.vmem [resolvable:$true] %s2203
      %2206 = dma.vmem_to_hbm [thread:$0]  %s2204, 32, %s9, [#allocation3]
    $region41: #{tigranet_forward.7} parent=1 // pred_fallthru
      _
    // Predicated region
    $region42: #{tigranet_forward.7} parent=1 // pred_check
      _
    $region43: #{tigranet_forward.7} parent=1 // pred_check_branch
      %2208 = sbr.rel (0) target = $region45
    $region44: #{tigranet_forward.7} parent=1 // pred_region
      %2209 = dma.done [#allocation3], 32
    $region45: #{tigranet_forward.7} parent=1 // pred_fallthru
      _
    %2210 = vsyncpa [#allocation3], 1

</llo_original>
